<compile_context>
chip_gen: v7x
topology: tpu7x:2x2x1
jax: 0.10.0
libtpu: 0.0.40
codegen_flags: <defaults>
</compile_context>

<pallas_src>
import functools
import numpy as np
import jax
import jax.numpy as jnp
from jax.experimental import pallas as pl
from jax.experimental.pallas import tpu as pltpu

SCALING_FACTOR = 0.18215     # SD VAE scaling factor
TIMESTEP = 499               # self.timesteps = [499]
LATENT_CH = 4                # unet.config.in_channels
IMG_CH = 3
DOWN = 8                     # VAE spatial downsample factor
PROJ_IN, PROJ_OUT = 512, 1024


def _ddpm_step_coeffs(t=TIMESTEP):
    # DDPMScheduler (SD config): scaled_linear betas (0.00085 -> 0.012), 1000
    # train steps.  With set_timesteps(1), prev_t < 0 -> alpha_prod_t_prev = 1,
    # so prev_sample == pred_original_sample = (x - sqrt(1-a_t)*eps)/sqrt(a_t).
    # NOTE: only valid for exactly one inference step (as in the module).
    betas = np.linspace(0.00085 ** 0.5, 0.012 ** 0.5, 1000, dtype=np.float64) ** 2
    alphas_cumprod = np.cumprod(1.0 - betas)
    a_t = alphas_cumprod[t]
    return float(np.sqrt(1.0 - a_t)), float(1.0 / np.sqrt(a_t))


# ------------------------------ fused kernel --------------------------------

def _codiff_kernel(ve_ref, pw_ref, pb_ref, cw_ref, cb_ref,
                   x_ref, pool_w_ref, pool_h_ref, up_h_ref, up_w_ref,
                   enc_w_ref, enc_b_ref, unet_w_ref, dec_w_ref, dec_b_ref,
                   img_ref, xden_ref, *, c1, c2):
    """One grid step = one batch element; everything stays in vregs."""
    # ---- visual_embeds = self.proj(visual_embedding) + pooled conditioning -
    # bf16 operands on the MXU, f32 accumulation.  (Reference does the Linear
    # in f32; bf16 operands are the TPU-friendly precision per perf guidance.)
    ve = jnp.dot(ve_ref[0], pw_ref[...],
                 preferred_element_type=jnp.float32) + pb_ref[...]      # (S,1024) f32
    pooled_ve = jnp.mean(ve, axis=0, keepdims=True)                     # (1,1024) f32
    cond = jnp.dot(pooled_ve.astype(jnp.bfloat16), cw_ref[...],
                   preferred_element_type=jnp.float32) + cb_ref[...]    # (1,4) f32

    # ---- VAE encode stand-in: fused 8x8 avg-pool (NCHW, per-channel) -------
    pool_w = pool_w_ref[...]                                            # (W, w)
    pool_h = pool_h_ref[...]                                            # (h, H)
    pooled = []
    for c in range(IMG_CH):
        t = jnp.dot(x_ref[0, c], pool_w, preferred_element_type=jnp.float32)   # (H, w)
        pooled.append(jnp.dot(pool_h, t, preferred_element_type=jnp.float32))  # (h, w)

    # 1x1 conv 3->4 as unrolled VPU broadcast-FMAs, * scaling_factor
    lat = []
    for j in range(LATENT_CH):
        s = pooled[0] * enc_w_ref[0, j]
        for c in range(1, IMG_CH):
            s = s + pooled[c] * enc_w_ref[c, j]
        lat.append((s + enc_b_ref[j]) * SCALING_FACTOR)                 # (h, w) f32

    # ---- UNet stand-in: per-pixel linear 4->4 + pooled cross-attn cond -----
    pred = []
    for j in range(LATENT_CH):
        s = lat[0] * unet_w_ref[0, j]
        for c in range(1, LATENT_CH):
            s = s + lat[c] * unet_w_ref[c, j]
        pred.append(s + cond[:, j:j + 1])                               # (h, w)

    # ---- noise_scheduler.step: exact single-inference-step DDPM (t=499) ----
    xden = []
    for j in range(LATENT_CH):
        xd = (lat[j] - c1 * pred[j]) * c2
        xden.append(xd)
        xden_ref[0, j] = xd                                             # (h, w) store

    # ---- VAE decode stand-in: /scale, 1x1 conv 4->3, clamp, x8 upsample ----
    up_h = up_h_ref[...]                                                # (H, h)
    up_w = up_w_ref[...]                                                # (w, W)
    inv_scale = 1.0 / SCALING_FACTOR
    for c in range(IMG_CH):
        s = xden[0] * (dec_w_ref[0, c] * inv_scale)
        for j in range(1, LATENT_CH):
            s = s + xden[j] * (dec_w_ref[j, c] * inv_scale)
        rgb = jnp.clip(s + dec_b_ref[c], -1.0, 1.0)                     # (h, w)
        # nearest x8 upsample via 0/1 selection matmuls -> lane-dense (H, W)
        up = jnp.dot(jnp.dot(up_h, rgb, preferred_element_type=jnp.float32),
                     up_w, preferred_element_type=jnp.float32)          # (H, W)
        img_ref[0, c] = up


# ---------------------------- parameters / glue -----------------------------

def init_params(key):
    ks = jax.random.split(key, 8)
    p = {}
    # Real module parameter: self.proj = nn.Linear(512, 1024)
    p["proj_w"] = jax.random.normal(ks[0], (PROJ_IN, PROJ_OUT), jnp.float32) * 0.02
    p["proj_b"] = jnp.zeros((PROJ_OUT,), jnp.float32)
    # TODO(synk): pretrained AutoencoderKL / UNet2DConditionModel / LoRA are
    # replaced by deterministic 1x1-conv and linear stand-ins below.
    p["enc_w"] = jax.random.normal(ks[1], (IMG_CH, LATENT_CH), jnp.float32) * 0.1
    p["enc_b"] = jnp.zeros((LATENT_CH,), jnp.float32)
    p["unet_w"] = jax.random.normal(ks[2], (LATENT_CH, LATENT_CH), jnp.float32) * 0.1
    p["cond_w"] = jax.random.normal(ks[3], (PROJ_OUT, LATENT_CH), jnp.float32) * 0.02
    p["cond_b"] = jnp.zeros((LATENT_CH,), jnp.float32)
    p["dec_w"] = jax.random.normal(ks[4], (LATENT_CH, IMG_CH), jnp.float32) * 0.1
    p["dec_b"] = jnp.zeros((IMG_CH,), jnp.float32)
    return p


def codiff_forward(c_t, visual_embedding, params):
    """Mirrors CODiff_train.forward -> (output_image, x_denoised)."""
    B, C, H, W = c_t.shape
    h, w = H // DOWN, W // DOWN
    S = visual_embedding.shape[1]

    # Constant 0/1 (and 1/8) pool / upsample operators (trace-time constants).
    row_blk = np.arange(H) // DOWN
    col_blk = np.arange(W) // DOWN
    pool_h = (np.arange(h)[:, None] == row_blk[None, :]).astype(np.float32) / DOWN  # (h, H)
    pool_w = (col_blk[:, None] == np.arange(w)[None, :]).astype(np.float32) / DOWN  # (W, w)
    up_h = (row_blk[:, None] == np.arange(h)[None, :]).astype(np.float32)           # (H, h)
    up_w = (np.arange(w)[:, None] == col_blk[None, :]).astype(np.float32)           # (w, W)

    c1, c2 = _ddpm_step_coeffs()
    kernel = functools.partial(_codiff_kernel, c1=c1, c2=c2)
    smem = pl.BlockSpec(memory_space=pltpu.MemorySpace.SMEM)

    # TODO(synk): for very large images, tile the spatial dims with an extra
    # grid axis (block of 8*th image rows) to cap per-step VMEM on v7x.
    out_img, x_den = pl.pallas_call(
        kernel,
        out_shape=(jax.ShapeDtypeStruct((B, IMG_CH, H, W), jnp.float32),
                   jax.ShapeDtypeStruct((B, LATENT_CH, h, w), jnp.float32)),
        grid=(B,),
        in_specs=[
            pl.BlockSpec((1, S, PROJ_IN), lambda b: (b, 0, 0)),          # visual_embedding
            pl.BlockSpec((PROJ_IN, PROJ_OUT), lambda b: (0, 0)),         # proj_w (resident)
            pl.BlockSpec((1, PROJ_OUT), lambda b: (0, 0)),               # proj_b
            pl.BlockSpec((PROJ_OUT, LATENT_CH), lambda b: (0, 0)),       # cond_w
            pl.BlockSpec((1, LATENT_CH), lambda b: (0, 0)),              # cond_b
            pl.BlockSpec((1, IMG_CH, H, W), lambda b: (b, 0, 0, 0)),     # c_t (NCHW)
            pl.BlockSpec((W, w), lambda b: (0, 0)),                      # pool_w
            pl.BlockSpec((h, H), lambda b: (0, 0)),                      # pool_h
            pl.BlockSpec((H, h), lambda b: (0, 0)),                      # up_h
            pl.BlockSpec((w, W), lambda b: (0, 0)),                      # up_w
            smem,                                                        # enc_w  (3,4)
            smem,                                                        # enc_b  (4,)
            smem,                                                        # unet_w (4,4)
            smem,                                                        # dec_w  (4,3)
            smem,                                                        # dec_b  (3,)
        ],
        out_specs=(
            pl.BlockSpec((1, IMG_CH, H, W), lambda b: (b, 0, 0, 0)),
            pl.BlockSpec((1, LATENT_CH, h, w), lambda b: (b, 0, 0, 0)),
        ),
        compiler_params=pltpu.CompilerParams(
            dimension_semantics=("parallel",)),                          # megacore on v7x
    )(
        visual_embedding.astype(jnp.bfloat16),
        params["proj_w"].astype(jnp.bfloat16),
        params["proj_b"].reshape(1, PROJ_OUT),
        params["cond_w"].astype(jnp.bfloat16),
        params["cond_b"].reshape(1, LATENT_CH),
        c_t,
        jnp.asarray(pool_w), jnp.asarray(pool_h),
        jnp.asarray(up_h), jnp.asarray(up_w),
        params["enc_w"], params["enc_b"],
        params["unet_w"], params["dec_w"], params["dec_b"],
    )
    return out_img, x_den


if __name__ == "__main__":
    key = jax.random.PRNGKey(0)
    k_lq, k_ve, k_p = jax.random.split(key, 3)
    lq = jax.random.normal(k_lq, (2, 3, 32, 32), jnp.float32)      # NCHW image
    visual_embedding = jax.random.normal(k_ve, (2, 8, 512), jnp.float32)
    params = init_params(k_p)

    fwd = jax.jit(codiff_forward)
    out_img, x_den = fwd(lq, visual_embedding, params)
    out_img = jax.block_until_ready(out_img)
    x_den = jax.block_until_ready(x_den)

    assert out_img.shape == (2, 3, 32, 32) and out_img.dtype == jnp.float32
    assert x_den.shape == (2, LATENT_CH, 4, 4)
    assert float(jnp.max(jnp.abs(out_img))) <= 1.0 + 1e-6          # clamp(-1, 1)
    print("KERNEL_OK")
</pallas_src>

<mosaic_0001>
module attributes {stable_mosaic.version = 11 : i64} {
  func.func @_codiff_kernel(%arg0: i32, %arg1: memref<1x8x512xbf16, #tpu.memory_space<vmem>>, %arg2: memref<512x1024xbf16, #tpu.memory_space<vmem>>, %arg3: memref<1x1024xf32, #tpu.memory_space<vmem>>, %arg4: memref<1024x4xbf16, #tpu.memory_space<vmem>>, %arg5: memref<1x4xf32, #tpu.memory_space<vmem>>, %arg6: memref<1x3x32x32xf32, #tpu.memory_space<vmem>>, %arg7: memref<32x4xf32, #tpu.memory_space<vmem>>, %arg8: memref<4x32xf32, #tpu.memory_space<vmem>>, %arg9: memref<32x4xf32, #tpu.memory_space<vmem>>, %arg10: memref<4x32xf32, #tpu.memory_space<vmem>>, %arg11: memref<3x4xf32, #tpu.memory_space<smem>>, %arg12: memref<4xf32, #tpu.memory_space<smem>>, %arg13: memref<4x4xf32, #tpu.memory_space<smem>>, %arg14: memref<4x3xf32, #tpu.memory_space<smem>>, %arg15: memref<3xf32, #tpu.memory_space<smem>>, %arg16: memref<1x3x32x32xf32, #tpu.memory_space<vmem>>, %arg17: memref<1x4x4x4xf32, #tpu.memory_space<vmem>>) attributes {dimension_semantics = [#tpu.dimension_semantics<parallel>], iteration_bounds = array<i64: 2>, scalar_prefetch = 0 : i64, scratch_operands = 0 : i64, tpu.core_type = #tpu.core_type<tc>, window_params = [{transform_indices = @transform_0, window_bounds = array<i64: 1, 8, 512>}, {pipeline_mode = #tpu.pipeline_mode<synchronous>, transform_indices = @transform_1, window_bounds = array<i64: 512, 1024>}, {pipeline_mode = #tpu.pipeline_mode<synchronous>, transform_indices = @transform_2, window_bounds = array<i64: 1, 1024>}, {pipeline_mode = #tpu.pipeline_mode<synchronous>, transform_indices = @transform_3, window_bounds = array<i64: 1024, 4>}, {pipeline_mode = #tpu.pipeline_mode<synchronous>, transform_indices = @transform_4, window_bounds = array<i64: 1, 4>}, {transform_indices = @transform_5, window_bounds = array<i64: 1, 3, 32, 32>}, {pipeline_mode = #tpu.pipeline_mode<synchronous>, transform_indices = @transform_6, window_bounds = array<i64: 32, 4>}, {pipeline_mode = #tpu.pipeline_mode<synchronous>, transform_indices = @transform_7, window_bounds = array<i64: 4, 32>}, {pipeline_mode = #tpu.pipeline_mode<synchronous>, transform_indices = @transform_8, window_bounds = array<i64: 32, 4>}, {pipeline_mode = #tpu.pipeline_mode<synchronous>, transform_indices = @transform_9, window_bounds = array<i64: 4, 32>}, {transform_indices = @transform_10, window_bounds = array<i64: 3, 4>}, {transform_indices = @transform_11, window_bounds = array<i64: 4>}, {transform_indices = @transform_12, window_bounds = array<i64: 4, 4>}, {transform_indices = @transform_13, window_bounds = array<i64: 4, 3>}, {transform_indices = @transform_14, window_bounds = array<i64: 3>}, {transform_indices = @transform_15, window_bounds = array<i64: 1, 3, 32, 32>}, {transform_indices = @transform_16, window_bounds = array<i64: 1, 4, 4, 4>}]} {
    %c0 = arith.constant 0 : index
    %c0_0 = arith.constant 0 : index
    %c0_1 = arith.constant 0 : index
    %0 = vector.load %arg1[%c0, %c0_0, %c0_1] : memref<1x8x512xbf16, #tpu.memory_space<vmem>>, vector<1x8x512xbf16>
    %1 = vector.shape_cast %0 : vector<1x8x512xbf16> to vector<8x512xbf16>
    %c0_2 = arith.constant 0 : index
    %c0_3 = arith.constant 0 : index
    %2 = vector.load %arg2[%c0_2, %c0_3] : memref<512x1024xbf16, #tpu.memory_space<vmem>>, vector<512x1024xbf16>
    %cst = arith.constant dense<0.000000e+00> : vector<8x1024xf32>
    %3 = tpu.matmul %1, %2, %cst {dimension_numbers = #tpu.dot_dimension_numbers<[1], [0], [0], [1], [0, 0, 1, 1], [], []>} : vector<8x512xbf16>, vector<512x1024xbf16>, vector<8x1024xf32> -> vector<8x1024xf32>
    %c0_4 = arith.constant 0 : index
    %c0_5 = arith.constant 0 : index
    %4 = vector.load %arg3[%c0_4, %c0_5] : memref<1x1024xf32, #tpu.memory_space<vmem>>, vector<1x1024xf32>
    %5 = vector.broadcast %4 : vector<1x1024xf32> to vector<8x1024xf32>
    %6 = arith.addf %3, %5 : vector<8x1024xf32>
    %cst_6 = arith.constant dense<0.000000e+00> : vector<1024xf32>
    %7 = vector.multi_reduction <add>, %6, %cst_6 [0] : vector<8x1024xf32> to vector<1024xf32>
    %8 = vector.shape_cast %7 : vector<1024xf32> to vector<1x1024xf32>
    %cst_7 = arith.constant 8.000000e+00 : f32
    %9 = vector.broadcast %cst_7 : f32 to vector<1x1024xf32>
    %10 = arith.divf %8, %9 : vector<1x1024xf32>
    %11 = arith.truncf %10 : vector<1x1024xf32> to vector<1x1024xbf16>
    %c0_8 = arith.constant 0 : index
    %c0_9 = arith.constant 0 : index
    %12 = vector.load %arg4[%c0_8, %c0_9] : memref<1024x4xbf16, #tpu.memory_space<vmem>>, vector<1024x4xbf16>
    %cst_10 = arith.constant dense<0.000000e+00> : vector<1x4xf32>
    %13 = tpu.matmul %11, %12, %cst_10 {dimension_numbers = #tpu.dot_dimension_numbers<[1], [0], [0], [1], [0, 0, 1, 1], [], []>} : vector<1x1024xbf16>, vector<1024x4xbf16>, vector<1x4xf32> -> vector<1x4xf32>
    %c0_11 = arith.constant 0 : index
    %c0_12 = arith.constant 0 : index
    %14 = vector.load %arg5[%c0_11, %c0_12] : memref<1x4xf32, #tpu.memory_space<vmem>>, vector<1x4xf32>
    %15 = arith.addf %13, %14 : vector<1x4xf32>
    %c0_13 = arith.constant 0 : index
    %c0_14 = arith.constant 0 : index
    %16 = vector.load %arg7[%c0_13, %c0_14] : memref<32x4xf32, #tpu.memory_space<vmem>>, vector<32x4xf32>
    %c0_15 = arith.constant 0 : index
    %c0_16 = arith.constant 0 : index
    %17 = vector.load %arg8[%c0_15, %c0_16] : memref<4x32xf32, #tpu.memory_space<vmem>>, vector<4x32xf32>
    %c0_17 = arith.constant 0 : index
    %c0_18 = arith.constant 0 : index
    %c0_19 = arith.constant 0 : index
    %c0_20 = arith.constant 0 : index
    %18 = vector.load %arg6[%c0_17, %c0_18, %c0_19, %c0_20] : memref<1x3x32x32xf32, #tpu.memory_space<vmem>>, vector<1x1x32x32xf32>
    %19 = vector.shape_cast %18 : vector<1x1x32x32xf32> to vector<32x32xf32>
    %cst_21 = arith.constant dense<0.000000e+00> : vector<32x4xf32>
    %20 = tpu.matmul %19, %16, %cst_21 {dimension_numbers = #tpu.dot_dimension_numbers<[1], [0], [0], [1], [0, 0, 1, 1], [], []>} : vector<32x32xf32>, vector<32x4xf32>, vector<32x4xf32> -> vector<32x4xf32>
    %cst_22 = arith.constant dense<0.000000e+00> : vector<4x4xf32>
    %21 = tpu.matmul %17, %20, %cst_22 {dimension_numbers = #tpu.dot_dimension_numbers<[1], [0], [0], [1], [0, 0, 1, 1], [], []>} : vector<4x32xf32>, vector<32x4xf32>, vector<4x4xf32> -> vector<4x4xf32>
    %c0_23 = arith.constant 0 : index
    %c1 = arith.constant 1 : index
    %c0_24 = arith.constant 0 : index
    %c0_25 = arith.constant 0 : index
    %22 = vector.load %arg6[%c0_23, %c1, %c0_24, %c0_25] : memref<1x3x32x32xf32, #tpu.memory_space<vmem>>, vector<1x1x32x32xf32>
    %23 = vector.shape_cast %22 : vector<1x1x32x32xf32> to vector<32x32xf32>
    %cst_26 = arith.constant dense<0.000000e+00> : vector<32x4xf32>
    %24 = tpu.matmul %23, %16, %cst_26 {dimension_numbers = #tpu.dot_dimension_numbers<[1], [0], [0], [1], [0, 0, 1, 1], [], []>} : vector<32x32xf32>, vector<32x4xf32>, vector<32x4xf32> -> vector<32x4xf32>
    %cst_27 = arith.constant dense<0.000000e+00> : vector<4x4xf32>
    %25 = tpu.matmul %17, %24, %cst_27 {dimension_numbers = #tpu.dot_dimension_numbers<[1], [0], [0], [1], [0, 0, 1, 1], [], []>} : vector<4x32xf32>, vector<32x4xf32>, vector<4x4xf32> -> vector<4x4xf32>
    %c0_28 = arith.constant 0 : index
    %c2 = arith.constant 2 : index
    %c0_29 = arith.constant 0 : index
    %c0_30 = arith.constant 0 : index
    %26 = vector.load %arg6[%c0_28, %c2, %c0_29, %c0_30] : memref<1x3x32x32xf32, #tpu.memory_space<vmem>>, vector<1x1x32x32xf32>
    %27 = vector.shape_cast %26 : vector<1x1x32x32xf32> to vector<32x32xf32>
    %cst_31 = arith.constant dense<0.000000e+00> : vector<32x4xf32>
    %28 = tpu.matmul %27, %16, %cst_31 {dimension_numbers = #tpu.dot_dimension_numbers<[1], [0], [0], [1], [0, 0, 1, 1], [], []>} : vector<32x32xf32>, vector<32x4xf32>, vector<32x4xf32> -> vector<32x4xf32>
    %cst_32 = arith.constant dense<0.000000e+00> : vector<4x4xf32>
    %29 = tpu.matmul %17, %28, %cst_32 {dimension_numbers = #tpu.dot_dimension_numbers<[1], [0], [0], [1], [0, 0, 1, 1], [], []>} : vector<4x32xf32>, vector<32x4xf32>, vector<4x4xf32> -> vector<4x4xf32>
    %c0_33 = arith.constant 0 : index
    %c0_34 = arith.constant 0 : index
    %30 = memref.load %arg11[%c0_33, %c0_34] : memref<3x4xf32, #tpu.memory_space<smem>>
    %31 = vector.broadcast %30 : f32 to vector<4x4xf32>
    %32 = arith.mulf %21, %31 : vector<4x4xf32>
    %c1_35 = arith.constant 1 : index
    %c0_36 = arith.constant 0 : index
    %33 = memref.load %arg11[%c1_35, %c0_36] : memref<3x4xf32, #tpu.memory_space<smem>>
    %34 = vector.broadcast %33 : f32 to vector<4x4xf32>
    %35 = arith.mulf %25, %34 : vector<4x4xf32>
    %36 = arith.addf %32, %35 : vector<4x4xf32>
    %c2_37 = arith.constant 2 : index
    %c0_38 = arith.constant 0 : index
    %37 = memref.load %arg11[%c2_37, %c0_38] : memref<3x4xf32, #tpu.memory_space<smem>>
    %38 = vector.broadcast %37 : f32 to vector<4x4xf32>
    %39 = arith.mulf %29, %38 : vector<4x4xf32>
    %40 = arith.addf %36, %39 : vector<4x4xf32>
    %c0_39 = arith.constant 0 : index
    %41 = memref.load %arg12[%c0_39] : memref<4xf32, #tpu.memory_space<smem>>
    %42 = vector.broadcast %41 : f32 to vector<4x4xf32>
    %43 = arith.addf %40, %42 : vector<4x4xf32>
    %cst_40 = arith.constant 1.821500e-01 : f32
    %44 = vector.broadcast %cst_40 : f32 to vector<4x4xf32>
    %45 = arith.mulf %43, %44 : vector<4x4xf32>
    %c0_41 = arith.constant 0 : index
    %c1_42 = arith.constant 1 : index
    %46 = memref.load %arg11[%c0_41, %c1_42] : memref<3x4xf32, #tpu.memory_space<smem>>
    %47 = vector.broadcast %46 : f32 to vector<4x4xf32>
    %48 = arith.mulf %21, %47 : vector<4x4xf32>
    %c1_43 = arith.constant 1 : index
    %c1_44 = arith.constant 1 : index
    %49 = memref.load %arg11[%c1_43, %c1_44] : memref<3x4xf32, #tpu.memory_space<smem>>
    %50 = vector.broadcast %49 : f32 to vector<4x4xf32>
    %51 = arith.mulf %25, %50 : vector<4x4xf32>
    %52 = arith.addf %48, %51 : vector<4x4xf32>
    %c2_45 = arith.constant 2 : index
    %c1_46 = arith.constant 1 : index
    %53 = memref.load %arg11[%c2_45, %c1_46] : memref<3x4xf32, #tpu.memory_space<smem>>
    %54 = vector.broadcast %53 : f32 to vector<4x4xf32>
    %55 = arith.mulf %29, %54 : vector<4x4xf32>
    %56 = arith.addf %52, %55 : vector<4x4xf32>
    %c1_47 = arith.constant 1 : index
    %57 = memref.load %arg12[%c1_47] : memref<4xf32, #tpu.memory_space<smem>>
    %58 = vector.broadcast %57 : f32 to vector<4x4xf32>
    %59 = arith.addf %56, %58 : vector<4x4xf32>
    %cst_48 = arith.constant 1.821500e-01 : f32
    %60 = vector.broadcast %cst_48 : f32 to vector<4x4xf32>
    %61 = arith.mulf %59, %60 : vector<4x4xf32>
    %c0_49 = arith.constant 0 : index
    %c2_50 = arith.constant 2 : index
    %62 = memref.load %arg11[%c0_49, %c2_50] : memref<3x4xf32, #tpu.memory_space<smem>>
    %63 = vector.broadcast %62 : f32 to vector<4x4xf32>
    %64 = arith.mulf %21, %63 : vector<4x4xf32>
    %c1_51 = arith.constant 1 : index
    %c2_52 = arith.constant 2 : index
    %65 = memref.load %arg11[%c1_51, %c2_52] : memref<3x4xf32, #tpu.memory_space<smem>>
    %66 = vector.broadcast %65 : f32 to vector<4x4xf32>
    %67 = arith.mulf %25, %66 : vector<4x4xf32>
    %68 = arith.addf %64, %67 : vector<4x4xf32>
    %c2_53 = arith.constant 2 : index
    %c2_54 = arith.constant 2 : index
    %69 = memref.load %arg11[%c2_53, %c2_54] : memref<3x4xf32, #tpu.memory_space<smem>>
    %70 = vector.broadcast %69 : f32 to vector<4x4xf32>
    %71 = arith.mulf %29, %70 : vector<4x4xf32>
    %72 = arith.addf %68, %71 : vector<4x4xf32>
    %c2_55 = arith.constant 2 : index
    %73 = memref.load %arg12[%c2_55] : memref<4xf32, #tpu.memory_space<smem>>
    %74 = vector.broadcast %73 : f32 to vector<4x4xf32>
    %75 = arith.addf %72, %74 : vector<4x4xf32>
    %cst_56 = arith.constant 1.821500e-01 : f32
    %76 = vector.broadcast %cst_56 : f32 to vector<4x4xf32>
    %77 = arith.mulf %75, %76 : vector<4x4xf32>
    %c0_57 = arith.constant 0 : index
    %c3 = arith.constant 3 : index
    %78 = memref.load %arg11[%c0_57, %c3] : memref<3x4xf32, #tpu.memory_space<smem>>
    %79 = vector.broadcast %78 : f32 to vector<4x4xf32>
    %80 = arith.mulf %21, %79 : vector<4x4xf32>
    %c1_58 = arith.constant 1 : index
    %c3_59 = arith.constant 3 : index
    %81 = memref.load %arg11[%c1_58, %c3_59] : memref<3x4xf32, #tpu.memory_space<smem>>
    %82 = vector.broadcast %81 : f32 to vector<4x4xf32>
    %83 = arith.mulf %25, %82 : vector<4x4xf32>
    %84 = arith.addf %80, %83 : vector<4x4xf32>
    %c2_60 = arith.constant 2 : index
    %c3_61 = arith.constant 3 : index
    %85 = memref.load %arg11[%c2_60, %c3_61] : memref<3x4xf32, #tpu.memory_space<smem>>
    %86 = vector.broadcast %85 : f32 to vector<4x4xf32>
    %87 = arith.mulf %29, %86 : vector<4x4xf32>
    %88 = arith.addf %84, %87 : vector<4x4xf32>
    %c3_62 = arith.constant 3 : index
    %89 = memref.load %arg12[%c3_62] : memref<4xf32, #tpu.memory_space<smem>>
    %90 = vector.broadcast %89 : f32 to vector<4x4xf32>
    %91 = arith.addf %88, %90 : vector<4x4xf32>
    %cst_63 = arith.constant 1.821500e-01 : f32
    %92 = vector.broadcast %cst_63 : f32 to vector<4x4xf32>
    %93 = arith.mulf %91, %92 : vector<4x4xf32>
    %c0_64 = arith.constant 0 : index
    %c0_65 = arith.constant 0 : index
    %94 = memref.load %arg13[%c0_64, %c0_65] : memref<4x4xf32, #tpu.memory_space<smem>>
    %95 = vector.broadcast %94 : f32 to vector<4x4xf32>
    %96 = arith.mulf %45, %95 : vector<4x4xf32>
    %c1_66 = arith.constant 1 : index
    %c0_67 = arith.constant 0 : index
    %97 = memref.load %arg13[%c1_66, %c0_67] : memref<4x4xf32, #tpu.memory_space<smem>>
    %98 = vector.broadcast %97 : f32 to vector<4x4xf32>
    %99 = arith.mulf %61, %98 : vector<4x4xf32>
    %100 = arith.addf %96, %99 : vector<4x4xf32>
    %c2_68 = arith.constant 2 : index
    %c0_69 = arith.constant 0 : index
    %101 = memref.load %arg13[%c2_68, %c0_69] : memref<4x4xf32, #tpu.memory_space<smem>>
    %102 = vector.broadcast %101 : f32 to vector<4x4xf32>
    %103 = arith.mulf %77, %102 : vector<4x4xf32>
    %104 = arith.addf %100, %103 : vector<4x4xf32>
    %c3_70 = arith.constant 3 : index
    %c0_71 = arith.constant 0 : index
    %105 = memref.load %arg13[%c3_70, %c0_71] : memref<4x4xf32, #tpu.memory_space<smem>>
    %106 = vector.broadcast %105 : f32 to vector<4x4xf32>
    %107 = arith.mulf %93, %106 : vector<4x4xf32>
    %108 = arith.addf %104, %107 : vector<4x4xf32>
    %109 = vector.extract_strided_slice %15 {offsets = [0, 0], sizes = [1, 1], strides = [1, 1]} : vector<1x4xf32> to vector<1x1xf32>
    %110 = vector.broadcast %109 : vector<1x1xf32> to vector<4x4xf32>
    %111 = arith.addf %108, %110 : vector<4x4xf32>
    %c0_72 = arith.constant 0 : index
    %c1_73 = arith.constant 1 : index
    %112 = memref.load %arg13[%c0_72, %c1_73] : memref<4x4xf32, #tpu.memory_space<smem>>
    %113 = vector.broadcast %112 : f32 to vector<4x4xf32>
    %114 = arith.mulf %45, %113 : vector<4x4xf32>
    %c1_74 = arith.constant 1 : index
    %c1_75 = arith.constant 1 : index
    %115 = memref.load %arg13[%c1_74, %c1_75] : memref<4x4xf32, #tpu.memory_space<smem>>
    %116 = vector.broadcast %115 : f32 to vector<4x4xf32>
    %117 = arith.mulf %61, %116 : vector<4x4xf32>
    %118 = arith.addf %114, %117 : vector<4x4xf32>
    %c2_76 = arith.constant 2 : index
    %c1_77 = arith.constant 1 : index
    %119 = memref.load %arg13[%c2_76, %c1_77] : memref<4x4xf32, #tpu.memory_space<smem>>
    %120 = vector.broadcast %119 : f32 to vector<4x4xf32>
    %121 = arith.mulf %77, %120 : vector<4x4xf32>
    %122 = arith.addf %118, %121 : vector<4x4xf32>
    %c3_78 = arith.constant 3 : index
    %c1_79 = arith.constant 1 : index
    %123 = memref.load %arg13[%c3_78, %c1_79] : memref<4x4xf32, #tpu.memory_space<smem>>
    %124 = vector.broadcast %123 : f32 to vector<4x4xf32>
    %125 = arith.mulf %93, %124 : vector<4x4xf32>
    %126 = arith.addf %122, %125 : vector<4x4xf32>
    %127 = vector.extract_strided_slice %15 {offsets = [0, 1], sizes = [1, 1], strides = [1, 1]} : vector<1x4xf32> to vector<1x1xf32>
    %128 = vector.broadcast %127 : vector<1x1xf32> to vector<4x4xf32>
    %129 = arith.addf %126, %128 : vector<4x4xf32>
    %c0_80 = arith.constant 0 : index
    %c2_81 = arith.constant 2 : index
    %130 = memref.load %arg13[%c0_80, %c2_81] : memref<4x4xf32, #tpu.memory_space<smem>>
    %131 = vector.broadcast %130 : f32 to vector<4x4xf32>
    %132 = arith.mulf %45, %131 : vector<4x4xf32>
    %c1_82 = arith.constant 1 : index
    %c2_83 = arith.constant 2 : index
    %133 = memref.load %arg13[%c1_82, %c2_83] : memref<4x4xf32, #tpu.memory_space<smem>>
    %134 = vector.broadcast %133 : f32 to vector<4x4xf32>
    %135 = arith.mulf %61, %134 : vector<4x4xf32>
    %136 = arith.addf %132, %135 : vector<4x4xf32>
    %c2_84 = arith.constant 2 : index
    %c2_85 = arith.constant 2 : index
    %137 = memref.load %arg13[%c2_84, %c2_85] : memref<4x4xf32, #tpu.memory_space<smem>>
    %138 = vector.broadcast %137 : f32 to vector<4x4xf32>
    %139 = arith.mulf %77, %138 : vector<4x4xf32>
    %140 = arith.addf %136, %139 : vector<4x4xf32>
    %c3_86 = arith.constant 3 : index
    %c2_87 = arith.constant 2 : index
    %141 = memref.load %arg13[%c3_86, %c2_87] : memref<4x4xf32, #tpu.memory_space<smem>>
    %142 = vector.broadcast %141 : f32 to vector<4x4xf32>
    %143 = arith.mulf %93, %142 : vector<4x4xf32>
    %144 = arith.addf %140, %143 : vector<4x4xf32>
    %145 = vector.extract_strided_slice %15 {offsets = [0, 2], sizes = [1, 1], strides = [1, 1]} : vector<1x4xf32> to vector<1x1xf32>
    %146 = vector.broadcast %145 : vector<1x1xf32> to vector<4x4xf32>
    %147 = arith.addf %144, %146 : vector<4x4xf32>
    %c0_88 = arith.constant 0 : index
    %c3_89 = arith.constant 3 : index
    %148 = memref.load %arg13[%c0_88, %c3_89] : memref<4x4xf32, #tpu.memory_space<smem>>
    %149 = vector.broadcast %148 : f32 to vector<4x4xf32>
    %150 = arith.mulf %45, %149 : vector<4x4xf32>
    %c1_90 = arith.constant 1 : index
    %c3_91 = arith.constant 3 : index
    %151 = memref.load %arg13[%c1_90, %c3_91] : memref<4x4xf32, #tpu.memory_space<smem>>
    %152 = vector.broadcast %151 : f32 to vector<4x4xf32>
    %153 = arith.mulf %61, %152 : vector<4x4xf32>
    %154 = arith.addf %150, %153 : vector<4x4xf32>
    %c2_92 = arith.constant 2 : index
    %c3_93 = arith.constant 3 : index
    %155 = memref.load %arg13[%c2_92, %c3_93] : memref<4x4xf32, #tpu.memory_space<smem>>
    %156 = vector.broadcast %155 : f32 to vector<4x4xf32>
    %157 = arith.mulf %77, %156 : vector<4x4xf32>
    %158 = arith.addf %154, %157 : vector<4x4xf32>
    %c3_94 = arith.constant 3 : index
    %c3_95 = arith.constant 3 : index
    %159 = memref.load %arg13[%c3_94, %c3_95] : memref<4x4xf32, #tpu.memory_space<smem>>
    %160 = vector.broadcast %159 : f32 to vector<4x4xf32>
    %161 = arith.mulf %93, %160 : vector<4x4xf32>
    %162 = arith.addf %158, %161 : vector<4x4xf32>
    %163 = vector.extract_strided_slice %15 {offsets = [0, 3], sizes = [1, 1], strides = [1, 1]} : vector<1x4xf32> to vector<1x1xf32>
    %164 = vector.broadcast %163 : vector<1x1xf32> to vector<4x4xf32>
    %165 = arith.addf %162, %164 : vector<4x4xf32>
    %cst_96 = arith.constant 0.849900186 : f32
    %166 = vector.broadcast %cst_96 : f32 to vector<4x4xf32>
    %167 = arith.mulf %166, %111 : vector<4x4xf32>
    %168 = arith.subf %45, %167 : vector<4x4xf32>
    %cst_97 = arith.constant 1.89773595 : f32
    %169 = vector.broadcast %cst_97 : f32 to vector<4x4xf32>
    %170 = arith.mulf %168, %169 : vector<4x4xf32>
    %c0_98 = arith.constant 0 : index
    %c0_99 = arith.constant 0 : index
    %c0_100 = arith.constant 0 : index
    %c0_101 = arith.constant 0 : index
    %171 = vector.load %arg17[%c0_98, %c0_99, %c0_100, %c0_101] : memref<1x4x4x4xf32, #tpu.memory_space<vmem>>, vector<1x1x4x4xf32>
    %172 = vector.shape_cast %171 : vector<1x1x4x4xf32> to vector<4x4xf32>
    %173 = vector.shape_cast %170 : vector<4x4xf32> to vector<1x1x4x4xf32>
    tpu.vector_store %arg17[%c0_98, %c0_99, %c0_100, %c0_101], %173 {strides = array<i32>} : memref<1x4x4x4xf32, #tpu.memory_space<vmem>>, vector<1x1x4x4xf32>,
    %cst_102 = arith.constant 0.849900186 : f32
    %174 = vector.broadcast %cst_102 : f32 to vector<4x4xf32>
    %175 = arith.mulf %174, %129 : vector<4x4xf32>
    %176 = arith.subf %61, %175 : vector<4x4xf32>
    %cst_103 = arith.constant 1.89773595 : f32
    %177 = vector.broadcast %cst_103 : f32 to vector<4x4xf32>
    %178 = arith.mulf %176, %177 : vector<4x4xf32>
    %c0_104 = arith.constant 0 : index
    %c1_105 = arith.constant 1 : index
    %c0_106 = arith.constant 0 : index
    %c0_107 = arith.constant 0 : index
    %179 = vector.load %arg17[%c0_104, %c1_105, %c0_106, %c0_107] : memref<1x4x4x4xf32, #tpu.memory_space<vmem>>, vector<1x1x4x4xf32>
    %180 = vector.shape_cast %179 : vector<1x1x4x4xf32> to vector<4x4xf32>
    %181 = vector.shape_cast %178 : vector<4x4xf32> to vector<1x1x4x4xf32>
    tpu.vector_store %arg17[%c0_104, %c1_105, %c0_106, %c0_107], %181 {strides = array<i32>} : memref<1x4x4x4xf32, #tpu.memory_space<vmem>>, vector<1x1x4x4xf32>,
    %cst_108 = arith.constant 0.849900186 : f32
    %182 = vector.broadcast %cst_108 : f32 to vector<4x4xf32>
    %183 = arith.mulf %182, %147 : vector<4x4xf32>
    %184 = arith.subf %77, %183 : vector<4x4xf32>
    %cst_109 = arith.constant 1.89773595 : f32
    %185 = vector.broadcast %cst_109 : f32 to vector<4x4xf32>
    %186 = arith.mulf %184, %185 : vector<4x4xf32>
    %c0_110 = arith.constant 0 : index
    %c2_111 = arith.constant 2 : index
    %c0_112 = arith.constant 0 : index
    %c0_113 = arith.constant 0 : index
    %187 = vector.load %arg17[%c0_110, %c2_111, %c0_112, %c0_113] : memref<1x4x4x4xf32, #tpu.memory_space<vmem>>, vector<1x1x4x4xf32>
    %188 = vector.shape_cast %187 : vector<1x1x4x4xf32> to vector<4x4xf32>
    %189 = vector.shape_cast %186 : vector<4x4xf32> to vector<1x1x4x4xf32>
    tpu.vector_store %arg17[%c0_110, %c2_111, %c0_112, %c0_113], %189 {strides = array<i32>} : memref<1x4x4x4xf32, #tpu.memory_space<vmem>>, vector<1x1x4x4xf32>,
    %cst_114 = arith.constant 0.849900186 : f32
    %190 = vector.broadcast %cst_114 : f32 to vector<4x4xf32>
    %191 = arith.mulf %190, %165 : vector<4x4xf32>
    %192 = arith.subf %93, %191 : vector<4x4xf32>
    %cst_115 = arith.constant 1.89773595 : f32
    %193 = vector.broadcast %cst_115 : f32 to vector<4x4xf32>
    %194 = arith.mulf %192, %193 : vector<4x4xf32>
    %c0_116 = arith.constant 0 : index
    %c3_117 = arith.constant 3 : index
    %c0_118 = arith.constant 0 : index
    %c0_119 = arith.constant 0 : index
    %195 = vector.load %arg17[%c0_116, %c3_117, %c0_118, %c0_119] : memref<1x4x4x4xf32, #tpu.memory_space<vmem>>, vector<1x1x4x4xf32>
    %196 = vector.shape_cast %195 : vector<1x1x4x4xf32> to vector<4x4xf32>
    %197 = vector.shape_cast %194 : vector<4x4xf32> to vector<1x1x4x4xf32>
    tpu.vector_store %arg17[%c0_116, %c3_117, %c0_118, %c0_119], %197 {strides = array<i32>} : memref<1x4x4x4xf32, #tpu.memory_space<vmem>>, vector<1x1x4x4xf32>,
    %c0_120 = arith.constant 0 : index
    %c0_121 = arith.constant 0 : index
    %198 = vector.load %arg9[%c0_120, %c0_121] : memref<32x4xf32, #tpu.memory_space<vmem>>, vector<32x4xf32>
    %c0_122 = arith.constant 0 : index
    %c0_123 = arith.constant 0 : index
    %199 = vector.load %arg10[%c0_122, %c0_123] : memref<4x32xf32, #tpu.memory_space<vmem>>, vector<4x32xf32>
    %c0_124 = arith.constant 0 : index
    %c0_125 = arith.constant 0 : index
    %200 = memref.load %arg14[%c0_124, %c0_125] : memref<4x3xf32, #tpu.memory_space<smem>>
    %cst_126 = arith.constant 5.4899807 : f32
    %201 = arith.mulf %200, %cst_126 : f32
    %202 = vector.broadcast %201 : f32 to vector<4x4xf32>
    %203 = arith.mulf %170, %202 : vector<4x4xf32>
    %c1_127 = arith.constant 1 : index
    %c0_128 = arith.constant 0 : index
    %204 = memref.load %arg14[%c1_127, %c0_128] : memref<4x3xf32, #tpu.memory_space<smem>>
    %cst_129 = arith.constant 5.4899807 : f32
    %205 = arith.mulf %204, %cst_129 : f32
    %206 = vector.broadcast %205 : f32 to vector<4x4xf32>
    %207 = arith.mulf %178, %206 : vector<4x4xf32>
    %208 = arith.addf %203, %207 : vector<4x4xf32>
    %c2_130 = arith.constant 2 : index
    %c0_131 = arith.constant 0 : index
    %209 = memref.load %arg14[%c2_130, %c0_131] : memref<4x3xf32, #tpu.memory_space<smem>>
    %cst_132 = arith.constant 5.4899807 : f32
    %210 = arith.mulf %209, %cst_132 : f32
    %211 = vector.broadcast %210 : f32 to vector<4x4xf32>
    %212 = arith.mulf %186, %211 : vector<4x4xf32>
    %213 = arith.addf %208, %212 : vector<4x4xf32>
    %c3_133 = arith.constant 3 : index
    %c0_134 = arith.constant 0 : index
    %214 = memref.load %arg14[%c3_133, %c0_134] : memref<4x3xf32, #tpu.memory_space<smem>>
    %cst_135 = arith.constant 5.4899807 : f32
    %215 = arith.mulf %214, %cst_135 : f32
    %216 = vector.broadcast %215 : f32 to vector<4x4xf32>
    %217 = arith.mulf %194, %216 : vector<4x4xf32>
    %218 = arith.addf %213, %217 : vector<4x4xf32>
    %c0_136 = arith.constant 0 : index
    %219 = memref.load %arg15[%c0_136] : memref<3xf32, #tpu.memory_space<smem>>
    %220 = vector.broadcast %219 : f32 to vector<4x4xf32>
    %221 = arith.addf %218, %220 : vector<4x4xf32>
    %cst_137 = arith.constant -1.000000e+00 : f32
    %cst_138 = arith.constant 1.000000e+00 : f32
    %222 = vector.broadcast %cst_137 : f32 to vector<4x4xf32>
    %223 = arith.maximumf %222, %221 : vector<4x4xf32>
    %224 = vector.broadcast %cst_138 : f32 to vector<4x4xf32>
    %225 = arith.minimumf %224, %223 : vector<4x4xf32>
    %cst_139 = arith.constant dense<0.000000e+00> : vector<32x4xf32>
    %226 = tpu.matmul %198, %225, %cst_139 {dimension_numbers = #tpu.dot_dimension_numbers<[1], [0], [0], [1], [0, 0, 1, 1], [], []>} : vector<32x4xf32>, vector<4x4xf32>, vector<32x4xf32> -> vector<32x4xf32>
    %cst_140 = arith.constant dense<0.000000e+00> : vector<32x32xf32>
    %227 = tpu.matmul %226, %199, %cst_140 {dimension_numbers = #tpu.dot_dimension_numbers<[1], [0], [0], [1], [0, 0, 1, 1], [], []>} : vector<32x4xf32>, vector<4x32xf32>, vector<32x32xf32> -> vector<32x32xf32>
    %c0_141 = arith.constant 0 : index
    %c0_142 = arith.constant 0 : index
    %c0_143 = arith.constant 0 : index
    %c0_144 = arith.constant 0 : index
    %228 = vector.load %arg16[%c0_141, %c0_142, %c0_143, %c0_144] : memref<1x3x32x32xf32, #tpu.memory_space<vmem>>, vector<1x1x32x32xf32>
    %229 = vector.shape_cast %228 : vector<1x1x32x32xf32> to vector<32x32xf32>
    %230 = vector.shape_cast %227 : vector<32x32xf32> to vector<1x1x32x32xf32>
    tpu.vector_store %arg16[%c0_141, %c0_142, %c0_143, %c0_144], %230 {strides = array<i32>} : memref<1x3x32x32xf32, #tpu.memory_space<vmem>>, vector<1x1x32x32xf32>,
    %c0_145 = arith.constant 0 : index
    %c1_146 = arith.constant 1 : index
    %231 = memref.load %arg14[%c0_145, %c1_146] : memref<4x3xf32, #tpu.memory_space<smem>>
    %cst_147 = arith.constant 5.4899807 : f32
    %232 = arith.mulf %231, %cst_147 : f32
    %233 = vector.broadcast %232 : f32 to vector<4x4xf32>
    %234 = arith.mulf %170, %233 : vector<4x4xf32>
    %c1_148 = arith.constant 1 : index
    %c1_149 = arith.constant 1 : index
    %235 = memref.load %arg14[%c1_148, %c1_149] : memref<4x3xf32, #tpu.memory_space<smem>>
    %cst_150 = arith.constant 5.4899807 : f32
    %236 = arith.mulf %235, %cst_150 : f32
    %237 = vector.broadcast %236 : f32 to vector<4x4xf32>
    %238 = arith.mulf %178, %237 : vector<4x4xf32>
    %239 = arith.addf %234, %238 : vector<4x4xf32>
    %c2_151 = arith.constant 2 : index
    %c1_152 = arith.constant 1 : index
    %240 = memref.load %arg14[%c2_151, %c1_152] : memref<4x3xf32, #tpu.memory_space<smem>>
    %cst_153 = arith.constant 5.4899807 : f32
    %241 = arith.mulf %240, %cst_153 : f32
    %242 = vector.broadcast %241 : f32 to vector<4x4xf32>
    %243 = arith.mulf %186, %242 : vector<4x4xf32>
    %244 = arith.addf %239, %243 : vector<4x4xf32>
    %c3_154 = arith.constant 3 : index
    %c1_155 = arith.constant 1 : index
    %245 = memref.load %arg14[%c3_154, %c1_155] : memref<4x3xf32, #tpu.memory_space<smem>>
    %cst_156 = arith.constant 5.4899807 : f32
    %246 = arith.mulf %245, %cst_156 : f32
    %247 = vector.broadcast %246 : f32 to vector<4x4xf32>
    %248 = arith.mulf %194, %247 : vector<4x4xf32>
    %249 = arith.addf %244, %248 : vector<4x4xf32>
    %c1_157 = arith.constant 1 : index
    %250 = memref.load %arg15[%c1_157] : memref<3xf32, #tpu.memory_space<smem>>
    %251 = vector.broadcast %250 : f32 to vector<4x4xf32>
    %252 = arith.addf %249, %251 : vector<4x4xf32>
    %cst_158 = arith.constant -1.000000e+00 : f32
    %cst_159 = arith.constant 1.000000e+00 : f32
    %253 = vector.broadcast %cst_158 : f32 to vector<4x4xf32>
    %254 = arith.maximumf %253, %252 : vector<4x4xf32>
    %255 = vector.broadcast %cst_159 : f32 to vector<4x4xf32>
    %256 = arith.minimumf %255, %254 : vector<4x4xf32>
    %cst_160 = arith.constant dense<0.000000e+00> : vector<32x4xf32>
    %257 = tpu.matmul %198, %256, %cst_160 {dimension_numbers = #tpu.dot_dimension_numbers<[1], [0], [0], [1], [0, 0, 1, 1], [], []>} : vector<32x4xf32>, vector<4x4xf32>, vector<32x4xf32> -> vector<32x4xf32>
    %cst_161 = arith.constant dense<0.000000e+00> : vector<32x32xf32>
    %258 = tpu.matmul %257, %199, %cst_161 {dimension_numbers = #tpu.dot_dimension_numbers<[1], [0], [0], [1], [0, 0, 1, 1], [], []>} : vector<32x4xf32>, vector<4x32xf32>, vector<32x32xf32> -> vector<32x32xf32>
    %c0_162 = arith.constant 0 : index
    %c1_163 = arith.constant 1 : index
    %c0_164 = arith.constant 0 : index
    %c0_165 = arith.constant 0 : index
    %259 = vector.load %arg16[%c0_162, %c1_163, %c0_164, %c0_165] : memref<1x3x32x32xf32, #tpu.memory_space<vmem>>, vector<1x1x32x32xf32>
    %260 = vector.shape_cast %259 : vector<1x1x32x32xf32> to vector<32x32xf32>
    %261 = vector.shape_cast %258 : vector<32x32xf32> to vector<1x1x32x32xf32>
    tpu.vector_store %arg16[%c0_162, %c1_163, %c0_164, %c0_165], %261 {strides = array<i32>} : memref<1x3x32x32xf32, #tpu.memory_space<vmem>>, vector<1x1x32x32xf32>,
    %c0_166 = arith.constant 0 : index
    %c2_167 = arith.constant 2 : index
    %262 = memref.load %arg14[%c0_166, %c2_167] : memref<4x3xf32, #tpu.memory_space<smem>>
    %cst_168 = arith.constant 5.4899807 : f32
    %263 = arith.mulf %262, %cst_168 : f32
    %264 = vector.broadcast %263 : f32 to vector<4x4xf32>
    %265 = arith.mulf %170, %264 : vector<4x4xf32>
    %c1_169 = arith.constant 1 : index
    %c2_170 = arith.constant 2 : index
    %266 = memref.load %arg14[%c1_169, %c2_170] : memref<4x3xf32, #tpu.memory_space<smem>>
    %cst_171 = arith.constant 5.4899807 : f32
    %267 = arith.mulf %266, %cst_171 : f32
    %268 = vector.broadcast %267 : f32 to vector<4x4xf32>
    %269 = arith.mulf %178, %268 : vector<4x4xf32>
    %270 = arith.addf %265, %269 : vector<4x4xf32>
    %c2_172 = arith.constant 2 : index
    %c2_173 = arith.constant 2 : index
    %271 = memref.load %arg14[%c2_172, %c2_173] : memref<4x3xf32, #tpu.memory_space<smem>>
    %cst_174 = arith.constant 5.4899807 : f32
    %272 = arith.mulf %271, %cst_174 : f32
    %273 = vector.broadcast %272 : f32 to vector<4x4xf32>
    %274 = arith.mulf %186, %273 : vector<4x4xf32>
    %275 = arith.addf %270, %274 : vector<4x4xf32>
    %c3_175 = arith.constant 3 : index
    %c2_176 = arith.constant 2 : index
    %276 = memref.load %arg14[%c3_175, %c2_176] : memref<4x3xf32, #tpu.memory_space<smem>>
    %cst_177 = arith.constant 5.4899807 : f32
    %277 = arith.mulf %276, %cst_177 : f32
    %278 = vector.broadcast %277 : f32 to vector<4x4xf32>
    %279 = arith.mulf %194, %278 : vector<4x4xf32>
    %280 = arith.addf %275, %279 : vector<4x4xf32>
    %c2_178 = arith.constant 2 : index
    %281 = memref.load %arg15[%c2_178] : memref<3xf32, #tpu.memory_space<smem>>
    %282 = vector.broadcast %281 : f32 to vector<4x4xf32>
    %283 = arith.addf %280, %282 : vector<4x4xf32>
    %cst_179 = arith.constant -1.000000e+00 : f32
    %cst_180 = arith.constant 1.000000e+00 : f32
    %284 = vector.broadcast %cst_179 : f32 to vector<4x4xf32>
    %285 = arith.maximumf %284, %283 : vector<4x4xf32>
    %286 = vector.broadcast %cst_180 : f32 to vector<4x4xf32>
    %287 = arith.minimumf %286, %285 : vector<4x4xf32>
    %cst_181 = arith.constant dense<0.000000e+00> : vector<32x4xf32>
    %288 = tpu.matmul %198, %287, %cst_181 {dimension_numbers = #tpu.dot_dimension_numbers<[1], [0], [0], [1], [0, 0, 1, 1], [], []>} : vector<32x4xf32>, vector<4x4xf32>, vector<32x4xf32> -> vector<32x4xf32>
    %cst_182 = arith.constant dense<0.000000e+00> : vector<32x32xf32>
    %289 = tpu.matmul %288, %199, %cst_182 {dimension_numbers = #tpu.dot_dimension_numbers<[1], [0], [0], [1], [0, 0, 1, 1], [], []>} : vector<32x4xf32>, vector<4x32xf32>, vector<32x32xf32> -> vector<32x32xf32>
    %c0_183 = arith.constant 0 : index
    %c2_184 = arith.constant 2 : index
    %c0_185 = arith.constant 0 : index
    %c0_186 = arith.constant 0 : index
    %290 = vector.load %arg16[%c0_183, %c2_184, %c0_185, %c0_186] : memref<1x3x32x32xf32, #tpu.memory_space<vmem>>, vector<1x1x32x32xf32>
    %291 = vector.shape_cast %290 : vector<1x1x32x32xf32> to vector<32x32xf32>
    %292 = vector.shape_cast %289 : vector<32x32xf32> to vector<1x1x32x32xf32>
    tpu.vector_store %arg16[%c0_183, %c2_184, %c0_185, %c0_186], %292 {strides = array<i32>} : memref<1x3x32x32xf32, #tpu.memory_space<vmem>>, vector<1x1x32x32xf32>,
    return
  }
  func.func @transform_0(%arg0: i32) -> (i32, i32, i32) {
    %c0_i32 = arith.constant 0 : i32
    %c0_i32_0 = arith.constant 0 : i32
    %c0_i32_1 = arith.constant 0 : i32
    return %arg0, %c0_i32, %c0_i32_0 : i32, i32, i32
  }
  func.func @transform_1(%arg0: i32) -> (i32, i32) {
    %c0_i32 = arith.constant 0 : i32
    %c0_i32_0 = arith.constant 0 : i32
    %c0_i32_1 = arith.constant 0 : i32
    return %c0_i32, %c0_i32_0 : i32, i32
  }
  func.func @transform_2(%arg0: i32) -> (i32, i32) {
    %c0_i32 = arith.constant 0 : i32
    %c0_i32_0 = arith.constant 0 : i32
    %c0_i32_1 = arith.constant 0 : i32
    return %c0_i32, %c0_i32_0 : i32, i32
  }
  func.func @transform_3(%arg0: i32) -> (i32, i32) {
    %c0_i32 = arith.constant 0 : i32
    %c0_i32_0 = arith.constant 0 : i32
    %c0_i32_1 = arith.constant 0 : i32
    return %c0_i32, %c0_i32_0 : i32, i32
  }
  func.func @transform_4(%arg0: i32) -> (i32, i32) {
    %c0_i32 = arith.constant 0 : i32
    %c0_i32_0 = arith.constant 0 : i32
    %c0_i32_1 = arith.constant 0 : i32
    return %c0_i32, %c0_i32_0 : i32, i32
  }
  func.func @transform_5(%arg0: i32) -> (i32, i32, i32, i32) {
    %c0_i32 = arith.constant 0 : i32
    %c0_i32_0 = arith.constant 0 : i32
    %c0_i32_1 = arith.constant 0 : i32
    %c0_i32_2 = arith.constant 0 : i32
    return %arg0, %c0_i32, %c0_i32_0, %c0_i32_1 : i32, i32, i32, i32
  }
  func.func @transform_6(%arg0: i32) -> (i32, i32) {
    %c0_i32 = arith.constant 0 : i32
    %c0_i32_0 = arith.constant 0 : i32
    %c0_i32_1 = arith.constant 0 : i32
    return %c0_i32, %c0_i32_0 : i32, i32
  }
  func.func @transform_7(%arg0: i32) -> (i32, i32) {
    %c0_i32 = arith.constant 0 : i32
    %c0_i32_0 = arith.constant 0 : i32
    %c0_i32_1 = arith.constant 0 : i32
    return %c0_i32, %c0_i32_0 : i32, i32
  }
  func.func @transform_8(%arg0: i32) -> (i32, i32) {
    %c0_i32 = arith.constant 0 : i32
    %c0_i32_0 = arith.constant 0 : i32
    %c0_i32_1 = arith.constant 0 : i32
    return %c0_i32, %c0_i32_0 : i32, i32
  }
  func.func @transform_9(%arg0: i32) -> (i32, i32) {
    %c0_i32 = arith.constant 0 : i32
    %c0_i32_0 = arith.constant 0 : i32
    %c0_i32_1 = arith.constant 0 : i32
    return %c0_i32, %c0_i32_0 : i32, i32
  }
  func.func @transform_10(%arg0: i32) -> (i32, i32) {
    %c0_i32 = arith.constant 0 : i32
    %c0_i32_0 = arith.constant 0 : i32
    %c0_i32_1 = arith.constant 0 : i32
    return %c0_i32, %c0_i32_0 : i32, i32
  }
  func.func @transform_11(%arg0: i32) -> i32 {
    %c0_i32 = arith.constant 0 : i32
    %c0_i32_0 = arith.constant 0 : i32
    return %c0_i32 : i32
  }
  func.func @transform_12(%arg0: i32) -> (i32, i32) {
    %c0_i32 = arith.constant 0 : i32
    %c0_i32_0 = arith.constant 0 : i32
    %c0_i32_1 = arith.constant 0 : i32
    return %c0_i32, %c0_i32_0 : i32, i32
  }
  func.func @transform_13(%arg0: i32) -> (i32, i32) {
    %c0_i32 = arith.constant 0 : i32
    %c0_i32_0 = arith.constant 0 : i32
    %c0_i32_1 = arith.constant 0 : i32
    return %c0_i32, %c0_i32_0 : i32, i32
  }
  func.func @transform_14(%arg0: i32) -> i32 {
    %c0_i32 = arith.constant 0 : i32
    %c0_i32_0 = arith.constant 0 : i32
    return %c0_i32 : i32
  }
  func.func @transform_15(%arg0: i32) -> (i32, i32, i32, i32) {
    %c0_i32 = arith.constant 0 : i32
    %c0_i32_0 = arith.constant 0 : i32
    %c0_i32_1 = arith.constant 0 : i32
    %c0_i32_2 = arith.constant 0 : i32
    return %arg0, %c0_i32, %c0_i32_0, %c0_i32_1 : i32, i32, i32, i32
  }
  func.func @transform_16(%arg0: i32) -> (i32, i32, i32, i32) {
    %c0_i32 = arith.constant 0 : i32
    %c0_i32_0 = arith.constant 0 : i32
    %c0_i32_1 = arith.constant 0 : i32
    %c0_i32_2 = arith.constant 0 : i32
    return %arg0, %c0_i32, %c0_i32_0, %c0_i32_1 : i32, i32, i32, i32
  }
}

</mosaic_0001>

<llo_original>
// kernel: codiff_forward.1
$region0: #{codiff_forward.1}
  #allocation0 [shape = 'u32[]', space=smem, size = 0x4, offset = 0x4, fixed_abs, tag = 'smem constant byte address 0x4 - core index']
  #allocation1 [shape = 'u32[144,128]{1,0:T(1,128)}', space=vmem, size = 0x12000, scoped, tag = 'internal scratch']
  %s0 = inlined_call_operand.vmem [shape: bf16[2,8,512], index: 0, kind: input, shape index: {}]
  %s1 = inlined_call_operand.vmem [shape: bf16[512,1024], index: 1, kind: input, shape index: {}]
  %s2 = inlined_call_operand.vmem [shape: f32[1,1024], index: 2, kind: input, shape index: {}]
  %s3 = inlined_call_operand.vmem [shape: bf16[1024,4], index: 3, kind: input, shape index: {}]
  %s4 = inlined_call_operand.vmem [shape: f32[1,4], index: 4, kind: input, shape index: {}]
  %s5 = inlined_call_operand.vmem [shape: f32[2,3,32,32], index: 5, kind: input, shape index: {}]
  %s6 = inlined_call_operand.vmem [shape: f32[32,4], index: 6, kind: input, shape index: {}]
  %s7 = inlined_call_operand.vmem [shape: f32[4,32], index: 7, kind: input, shape index: {}]
  %s8 = inlined_call_operand.vmem [shape: f32[32,4], index: 8, kind: input, shape index: {}]
  %s9 = inlined_call_operand.vmem [shape: f32[4,32], index: 9, kind: input, shape index: {}]
  %s10 = inlined_call_operand.vmem [shape: f32[3,4], index: 10, kind: input, shape index: {}]
  %s11 = inlined_call_operand.vmem [shape: f32[4], index: 11, kind: input, shape index: {}]
  %s12 = inlined_call_operand.vmem [shape: f32[4,4], index: 12, kind: input, shape index: {}]
  %s13 = inlined_call_operand.vmem [shape: f32[4,3], index: 13, kind: input, shape index: {}]
  %s14 = inlined_call_operand.vmem [shape: f32[3], index: 14, kind: input, shape index: {}]
  %s15 = inlined_call_operand.hbm [shape: f32[2,3,32,32], index: 15, kind: output, shape index: {0}]
  %s16 = inlined_call_operand.hbm [shape: f32[2,4,4,4], index: 16, kind: output, shape index: {1}]
  %17 = xla_tuple %s15, %s16
  %s18 = sld [smem:[#allocation0]]
  $region121: #{codiff_forward.1} parent=0
    _
  %s20 = ssub.s32 1, %s18
  %s21 = scalar_select 0, %s20, %s18
  $region1: #{codiff_forward.1} parent=0
    #allocation2 [shape = 'u8[2048]{0}', space=smem, size = 0x800, scoped, tag = 'input window, operand 10, single buffered']
    #allocation3 [shape = 's32[2]{0}', space=sflag, size = 0x8, scoped, tag = 'scoped memory for codiff_forward.1']
    #allocation4 [shape = 's32[2]{0}', space=sflag, size = 0x8, scoped, tag = 'scoped memory for codiff_forward.1']
    #allocation5 [shape = 'u8[512]{0}', space=smem, size = 0x200, scoped, tag = 'input window, operand 11, single buffered']
    #allocation6 [shape = 's32[1]{0}', space=sflag, size = 0x4, scoped, tag = 'scoped memory for codiff_forward.1']
    #allocation7 [shape = 'u8[2048]{0}', space=smem, size = 0x800, scoped, tag = 'input window, operand 12, single buffered']
    #allocation8 [shape = 'u8[2048]{0}', space=smem, size = 0x800, scoped, tag = 'input window, operand 13, single buffered']
    #allocation9 [shape = 's32[1]{0}', space=sflag, size = 0x4, scoped, tag = 'scoped memory for codiff_forward.1']
    #allocation10 [shape = 'u8[512]{0}', space=smem, size = 0x200, scoped, tag = 'input window, operand 14, single buffered']
    #allocation11 [shape = 'u8[98304]{0}', space=vmem, size = 0x18000, scoped, tag = 'output window, operand 0']
    #allocation12 [shape = 'u8[16384]{0}', space=vmem, size = 0x4000, scoped, tag = 'output window, operand 1']
    #allocation13 [shape = 's32[2]{0}', space=sflag, size = 0x8, scoped, tag = 'scoped memory for codiff_forward.1']
    %22 = vsyncpa [#allocation4], 0
    %23 = vsyncpa [#allocation6], 0
    %24 = vsyncpa [#allocation9], 0
    %25 = vsyncpa [#allocation3], 0
    %s26 = scalar_lea.sflag [#allocation3], 1
    %27 = vsyncpa %s26, 0
    %28 = vsyncpa [#allocation13], 0
    %s29 = scalar_lea.sflag [#allocation13], 1
    %30 = vsyncpa %s29, 0
    loop: start=0, step=1, limit=4
    $region2: #{codiff_forward.1} parent=1 // loop_pre_header
      _
    $region3: #{codiff_forward.1} parent=1 // loop_header
      %s32 = sphi 0, %s36
      %p33 = scmp.ge.s32.totalorder %s32, 4
      %s42 = sphi 0, %s44
      %s45 = sphi 0, %s42
      %s46 = sphi 0, %s45
      %s62 = sphi 0, %s46
      %s66 = sphi 0, %s66
      %s68 = sphi 0, %s66
      %s69 = sphi 0, %s68
      %s83 = sphi 0, %s69
      %s87 = sphi 0, %s87
      %s89 = sphi 0, %s87
      %s90 = sphi 0, %s89
      %s104 = sphi 0, %s90
      %s108 = sphi 0, %s108
      %s110 = sphi 0, %s108
      %s111 = sphi 0, %s110
      %s125 = sphi 0, %s111
      %s129 = sphi 0, %s129
      %s131 = sphi 0, %s129
      %s132 = sphi 0, %s131
      %s146 = sphi 0, %s132
      %s152 = sphi 0, %s154
      %s155 = sphi 0, %s152
      %s156 = sphi 0, %s155
      %s172 = sphi 0, %s156
      %s176 = sphi 0, %s176
      %s178 = sphi 0, %s176
      %s179 = sphi 0, %s178
      %s193 = sphi 0, %s179
      %s197 = sphi 0, %s197
      %s199 = sphi 0, %s197
      %s200 = sphi 0, %s199
      %s214 = sphi 0, %s200
      %s218 = sphi 0, %s218
      %s220 = sphi 0, %s218
      %s221 = sphi 0, %s220
      %s235 = sphi 0, %s221
      %s239 = sphi 0, %s239
      %s241 = sphi 0, %s239
      %s242 = sphi 0, %s241
      %s256 = sphi 0, %s242
      %s260 = sphi 0, %s260
      %s262 = sphi 0, %s260
      %s263 = sphi 0, %s262
      %s277 = sphi 0, %s263
      %s281 = sphi 0, %s281
      %s283 = sphi 0, %s281
      %s284 = sphi 0, %s283
      %s298 = sphi 0, %s284
      %s302 = sphi 0, %s302
      %s304 = sphi 0, %s302
      %s305 = sphi 0, %s304
      %s319 = sphi 0, %s305
      %s323 = sphi 0, %s323
      %s325 = sphi 0, %s323
      %s326 = sphi 0, %s325
      %s340 = sphi 0, %s326
      %s344 = sphi 0, %s344
      %s346 = sphi 0, %s344
      %s347 = sphi 0, %s346
      %s361 = sphi 0, %s347
      %s367 = sphi 0, %s369
      %s370 = sphi 0, %s367
      %s371 = sphi 0, %s370
      %s387 = sphi 0, %s371
      %s393 = sphi 0, %s395
      %s396 = sphi 0, %s393
      %s397 = sphi 0, %s396
      %s413 = sphi 0, %s397
    $region4: #{codiff_forward.1} parent=1 // loop_header_branch
      %35 = sbr.rel (%p33) target = $region8
    $region5: #{codiff_forward.1} parent=1 // loop_body
      %s37 = ssub.s32 %s32, 1
      %s38 = ssub.s32 %s32, 2
      %s39 = sadd.s32 %s32, 1
      %s40 = ssub.s32 %s32, %s39
      %p41 = scmp.eq.s32.totalorder %s40, 0
      %s43 = sadd.s32 %s42, 1
      %s44 = scalar_select %p41, %s42, %s43
      %p47 = pneg %p41
      %p48 = scmp.eq.s32.totalorder %s32, 1
      %p49 = por %p47, %p48
      %p50 = scmp.ne.s32.totalorder %s42, %s45
      %p51 = scmp.eq.s32.totalorder %s32, 0
      %p52 = por %p50, %p51
      %p53 = scmp.ne.s32.totalorder %s42, %s45
      %p54 = scmp.eq.s32.totalorder %s37, 1
      %p55 = por %p53, %p54
      %p56 = scmp.ne.s32.totalorder %s45, %s46
      %p57 = scmp.eq.s32.totalorder %s37, 0
      %p58 = por %p56, %p57
      %p59 = scmp.ne.s32.totalorder %s45, %s46
      %p60 = scmp.eq.s32.totalorder %s38, 1
      %p61 = por %p59, %p60
      %p63 = scmp.ne.s32.totalorder %s46, %s62
      %p64 = scmp.eq.s32.totalorder %s38, 0
      %p65 = por %p63, %p64
      %s67 = sadd.s32 %s66, 1
      %p70 = scmp.eq.s32.totalorder %s32, 1
      %p71 = scmp.ne.s32.totalorder %s66, %s68
      %p72 = scmp.eq.s32.totalorder %s32, 0
      %p73 = por %p71, %p72
      %p74 = scmp.ne.s32.totalorder %s66, %s68
      %p75 = scmp.eq.s32.totalorder %s37, 1
      %p76 = por %p74, %p75
      %p77 = scmp.ne.s32.totalorder %s68, %s69
      %p78 = scmp.eq.s32.totalorder %s37, 0
      %p79 = por %p77, %p78
      %p80 = scmp.ne.s32.totalorder %s68, %s69
      %p81 = scmp.eq.s32.totalorder %s38, 1
      %p82 = por %p80, %p81
      %p84 = scmp.ne.s32.totalorder %s69, %s83
      %p85 = scmp.eq.s32.totalorder %s38, 0
      %p86 = por %p84, %p85
      %s88 = sadd.s32 %s87, 1
      %p91 = scmp.eq.s32.totalorder %s32, 1
      %p92 = scmp.ne.s32.totalorder %s87, %s89
      %p93 = scmp.eq.s32.totalorder %s32, 0
      %p94 = por %p92, %p93
      %p95 = scmp.ne.s32.totalorder %s87, %s89
      %p96 = scmp.eq.s32.totalorder %s37, 1
      %p97 = por %p95, %p96
      %p98 = scmp.ne.s32.totalorder %s89, %s90
      %p99 = scmp.eq.s32.totalorder %s37, 0
      %p100 = por %p98, %p99
      %p101 = scmp.ne.s32.totalorder %s89, %s90
      %p102 = scmp.eq.s32.totalorder %s38, 1
      %p103 = por %p101, %p102
      %p105 = scmp.ne.s32.totalorder %s90, %s104
      %p106 = scmp.eq.s32.totalorder %s38, 0
      %p107 = por %p105, %p106
      %s109 = sadd.s32 %s108, 1
      %p112 = scmp.eq.s32.totalorder %s32, 1
      %p113 = scmp.ne.s32.totalorder %s108, %s110
      %p114 = scmp.eq.s32.totalorder %s32, 0
      %p115 = por %p113, %p114
      %p116 = scmp.ne.s32.totalorder %s108, %s110
      %p117 = scmp.eq.s32.totalorder %s37, 1
      %p118 = por %p116, %p117
      %p119 = scmp.ne.s32.totalorder %s110, %s111
      %p120 = scmp.eq.s32.totalorder %s37, 0
      %p121 = por %p119, %p120
      %p122 = scmp.ne.s32.totalorder %s110, %s111
      %p123 = scmp.eq.s32.totalorder %s38, 1
      %p124 = por %p122, %p123
      %p126 = scmp.ne.s32.totalorder %s111, %s125
      %p127 = scmp.eq.s32.totalorder %s38, 0
      %p128 = por %p126, %p127
      %s130 = sadd.s32 %s129, 1
      %p133 = scmp.eq.s32.totalorder %s32, 1
      %p134 = scmp.ne.s32.totalorder %s129, %s131
      %p135 = scmp.eq.s32.totalorder %s32, 0
      %p136 = por %p134, %p135
      %p137 = scmp.ne.s32.totalorder %s129, %s131
      %p138 = scmp.eq.s32.totalorder %s37, 1
      %p139 = por %p137, %p138
      %p140 = scmp.ne.s32.totalorder %s131, %s132
      %p141 = scmp.eq.s32.totalorder %s37, 0
      %p142 = por %p140, %p141
      %p143 = scmp.ne.s32.totalorder %s131, %s132
      %p144 = scmp.eq.s32.totalorder %s38, 1
      %p145 = por %p143, %p144
      %p147 = scmp.ne.s32.totalorder %s132, %s146
      %p148 = scmp.eq.s32.totalorder %s38, 0
      %p149 = por %p147, %p148
      %s150 = ssub.s32 %s32, %s39
      %p151 = scmp.eq.s32.totalorder %s150, 0
      %s153 = sadd.s32 %s152, 1
      %s154 = scalar_select %p151, %s152, %s153
      %p157 = pneg %p151
      %p158 = scmp.eq.s32.totalorder %s32, 1
      %p159 = por %p157, %p158
      %p160 = scmp.ne.s32.totalorder %s152, %s155
      %p161 = scmp.eq.s32.totalorder %s32, 0
      %p162 = por %p160, %p161
      %p163 = scmp.ne.s32.totalorder %s152, %s155
      %p164 = scmp.eq.s32.totalorder %s37, 1
      %p165 = por %p163, %p164
      %p166 = scmp.ne.s32.totalorder %s155, %s156
      %p167 = scmp.eq.s32.totalorder %s37, 0
      %p168 = por %p166, %p167
      %p169 = scmp.ne.s32.totalorder %s155, %s156
      %p170 = scmp.eq.s32.totalorder %s38, 1
      %p171 = por %p169, %p170
      %p173 = scmp.ne.s32.totalorder %s156, %s172
      %p174 = scmp.eq.s32.totalorder %s38, 0
      %p175 = por %p173, %p174
      %s177 = sadd.s32 %s176, 1
      %p180 = scmp.eq.s32.totalorder %s32, 1
      %p181 = scmp.ne.s32.totalorder %s176, %s178
      %p182 = scmp.eq.s32.totalorder %s32, 0
      %p183 = por %p181, %p182
      %p184 = scmp.ne.s32.totalorder %s176, %s178
      %p185 = scmp.eq.s32.totalorder %s37, 1
      %p186 = por %p184, %p185
      %p187 = scmp.ne.s32.totalorder %s178, %s179
      %p188 = scmp.eq.s32.totalorder %s37, 0
      %p189 = por %p187, %p188
      %p190 = scmp.ne.s32.totalorder %s178, %s179
      %p191 = scmp.eq.s32.totalorder %s38, 1
      %p192 = por %p190, %p191
      %p194 = scmp.ne.s32.totalorder %s179, %s193
      %p195 = scmp.eq.s32.totalorder %s38, 0
      %p196 = por %p194, %p195
      %s198 = sadd.s32 %s197, 1
      %p201 = scmp.eq.s32.totalorder %s32, 1
      %p202 = scmp.ne.s32.totalorder %s197, %s199
      %p203 = scmp.eq.s32.totalorder %s32, 0
      %p204 = por %p202, %p203
      %p205 = scmp.ne.s32.totalorder %s197, %s199
      %p206 = scmp.eq.s32.totalorder %s37, 1
      %p207 = por %p205, %p206
      %p208 = scmp.ne.s32.totalorder %s199, %s200
      %p209 = scmp.eq.s32.totalorder %s37, 0
      %p210 = por %p208, %p209
      %p211 = scmp.ne.s32.totalorder %s199, %s200
      %p212 = scmp.eq.s32.totalorder %s38, 1
      %p213 = por %p211, %p212
      %p215 = scmp.ne.s32.totalorder %s200, %s214
      %p216 = scmp.eq.s32.totalorder %s38, 0
      %p217 = por %p215, %p216
      %s219 = sadd.s32 %s218, 1
      %p222 = scmp.eq.s32.totalorder %s32, 1
      %p223 = scmp.ne.s32.totalorder %s218, %s220
      %p224 = scmp.eq.s32.totalorder %s32, 0
      %p225 = por %p223, %p224
      %p226 = scmp.ne.s32.totalorder %s218, %s220
      %p227 = scmp.eq.s32.totalorder %s37, 1
      %p228 = por %p226, %p227
      %p229 = scmp.ne.s32.totalorder %s220, %s221
      %p230 = scmp.eq.s32.totalorder %s37, 0
      %p231 = por %p229, %p230
      %p232 = scmp.ne.s32.totalorder %s220, %s221
      %p233 = scmp.eq.s32.totalorder %s38, 1
      %p234 = por %p232, %p233
      %p236 = scmp.ne.s32.totalorder %s221, %s235
      %p237 = scmp.eq.s32.totalorder %s38, 0
      %p238 = por %p236, %p237
      %s240 = sadd.s32 %s239, 1
      %p243 = scmp.eq.s32.totalorder %s32, 1
      %p244 = scmp.ne.s32.totalorder %s239, %s241
      %p245 = scmp.eq.s32.totalorder %s32, 0
      %p246 = por %p244, %p245
      %p247 = scmp.ne.s32.totalorder %s239, %s241
      %p248 = scmp.eq.s32.totalorder %s37, 1
      %p249 = por %p247, %p248
      %p250 = scmp.ne.s32.totalorder %s241, %s242
      %p251 = scmp.eq.s32.totalorder %s37, 0
      %p252 = por %p250, %p251
      %p253 = scmp.ne.s32.totalorder %s241, %s242
      %p254 = scmp.eq.s32.totalorder %s38, 1
      %p255 = por %p253, %p254
      %p257 = scmp.ne.s32.totalorder %s242, %s256
      %p258 = scmp.eq.s32.totalorder %s38, 0
      %p259 = por %p257, %p258
      %s261 = sadd.s32 %s260, 1
      %p264 = scmp.eq.s32.totalorder %s32, 1
      %p265 = scmp.ne.s32.totalorder %s260, %s262
      %p266 = scmp.eq.s32.totalorder %s32, 0
      %p267 = por %p265, %p266
      %p268 = scmp.ne.s32.totalorder %s260, %s262
      %p269 = scmp.eq.s32.totalorder %s37, 1
      %p270 = por %p268, %p269
      %p271 = scmp.ne.s32.totalorder %s262, %s263
      %p272 = scmp.eq.s32.totalorder %s37, 0
      %p273 = por %p271, %p272
      %p274 = scmp.ne.s32.totalorder %s262, %s263
      %p275 = scmp.eq.s32.totalorder %s38, 1
      %p276 = por %p274, %p275
      %p278 = scmp.ne.s32.totalorder %s263, %s277
      %p279 = scmp.eq.s32.totalorder %s38, 0
      %p280 = por %p278, %p279
      %s282 = sadd.s32 %s281, 1
      %p285 = scmp.eq.s32.totalorder %s32, 1
      %p286 = scmp.ne.s32.totalorder %s281, %s283
      %p287 = scmp.eq.s32.totalorder %s32, 0
      %p288 = por %p286, %p287
      %p289 = scmp.ne.s32.totalorder %s281, %s283
      %p290 = scmp.eq.s32.totalorder %s37, 1
      %p291 = por %p289, %p290
      %p292 = scmp.ne.s32.totalorder %s283, %s284
      %p293 = scmp.eq.s32.totalorder %s37, 0
      %p294 = por %p292, %p293
      %p295 = scmp.ne.s32.totalorder %s283, %s284
      %p296 = scmp.eq.s32.totalorder %s38, 1
      %p297 = por %p295, %p296
      %p299 = scmp.ne.s32.totalorder %s284, %s298
      %p300 = scmp.eq.s32.totalorder %s38, 0
      %p301 = por %p299, %p300
      %s303 = sadd.s32 %s302, 1
      %p306 = scmp.eq.s32.totalorder %s32, 1
      %p307 = scmp.ne.s32.totalorder %s302, %s304
      %p308 = scmp.eq.s32.totalorder %s32, 0
      %p309 = por %p307, %p308
      %p310 = scmp.ne.s32.totalorder %s302, %s304
      %p311 = scmp.eq.s32.totalorder %s37, 1
      %p312 = por %p310, %p311
      %p313 = scmp.ne.s32.totalorder %s304, %s305
      %p314 = scmp.eq.s32.totalorder %s37, 0
      %p315 = por %p313, %p314
      %p316 = scmp.ne.s32.totalorder %s304, %s305
      %p317 = scmp.eq.s32.totalorder %s38, 1
      %p318 = por %p316, %p317
      %p320 = scmp.ne.s32.totalorder %s305, %s319
      %p321 = scmp.eq.s32.totalorder %s38, 0
      %p322 = por %p320, %p321
      %s324 = sadd.s32 %s323, 1
      %p327 = scmp.eq.s32.totalorder %s32, 1
      %p328 = scmp.ne.s32.totalorder %s323, %s325
      %p329 = scmp.eq.s32.totalorder %s32, 0
      %p330 = por %p328, %p329
      %p331 = scmp.ne.s32.totalorder %s323, %s325
      %p332 = scmp.eq.s32.totalorder %s37, 1
      %p333 = por %p331, %p332
      %p334 = scmp.ne.s32.totalorder %s325, %s326
      %p335 = scmp.eq.s32.totalorder %s37, 0
      %p336 = por %p334, %p335
      %p337 = scmp.ne.s32.totalorder %s325, %s326
      %p338 = scmp.eq.s32.totalorder %s38, 1
      %p339 = por %p337, %p338
      %p341 = scmp.ne.s32.totalorder %s326, %s340
      %p342 = scmp.eq.s32.totalorder %s38, 0
      %p343 = por %p341, %p342
      %s345 = sadd.s32 %s344, 1
      %p348 = scmp.eq.s32.totalorder %s32, 1
      %p349 = scmp.ne.s32.totalorder %s344, %s346
      %p350 = scmp.eq.s32.totalorder %s32, 0
      %p351 = por %p349, %p350
      %p352 = scmp.ne.s32.totalorder %s344, %s346
      %p353 = scmp.eq.s32.totalorder %s37, 1
      %p354 = por %p352, %p353
      %p355 = scmp.ne.s32.totalorder %s346, %s347
      %p356 = scmp.eq.s32.totalorder %s37, 0
      %p357 = por %p355, %p356
      %p358 = scmp.ne.s32.totalorder %s346, %s347
      %p359 = scmp.eq.s32.totalorder %s38, 1
      %p360 = por %p358, %p359
      %p362 = scmp.ne.s32.totalorder %s347, %s361
      %p363 = scmp.eq.s32.totalorder %s38, 0
      %p364 = por %p362, %p363
      %s365 = ssub.s32 %s32, %s39
      %p366 = scmp.eq.s32.totalorder %s365, 0
      %s368 = sadd.s32 %s367, 1
      %s369 = scalar_select %p366, %s367, %s368
      %p372 = pneg %p366
      %p373 = scmp.eq.s32.totalorder %s32, 1
      %p374 = por %p372, %p373
      %p375 = scmp.ne.s32.totalorder %s367, %s370
      %p376 = scmp.eq.s32.totalorder %s32, 0
      %p377 = por %p375, %p376
      %p378 = scmp.ne.s32.totalorder %s367, %s370
      %p379 = scmp.eq.s32.totalorder %s37, 1
      %p380 = por %p378, %p379
      %p381 = scmp.ne.s32.totalorder %s370, %s371
      %p382 = scmp.eq.s32.totalorder %s37, 0
      %p383 = por %p381, %p382
      %p384 = scmp.ne.s32.totalorder %s370, %s371
      %p385 = scmp.eq.s32.totalorder %s38, 1
      %p386 = por %p384, %p385
      %p388 = scmp.ne.s32.totalorder %s371, %s387
      %p389 = scmp.eq.s32.totalorder %s38, 0
      %p390 = por %p388, %p389
      %s391 = ssub.s32 %s32, %s39
      %p392 = scmp.eq.s32.totalorder %s391, 0
      %s394 = sadd.s32 %s393, 1
      %s395 = scalar_select %p392, %s393, %s394
      %p398 = pneg %p392
      %p399 = scmp.eq.s32.totalorder %s32, 1
      %p400 = por %p398, %p399
      %p401 = scmp.ne.s32.totalorder %s393, %s396
      %p402 = scmp.eq.s32.totalorder %s32, 0
      %p403 = por %p401, %p402
      %p404 = scmp.ne.s32.totalorder %s393, %s396
      %p405 = scmp.eq.s32.totalorder %s37, 1
      %p406 = por %p404, %p405
      %p407 = scmp.ne.s32.totalorder %s396, %s397
      %p408 = scmp.eq.s32.totalorder %s37, 0
      %p409 = por %p407, %p408
      %p410 = scmp.ne.s32.totalorder %s396, %s397
      %p411 = scmp.eq.s32.totalorder %s38, 1
      %p412 = por %p410, %p411
      %p414 = scmp.ne.s32.totalorder %s397, %s413
      %p415 = scmp.eq.s32.totalorder %s38, 0
      %p416 = por %p414, %p415
      %p417 = scmp.le.s32.totalorder 1, %s32
      %p418 = scmp.lt.s32.totalorder %s32, 3
      %p419 = pnand %p417, %p418
      %p420 = pneg %p419
      // Predicated region
      $region9: #{codiff_forward.1} parent=5 // pred_check
        _
      $region10: #{codiff_forward.1} parent=5 // pred_check_branch
        %422 = sbr.rel (%p419) target = $region12
      $region11: #{codiff_forward.1} parent=5 // pred_region
        %s423 = ssub.s32 %s32, 1
        // Predicated region
        $region13: #{codiff_forward.1} parent=11 // pred_check
          %p424 = pneg %p79
        $region14: #{codiff_forward.1} parent=11 // pred_check_branch
          %426 = sbr.rel (%p424) target = $region16
        $region15: #{codiff_forward.1} parent=11 // pred_region
          _
        $region16: #{codiff_forward.1} parent=11 // pred_fallthru
          _
        // Predicated region
        $region17: #{codiff_forward.1} parent=11 // pred_check
          %p427 = pneg %p100
        $region18: #{codiff_forward.1} parent=11 // pred_check_branch
          %429 = sbr.rel (%p427) target = $region20
        $region19: #{codiff_forward.1} parent=11 // pred_region
          _
        $region20: #{codiff_forward.1} parent=11 // pred_fallthru
          _
        // Predicated region
        $region21: #{codiff_forward.1} parent=11 // pred_check
          %p430 = pneg %p121
        $region22: #{codiff_forward.1} parent=11 // pred_check_branch
          %432 = sbr.rel (%p430) target = $region24
        $region23: #{codiff_forward.1} parent=11 // pred_region
          _
        $region24: #{codiff_forward.1} parent=11 // pred_fallthru
          _
        // Predicated region
        $region25: #{codiff_forward.1} parent=11 // pred_check
          %p433 = pneg %p142
        $region26: #{codiff_forward.1} parent=11 // pred_check_branch
          %435 = sbr.rel (%p433) target = $region28
        $region27: #{codiff_forward.1} parent=11 // pred_region
          _
        $region28: #{codiff_forward.1} parent=11 // pred_fallthru
          _
        // Predicated region
        $region29: #{codiff_forward.1} parent=11 // pred_check
          %p436 = pneg %p189
        $region30: #{codiff_forward.1} parent=11 // pred_check_branch
          %438 = sbr.rel (%p436) target = $region32
        $region31: #{codiff_forward.1} parent=11 // pred_region
          _
        $region32: #{codiff_forward.1} parent=11 // pred_fallthru
          _
        // Predicated region
        $region33: #{codiff_forward.1} parent=11 // pred_check
          %p439 = pneg %p210
        $region34: #{codiff_forward.1} parent=11 // pred_check_branch
          %441 = sbr.rel (%p439) target = $region36
        $region35: #{codiff_forward.1} parent=11 // pred_region
          _
        $region36: #{codiff_forward.1} parent=11 // pred_fallthru
          _
        // Predicated region
        $region37: #{codiff_forward.1} parent=11 // pred_check
          %p442 = pneg %p231
        $region38: #{codiff_forward.1} parent=11 // pred_check_branch
          %444 = sbr.rel (%p442) target = $region40
        $region39: #{codiff_forward.1} parent=11 // pred_region
          _
        $region40: #{codiff_forward.1} parent=11 // pred_fallthru
          _
        // Predicated region
        $region41: #{codiff_forward.1} parent=11 // pred_check
          %p445 = pneg %p252
        $region42: #{codiff_forward.1} parent=11 // pred_check_branch
          %447 = sbr.rel (%p445) target = $region44
        $region43: #{codiff_forward.1} parent=11 // pred_region
          _
        $region44: #{codiff_forward.1} parent=11 // pred_fallthru
          _
        // Predicated region
        $region45: #{codiff_forward.1} parent=11 // pred_check
          %p448 = pneg %p273
        $region46: #{codiff_forward.1} parent=11 // pred_check_branch
          %450 = sbr.rel (%p448) target = $region48
        $region47: #{codiff_forward.1} parent=11 // pred_region
          %s452 = ssub.s32 64, 64
          %453 = vsyncadd [#allocation4], %s452
          %s455 = sshll.u32 %s10, 4
          %s456 = int_to_ptr.vmem [resolvable:$true] %s455
          %458 = dma.vmem_to_smem %s456, 64, [#allocation2], [#allocation4]
        $region48: #{codiff_forward.1} parent=11 // pred_fallthru
          _
        // Predicated region
        $region49: #{codiff_forward.1} parent=11 // pred_check
          %p459 = pneg %p294
        $region50: #{codiff_forward.1} parent=11 // pred_check_branch
          %461 = sbr.rel (%p459) target = $region52
        $region51: #{codiff_forward.1} parent=11 // pred_region
          %s463 = ssub.s32 16, 16
          %464 = vsyncadd [#allocation6], %s463
          %s466 = sshll.u32 %s11, 4
          %s467 = int_to_ptr.vmem [resolvable:$true] %s466
          %469 = dma.vmem_to_smem %s467, 16, [#allocation5], [#allocation6]
        $region52: #{codiff_forward.1} parent=11 // pred_fallthru
          _
        // Predicated region
        $region53: #{codiff_forward.1} parent=11 // pred_check
          %p470 = pneg %p315
        $region54: #{codiff_forward.1} parent=11 // pred_check_branch
          %472 = sbr.rel (%p470) target = $region56
        $region55: #{codiff_forward.1} parent=11 // pred_region
          %s474 = ssub.s32 64, 64
          %475 = vsyncadd [#allocation6], %s474
          %s477 = sshll.u32 %s12, 4
          %s478 = int_to_ptr.vmem [resolvable:$true] %s477
          %480 = dma.vmem_to_smem %s478, 64, [#allocation7], [#allocation6]
        $region56: #{codiff_forward.1} parent=11 // pred_fallthru
          _
        // Predicated region
        $region57: #{codiff_forward.1} parent=11 // pred_check
          %p481 = pneg %p336
        $region58: #{codiff_forward.1} parent=11 // pred_check_branch
          %483 = sbr.rel (%p481) target = $region60
        $region59: #{codiff_forward.1} parent=11 // pred_region
          %s485 = ssub.s32 64, 64
          %486 = vsyncadd [#allocation9], %s485
          %s488 = sshll.u32 %s13, 4
          %s489 = int_to_ptr.vmem [resolvable:$true] %s488
          %491 = dma.vmem_to_smem %s489, 64, [#allocation8], [#allocation9]
        $region60: #{codiff_forward.1} parent=11 // pred_fallthru
          _
        // Predicated region
        $region61: #{codiff_forward.1} parent=11 // pred_check
          %p492 = pneg %p357
        $region62: #{codiff_forward.1} parent=11 // pred_check_branch
          %494 = sbr.rel (%p492) target = $region64
        $region63: #{codiff_forward.1} parent=11 // pred_region
          %s496 = ssub.s32 16, 16
          %497 = vsyncadd [#allocation9], %s496
          %s499 = sshll.u32 %s14, 4
          %s500 = int_to_ptr.vmem [resolvable:$true] %s499
          %502 = dma.vmem_to_smem %s500, 16, [#allocation10], [#allocation9]
        $region64: #{codiff_forward.1} parent=11 // pred_fallthru
          _
      $region12: #{codiff_forward.1} parent=5 // pred_fallthru
        _
      %p503 = scmp.lt.s32.totalorder %s32, 2
      // Predicated region
      $region65: #{codiff_forward.1} parent=5 // pred_check
        %p504 = pneg %p503
      $region66: #{codiff_forward.1} parent=5 // pred_check_branch
        %506 = sbr.rel (%p504) target = $region68
      $region67: #{codiff_forward.1} parent=5 // pred_region
        // Predicated region
        $region69: #{codiff_forward.1} parent=67 // pred_check
          %p507 = pneg %p52
        $region70: #{codiff_forward.1} parent=67 // pred_check_branch
          %509 = sbr.rel (%p507) target = $region72
        $region71: #{codiff_forward.1} parent=67 // pred_region
          %p510 = scmp.lt.s32.totalorder %s32, 1
          %s511 = scalar_select %p510, %s32, 1
          %s512 = smul.addr %s511, 4
          %s513 = smul.addr %s512, 4
          %s514 = scalar_lea.vmem %s0, %s513
        $region72: #{codiff_forward.1} parent=67 // pred_fallthru
          _
        // Predicated region
        $region73: #{codiff_forward.1} parent=67 // pred_check
          %p515 = pneg %p162
        $region74: #{codiff_forward.1} parent=67 // pred_check_branch
          %517 = sbr.rel (%p515) target = $region76
        $region75: #{codiff_forward.1} parent=67 // pred_region
          %p518 = scmp.lt.s32.totalorder %s32, 1
          %s519 = scalar_select %p518, %s32, 1
          %s520 = smul.addr %s519, 12
          %s521 = smul.addr %s520, 8
          %s522 = scalar_lea.vmem %s5, %s521
        $region76: #{codiff_forward.1} parent=67 // pred_fallthru
          _
      $region68: #{codiff_forward.1} parent=5 // pred_fallthru
        _
      %p523 = scmp.le.s32.totalorder 1, %s32
      %p524 = scmp.lt.s32.totalorder %s32, 3
      %p525 = pnand %p523, %p524
      %p526 = pneg %p525
      // Predicated region
      $region77: #{codiff_forward.1} parent=5 // pred_check
        _
      $region78: #{codiff_forward.1} parent=5 // pred_check_branch
        %528 = sbr.rel (%p525) target = $region80
      $region79: #{codiff_forward.1} parent=5 // pred_region
        %s529 = ssub.s32 %s32, 1
        // Predicated region
        $region81: #{codiff_forward.1} parent=79 // pred_check
          %p530 = pneg %p273
        $region82: #{codiff_forward.1} parent=79 // pred_check_branch
          %532 = sbr.rel (%p530) target = $region84
        $region83: #{codiff_forward.1} parent=79 // pred_region
          %533 = dma.done [#allocation4], 64
        $region84: #{codiff_forward.1} parent=79 // pred_fallthru
          _
        // Predicated region
        $region85: #{codiff_forward.1} parent=79 // pred_check
          %p534 = pneg %p294
        $region86: #{codiff_forward.1} parent=79 // pred_check_branch
          %536 = sbr.rel (%p534) target = $region88
        $region87: #{codiff_forward.1} parent=79 // pred_region
          %537 = dma.done [#allocation6], 16
        $region88: #{codiff_forward.1} parent=79 // pred_fallthru
          _
        // Predicated region
        $region89: #{codiff_forward.1} parent=79 // pred_check
          %p538 = pneg %p315
        $region90: #{codiff_forward.1} parent=79 // pred_check_branch
          %540 = sbr.rel (%p538) target = $region92
        $region91: #{codiff_forward.1} parent=79 // pred_region
          %541 = dma.done [#allocation6], 64
        $region92: #{codiff_forward.1} parent=79 // pred_fallthru
          _
        // Predicated region
        $region93: #{codiff_forward.1} parent=79 // pred_check
          %p542 = pneg %p336
        $region94: #{codiff_forward.1} parent=79 // pred_check_branch
          %544 = sbr.rel (%p542) target = $region96
        $region95: #{codiff_forward.1} parent=79 // pred_region
          %545 = dma.done [#allocation9], 64
        $region96: #{codiff_forward.1} parent=79 // pred_fallthru
          _
        // Predicated region
        $region97: #{codiff_forward.1} parent=79 // pred_check
          %p546 = pneg %p357
        $region98: #{codiff_forward.1} parent=79 // pred_check_branch
          %548 = sbr.rel (%p546) target = $region100
        $region99: #{codiff_forward.1} parent=79 // pred_region
          %549 = dma.done [#allocation9], 16
        $region100: #{codiff_forward.1} parent=79 // pred_fallthru
          _
        %550 = sfence
        %p551 = scmp.lt.s32.totalorder %s37, 1
        %s552 = scalar_select %p551, %s37, 1
        %s553 = smul.addr %s552, 4
        %s554 = smul.addr %s553, 4
        %s555 = scalar_lea.vmem %s0, %s554
        %p556 = pneg %p58
        %p557 = pneg %p55
        %p558 = pneg %p79
        %p559 = pneg %p76
        %p560 = pneg %p100
        %p561 = pneg %p97
        %p562 = pneg %p121
        %p563 = pneg %p118
        %p564 = pneg %p142
        %p565 = pneg %p139
        %p566 = scmp.lt.s32.totalorder %s37, 1
        %s567 = scalar_select %p566, %s37, 1
        %s568 = smul.addr %s567, 12
        %s569 = smul.addr %s568, 8
        %s570 = scalar_lea.vmem %s5, %s569
        %p571 = pneg %p168
        %p572 = pneg %p165
        %p573 = pneg %p189
        %p574 = pneg %p186
        %p575 = pneg %p210
        %p576 = pneg %p207
        %p577 = pneg %p231
        %p578 = pneg %p228
        %p579 = pneg %p252
        %p580 = pneg %p249
        %p581 = pneg %p273
        %p582 = pneg %p270
        %p583 = pneg %p294
        %p584 = pneg %p291
        %p585 = pneg %p315
        %p586 = pneg %p312
        %p587 = pneg %p336
        %p588 = pneg %p333
        %p589 = pneg %p357
        %p590 = pneg %p354
        %p591 = pneg %p383
        %p592 = pneg %p380
        %s593 = sand.u32 %s370, 1
        %s594 = scalar_lea.sflag [#allocation3], %s593
        %s595 = sand.u32 %s370, 1
        %s596 = smul.addr %s595, 96
        %s597 = scalar_lea.vmem [#allocation11], %s596
        %p598 = pneg %p409
        %p599 = pneg %p406
        %s600 = sand.u32 %s396, 1
        %s601 = scalar_lea.sflag [#allocation13], %s600
        %s602 = sand.u32 %s396, 1
        %s603 = smul.addr %s602, 16
        %s604 = scalar_lea.vmem [#allocation12], %s603
        %p605 = scmp.lt.s32.totalorder %s37, 1
        %s606 = scalar_select %p605, %s37, 1
        %s607 = smul.addr %s606, 4
        %s608 = smul.addr %s607, 4
        %s609 = scalar_lea.vmem %s0, %s608
        %p610 = scmp.lt.s32.totalorder %s37, 1
        %s611 = scalar_select %p610, %s37, 1
        %s612 = smul.addr %s611, 12
        %s613 = smul.addr %s612, 8
        %s614 = scalar_lea.vmem %s5, %s613
        %v616 = vld [vmem:[%s609] sm:$0xff]
        %v617 = vld [vmem:[%s609 + $0x8] sm:$0xff]
        %v618 = vld [vmem:[%s1] sm:$0xff]
        %v619 = vld [vmem:[%s1 + $0x8] sm:$0xff]
        %v620 = vld [vmem:[%s1 + $0x10] sm:$0xff]
        %v621 = vld [vmem:[%s1 + $0x18] sm:$0xff]
        %v622 = vld [vmem:[%s1 + $0x20] sm:$0xff]
        %v623 = vld [vmem:[%s1 + $0x28] sm:$0xff]
        %v624 = vld [vmem:[%s1 + $0x30] sm:$0xff]
        %v625 = vld [vmem:[%s1 + $0x38] sm:$0xff]
        %v626 = vld [vmem:[%s1 + $0x40] sm:$0xff]
        %v627 = vld [vmem:[%s1 + $0x48] sm:$0xff]
        %v628 = vld [vmem:[%s1 + $0x50] sm:$0xff]
        %v629 = vld [vmem:[%s1 + $0x58] sm:$0xff]
        %v630 = vld [vmem:[%s1 + $0x60] sm:$0xff]
        %v631 = vld [vmem:[%s1 + $0x68] sm:$0xff]
        %v632 = vld [vmem:[%s1 + $0x70] sm:$0xff]
        %v633 = vld [vmem:[%s1 + $0x78] sm:$0xff]
        %v634 = vld [vmem:[%s1 + $0x80] sm:$0xff]
        %v635 = vld [vmem:[%s1 + $0x88] sm:$0xff]
        %v636 = vld [vmem:[%s1 + $0x90] sm:$0xff]
        %v637 = vld [vmem:[%s1 + $0x98] sm:$0xff]
        %v638 = vld [vmem:[%s1 + $0xa0] sm:$0xff]
        %v639 = vld [vmem:[%s1 + $0xa8] sm:$0xff]
        %v640 = vld [vmem:[%s1 + $0xb0] sm:$0xff]
        %v641 = vld [vmem:[%s1 + $0xb8] sm:$0xff]
        %v642 = vld [vmem:[%s1 + $0xc0] sm:$0xff]
        %v643 = vld [vmem:[%s1 + $0xc8] sm:$0xff]
        %v644 = vld [vmem:[%s1 + $0xd0] sm:$0xff]
        %v645 = vld [vmem:[%s1 + $0xd8] sm:$0xff]
        %v646 = vld [vmem:[%s1 + $0xe0] sm:$0xff]
        %v647 = vld [vmem:[%s1 + $0xe8] sm:$0xff]
        %v648 = vld [vmem:[%s1 + $0xf0] sm:$0xff]
        %v649 = vld [vmem:[%s1 + $0xf8] sm:$0xff]
        %v650 = vld [vmem:[%s1 + $0x100] sm:$0xff]
        %v651 = vld [vmem:[%s1 + $0x108] sm:$0xff]
        %v652 = vld [vmem:[%s1 + $0x110] sm:$0xff]
        %v653 = vld [vmem:[%s1 + $0x118] sm:$0xff]
        %v654 = vld [vmem:[%s1 + $0x120] sm:$0xff]
        %v655 = vld [vmem:[%s1 + $0x128] sm:$0xff]
        %v656 = vld [vmem:[%s1 + $0x130] sm:$0xff]
        %v657 = vld [vmem:[%s1 + $0x138] sm:$0xff]
        %v658 = vld [vmem:[%s1 + $0x140] sm:$0xff]
        %v659 = vld [vmem:[%s1 + $0x148] sm:$0xff]
        %v660 = vld [vmem:[%s1 + $0x150] sm:$0xff]
        %v661 = vld [vmem:[%s1 + $0x158] sm:$0xff]
        %v662 = vld [vmem:[%s1 + $0x160] sm:$0xff]
        %v663 = vld [vmem:[%s1 + $0x168] sm:$0xff]
        %v664 = vld [vmem:[%s1 + $0x170] sm:$0xff]
        %v665 = vld [vmem:[%s1 + $0x178] sm:$0xff]
        %v666 = vld [vmem:[%s1 + $0x180] sm:$0xff]
        %v667 = vld [vmem:[%s1 + $0x188] sm:$0xff]
        %v668 = vld [vmem:[%s1 + $0x190] sm:$0xff]
        %v669 = vld [vmem:[%s1 + $0x198] sm:$0xff]
        %v670 = vld [vmem:[%s1 + $0x1a0] sm:$0xff]
        %v671 = vld [vmem:[%s1 + $0x1a8] sm:$0xff]
        %v672 = vld [vmem:[%s1 + $0x1b0] sm:$0xff]
        %v673 = vld [vmem:[%s1 + $0x1b8] sm:$0xff]
        %v674 = vld [vmem:[%s1 + $0x1c0] sm:$0xff]
        %v675 = vld [vmem:[%s1 + $0x1c8] sm:$0xff]
        %v676 = vld [vmem:[%s1 + $0x1d0] sm:$0xff]
        %v677 = vld [vmem:[%s1 + $0x1d8] sm:$0xff]
        %v678 = vld [vmem:[%s1 + $0x1e0] sm:$0xff]
        %v679 = vld [vmem:[%s1 + $0x1e8] sm:$0xff]
        %v680 = vld [vmem:[%s1 + $0x1f0] sm:$0xff]
        %v681 = vld [vmem:[%s1 + $0x1f8] sm:$0xff]
        %v682 = vld [vmem:[%s1 + $0x200] sm:$0xff]
        %v683 = vld [vmem:[%s1 + $0x208] sm:$0xff]
        %v684 = vld [vmem:[%s1 + $0x210] sm:$0xff]
        %v685 = vld [vmem:[%s1 + $0x218] sm:$0xff]
        %v686 = vld [vmem:[%s1 + $0x220] sm:$0xff]
        %v687 = vld [vmem:[%s1 + $0x228] sm:$0xff]
        %v688 = vld [vmem:[%s1 + $0x230] sm:$0xff]
        %v689 = vld [vmem:[%s1 + $0x238] sm:$0xff]
        %v690 = vld [vmem:[%s1 + $0x240] sm:$0xff]
        %v691 = vld [vmem:[%s1 + $0x248] sm:$0xff]
        %v692 = vld [vmem:[%s1 + $0x250] sm:$0xff]
        %v693 = vld [vmem:[%s1 + $0x258] sm:$0xff]
        %v694 = vld [vmem:[%s1 + $0x260] sm:$0xff]
        %v695 = vld [vmem:[%s1 + $0x268] sm:$0xff]
        %v696 = vld [vmem:[%s1 + $0x270] sm:$0xff]
        %v697 = vld [vmem:[%s1 + $0x278] sm:$0xff]
        %v698 = vld [vmem:[%s1 + $0x280] sm:$0xff]
        %v699 = vld [vmem:[%s1 + $0x288] sm:$0xff]
        %v700 = vld [vmem:[%s1 + $0x290] sm:$0xff]
        %v701 = vld [vmem:[%s1 + $0x298] sm:$0xff]
        %v702 = vld [vmem:[%s1 + $0x2a0] sm:$0xff]
        %v703 = vld [vmem:[%s1 + $0x2a8] sm:$0xff]
        %v704 = vld [vmem:[%s1 + $0x2b0] sm:$0xff]
        %v705 = vld [vmem:[%s1 + $0x2b8] sm:$0xff]
        %v706 = vld [vmem:[%s1 + $0x2c0] sm:$0xff]
        %v707 = vld [vmem:[%s1 + $0x2c8] sm:$0xff]
        %v708 = vld [vmem:[%s1 + $0x2d0] sm:$0xff]
        %v709 = vld [vmem:[%s1 + $0x2d8] sm:$0xff]
        %v710 = vld [vmem:[%s1 + $0x2e0] sm:$0xff]
        %v711 = vld [vmem:[%s1 + $0x2e8] sm:$0xff]
        %v712 = vld [vmem:[%s1 + $0x2f0] sm:$0xff]
        %v713 = vld [vmem:[%s1 + $0x2f8] sm:$0xff]
        %v714 = vld [vmem:[%s1 + $0x300] sm:$0xff]
        %v715 = vld [vmem:[%s1 + $0x308] sm:$0xff]
        %v716 = vld [vmem:[%s1 + $0x310] sm:$0xff]
        %v717 = vld [vmem:[%s1 + $0x318] sm:$0xff]
        %v718 = vld [vmem:[%s1 + $0x320] sm:$0xff]
        %v719 = vld [vmem:[%s1 + $0x328] sm:$0xff]
        %v720 = vld [vmem:[%s1 + $0x330] sm:$0xff]
        %v721 = vld [vmem:[%s1 + $0x338] sm:$0xff]
        %v722 = vld [vmem:[%s1 + $0x340] sm:$0xff]
        %v723 = vld [vmem:[%s1 + $0x348] sm:$0xff]
        %v724 = vld [vmem:[%s1 + $0x350] sm:$0xff]
        %v725 = vld [vmem:[%s1 + $0x358] sm:$0xff]
        %v726 = vld [vmem:[%s1 + $0x360] sm:$0xff]
        %v727 = vld [vmem:[%s1 + $0x368] sm:$0xff]
        %v728 = vld [vmem:[%s1 + $0x370] sm:$0xff]
        %v729 = vld [vmem:[%s1 + $0x378] sm:$0xff]
        %v730 = vld [vmem:[%s1 + $0x380] sm:$0xff]
        %v731 = vld [vmem:[%s1 + $0x388] sm:$0xff]
        %v732 = vld [vmem:[%s1 + $0x390] sm:$0xff]
        %v733 = vld [vmem:[%s1 + $0x398] sm:$0xff]
        %v734 = vld [vmem:[%s1 + $0x3a0] sm:$0xff]
        %v735 = vld [vmem:[%s1 + $0x3a8] sm:$0xff]
        %v736 = vld [vmem:[%s1 + $0x3b0] sm:$0xff]
        %v737 = vld [vmem:[%s1 + $0x3b8] sm:$0xff]
        %v738 = vld [vmem:[%s1 + $0x3c0] sm:$0xff]
        %v739 = vld [vmem:[%s1 + $0x3c8] sm:$0xff]
        %v740 = vld [vmem:[%s1 + $0x3d0] sm:$0xff]
        %v741 = vld [vmem:[%s1 + $0x3d8] sm:$0xff]
        %v742 = vld [vmem:[%s1 + $0x3e0] sm:$0xff]
        %v743 = vld [vmem:[%s1 + $0x3e8] sm:$0xff]
        %v744 = vld [vmem:[%s1 + $0x3f0] sm:$0xff]
        %v745 = vld [vmem:[%s1 + $0x3f8] sm:$0xff]
        %v746 = vld [vmem:[%s1 + $0x400] sm:$0xff]
        %v747 = vld [vmem:[%s1 + $0x408] sm:$0xff]
        %v748 = vld [vmem:[%s1 + $0x410] sm:$0xff]
        %v749 = vld [vmem:[%s1 + $0x418] sm:$0xff]
        %v750 = vld [vmem:[%s1 + $0x420] sm:$0xff]
        %v751 = vld [vmem:[%s1 + $0x428] sm:$0xff]
        %v752 = vld [vmem:[%s1 + $0x430] sm:$0xff]
        %v753 = vld [vmem:[%s1 + $0x438] sm:$0xff]
        %v754 = vld [vmem:[%s1 + $0x440] sm:$0xff]
        %v755 = vld [vmem:[%s1 + $0x448] sm:$0xff]
        %v756 = vld [vmem:[%s1 + $0x450] sm:$0xff]
        %v757 = vld [vmem:[%s1 + $0x458] sm:$0xff]
        %v758 = vld [vmem:[%s1 + $0x460] sm:$0xff]
        %v759 = vld [vmem:[%s1 + $0x468] sm:$0xff]
        %v760 = vld [vmem:[%s1 + $0x470] sm:$0xff]
        %v761 = vld [vmem:[%s1 + $0x478] sm:$0xff]
        %v762 = vld [vmem:[%s1 + $0x480] sm:$0xff]
        %v763 = vld [vmem:[%s1 + $0x488] sm:$0xff]
        %v764 = vld [vmem:[%s1 + $0x490] sm:$0xff]
        %v765 = vld [vmem:[%s1 + $0x498] sm:$0xff]
        %v766 = vld [vmem:[%s1 + $0x4a0] sm:$0xff]
        %v767 = vld [vmem:[%s1 + $0x4a8] sm:$0xff]
        %v768 = vld [vmem:[%s1 + $0x4b0] sm:$0xff]
        %v769 = vld [vmem:[%s1 + $0x4b8] sm:$0xff]
        %v770 = vld [vmem:[%s1 + $0x4c0] sm:$0xff]
        %v771 = vld [vmem:[%s1 + $0x4c8] sm:$0xff]
        %v772 = vld [vmem:[%s1 + $0x4d0] sm:$0xff]
        %v773 = vld [vmem:[%s1 + $0x4d8] sm:$0xff]
        %v774 = vld [vmem:[%s1 + $0x4e0] sm:$0xff]
        %v775 = vld [vmem:[%s1 + $0x4e8] sm:$0xff]
        %v776 = vld [vmem:[%s1 + $0x4f0] sm:$0xff]
        %v777 = vld [vmem:[%s1 + $0x4f8] sm:$0xff]
        %v778 = vld [vmem:[%s1 + $0x500] sm:$0xff]
        %v779 = vld [vmem:[%s1 + $0x508] sm:$0xff]
        %v780 = vld [vmem:[%s1 + $0x510] sm:$0xff]
        %v781 = vld [vmem:[%s1 + $0x518] sm:$0xff]
        %v782 = vld [vmem:[%s1 + $0x520] sm:$0xff]
        %v783 = vld [vmem:[%s1 + $0x528] sm:$0xff]
        %v784 = vld [vmem:[%s1 + $0x530] sm:$0xff]
        %v785 = vld [vmem:[%s1 + $0x538] sm:$0xff]
        %v786 = vld [vmem:[%s1 + $0x540] sm:$0xff]
        %v787 = vld [vmem:[%s1 + $0x548] sm:$0xff]
        %v788 = vld [vmem:[%s1 + $0x550] sm:$0xff]
        %v789 = vld [vmem:[%s1 + $0x558] sm:$0xff]
        %v790 = vld [vmem:[%s1 + $0x560] sm:$0xff]
        %v791 = vld [vmem:[%s1 + $0x568] sm:$0xff]
        %v792 = vld [vmem:[%s1 + $0x570] sm:$0xff]
        %v793 = vld [vmem:[%s1 + $0x578] sm:$0xff]
        %v794 = vld [vmem:[%s1 + $0x580] sm:$0xff]
        %v795 = vld [vmem:[%s1 + $0x588] sm:$0xff]
        %v796 = vld [vmem:[%s1 + $0x590] sm:$0xff]
        %v797 = vld [vmem:[%s1 + $0x598] sm:$0xff]
        %v798 = vld [vmem:[%s1 + $0x5a0] sm:$0xff]
        %v799 = vld [vmem:[%s1 + $0x5a8] sm:$0xff]
        %v800 = vld [vmem:[%s1 + $0x5b0] sm:$0xff]
        %v801 = vld [vmem:[%s1 + $0x5b8] sm:$0xff]
        %v802 = vld [vmem:[%s1 + $0x5c0] sm:$0xff]
        %v803 = vld [vmem:[%s1 + $0x5c8] sm:$0xff]
        %v804 = vld [vmem:[%s1 + $0x5d0] sm:$0xff]
        %v805 = vld [vmem:[%s1 + $0x5d8] sm:$0xff]
        %v806 = vld [vmem:[%s1 + $0x5e0] sm:$0xff]
        %v807 = vld [vmem:[%s1 + $0x5e8] sm:$0xff]
        %v808 = vld [vmem:[%s1 + $0x5f0] sm:$0xff]
        %v809 = vld [vmem:[%s1 + $0x5f8] sm:$0xff]
        %v810 = vld [vmem:[%s1 + $0x600] sm:$0xff]
        %v811 = vld [vmem:[%s1 + $0x608] sm:$0xff]
        %v812 = vld [vmem:[%s1 + $0x610] sm:$0xff]
        %v813 = vld [vmem:[%s1 + $0x618] sm:$0xff]
        %v814 = vld [vmem:[%s1 + $0x620] sm:$0xff]
        %v815 = vld [vmem:[%s1 + $0x628] sm:$0xff]
        %v816 = vld [vmem:[%s1 + $0x630] sm:$0xff]
        %v817 = vld [vmem:[%s1 + $0x638] sm:$0xff]
        %v818 = vld [vmem:[%s1 + $0x640] sm:$0xff]
        %v819 = vld [vmem:[%s1 + $0x648] sm:$0xff]
        %v820 = vld [vmem:[%s1 + $0x650] sm:$0xff]
        %v821 = vld [vmem:[%s1 + $0x658] sm:$0xff]
        %v822 = vld [vmem:[%s1 + $0x660] sm:$0xff]
        %v823 = vld [vmem:[%s1 + $0x668] sm:$0xff]
        %v824 = vld [vmem:[%s1 + $0x670] sm:$0xff]
        %v825 = vld [vmem:[%s1 + $0x678] sm:$0xff]
        %v826 = vld [vmem:[%s1 + $0x680] sm:$0xff]
        %v827 = vld [vmem:[%s1 + $0x688] sm:$0xff]
        %v828 = vld [vmem:[%s1 + $0x690] sm:$0xff]
        %v829 = vld [vmem:[%s1 + $0x698] sm:$0xff]
        %v830 = vld [vmem:[%s1 + $0x6a0] sm:$0xff]
        %v831 = vld [vmem:[%s1 + $0x6a8] sm:$0xff]
        %v832 = vld [vmem:[%s1 + $0x6b0] sm:$0xff]
        %v833 = vld [vmem:[%s1 + $0x6b8] sm:$0xff]
        %v834 = vld [vmem:[%s1 + $0x6c0] sm:$0xff]
        %v835 = vld [vmem:[%s1 + $0x6c8] sm:$0xff]
        %v836 = vld [vmem:[%s1 + $0x6d0] sm:$0xff]
        %v837 = vld [vmem:[%s1 + $0x6d8] sm:$0xff]
        %v838 = vld [vmem:[%s1 + $0x6e0] sm:$0xff]
        %v839 = vld [vmem:[%s1 + $0x6e8] sm:$0xff]
        %v840 = vld [vmem:[%s1 + $0x6f0] sm:$0xff]
        %v841 = vld [vmem:[%s1 + $0x6f8] sm:$0xff]
        %v842 = vld [vmem:[%s1 + $0x700] sm:$0xff]
        %v843 = vld [vmem:[%s1 + $0x708] sm:$0xff]
        %v844 = vld [vmem:[%s1 + $0x710] sm:$0xff]
        %v845 = vld [vmem:[%s1 + $0x718] sm:$0xff]
        %v846 = vld [vmem:[%s1 + $0x720] sm:$0xff]
        %v847 = vld [vmem:[%s1 + $0x728] sm:$0xff]
        %v848 = vld [vmem:[%s1 + $0x730] sm:$0xff]
        %v849 = vld [vmem:[%s1 + $0x738] sm:$0xff]
        %v850 = vld [vmem:[%s1 + $0x740] sm:$0xff]
        %v851 = vld [vmem:[%s1 + $0x748] sm:$0xff]
        %v852 = vld [vmem:[%s1 + $0x750] sm:$0xff]
        %v853 = vld [vmem:[%s1 + $0x758] sm:$0xff]
        %v854 = vld [vmem:[%s1 + $0x760] sm:$0xff]
        %v855 = vld [vmem:[%s1 + $0x768] sm:$0xff]
        %v856 = vld [vmem:[%s1 + $0x770] sm:$0xff]
        %v857 = vld [vmem:[%s1 + $0x778] sm:$0xff]
        %v858 = vld [vmem:[%s1 + $0x780] sm:$0xff]
        %v859 = vld [vmem:[%s1 + $0x788] sm:$0xff]
        %v860 = vld [vmem:[%s1 + $0x790] sm:$0xff]
        %v861 = vld [vmem:[%s1 + $0x798] sm:$0xff]
        %v862 = vld [vmem:[%s1 + $0x7a0] sm:$0xff]
        %v863 = vld [vmem:[%s1 + $0x7a8] sm:$0xff]
        %v864 = vld [vmem:[%s1 + $0x7b0] sm:$0xff]
        %v865 = vld [vmem:[%s1 + $0x7b8] sm:$0xff]
        %v866 = vld [vmem:[%s1 + $0x7c0] sm:$0xff]
        %v867 = vld [vmem:[%s1 + $0x7c8] sm:$0xff]
        %v868 = vld [vmem:[%s1 + $0x7d0] sm:$0xff]
        %v869 = vld [vmem:[%s1 + $0x7d8] sm:$0xff]
        %v870 = vld [vmem:[%s1 + $0x7e0] sm:$0xff]
        %v871 = vld [vmem:[%s1 + $0x7e8] sm:$0xff]
        %v872 = vld [vmem:[%s1 + $0x7f0] sm:$0xff]
        %v873 = vld [vmem:[%s1 + $0x7f8] sm:$0xff]
        %v874 = vld [vmem:[%s2] sm:$0xff]
        %v876 = vlaneseq
        %v877 = vshrl.u32 %v876, 7
        %v878 = vsub.s32 0, %v877
        %v879 = vrot.slane %v874, %v878
        %v880 = vlaneseq
        %v881 = vshrl.u32 %v880, 7
        %v882 = vsub.s32 1, %v881
        %v883 = vrot.slane %v874, %v882
        %v884 = vlaneseq
        %v885 = vshrl.u32 %v884, 7
        %v886 = vsub.s32 2, %v885
        %v887 = vrot.slane %v874, %v886
        %v888 = vlaneseq
        %v889 = vshrl.u32 %v888, 7
        %v890 = vsub.s32 3, %v889
        %v891 = vrot.slane %v874, %v890
        %v892 = vlaneseq
        %v893 = vshrl.u32 %v892, 7
        %v894 = vsub.s32 4, %v893
        %v895 = vrot.slane %v874, %v894
        %v896 = vlaneseq
        %v897 = vshrl.u32 %v896, 7
        %v898 = vsub.s32 5, %v897
        %v899 = vrot.slane %v874, %v898
        %v900 = vlaneseq
        %v901 = vshrl.u32 %v900, 7
        %v902 = vsub.s32 6, %v901
        %v903 = vrot.slane %v874, %v902
        %v904 = vlaneseq
        %v905 = vshrl.u32 %v904, 7
        %v906 = vsub.s32 7, %v905
        %v907 = vrot.slane %v874, %v906
        %v918 = vunpack.c.l.b16 %v616
        %v919 = vunpack.c.h.b16 %v616
        %v920 = vunpack.c.l.b16 %v617
        %v921 = vunpack.c.h.b16 %v617
        %v922 = vpack.c.b16 %v918, %v918
        %v923 = vpack.c.b16 %v919, %v919
        %v924 = vpack.c.b16 %v920, %v920
        %v925 = vpack.c.b16 %v921, %v921
        %v1186 = vunpack.c.l.b16 %v618
        %v1187 = vunpack.c.h.b16 %v618
        %v1188 = vunpack.c.l.b16 %v619
        %v1189 = vunpack.c.h.b16 %v619
        %v1190 = vunpack.c.l.b16 %v620
        %v1191 = vunpack.c.h.b16 %v620
        %v1192 = vunpack.c.l.b16 %v621
        %v1193 = vunpack.c.h.b16 %v621
        %v1194 = vunpack.c.l.b16 %v622
        %v1195 = vunpack.c.h.b16 %v622
        %v1196 = vunpack.c.l.b16 %v623
        %v1197 = vunpack.c.h.b16 %v623
        %v1198 = vunpack.c.l.b16 %v624
        %v1199 = vunpack.c.h.b16 %v624
        %v1200 = vunpack.c.l.b16 %v625
        %v1201 = vunpack.c.h.b16 %v625
        %v1202 = vunpack.c.l.b16 %v626
        %v1203 = vunpack.c.h.b16 %v626
        %v1204 = vunpack.c.l.b16 %v627
        %v1205 = vunpack.c.h.b16 %v627
        %v1206 = vunpack.c.l.b16 %v628
        %v1207 = vunpack.c.h.b16 %v628
        %v1208 = vunpack.c.l.b16 %v629
        %v1209 = vunpack.c.h.b16 %v629
        %v1210 = vunpack.c.l.b16 %v630
        %v1211 = vunpack.c.h.b16 %v630
        %v1212 = vunpack.c.l.b16 %v631
        %v1213 = vunpack.c.h.b16 %v631
        %v1214 = vunpack.c.l.b16 %v632
        %v1215 = vunpack.c.h.b16 %v632
        %v1216 = vunpack.c.l.b16 %v633
        %v1217 = vunpack.c.h.b16 %v633
        %v1218 = vunpack.c.l.b16 %v634
        %v1219 = vunpack.c.h.b16 %v634
        %v1220 = vunpack.c.l.b16 %v635
        %v1221 = vunpack.c.h.b16 %v635
        %v1222 = vunpack.c.l.b16 %v636
        %v1223 = vunpack.c.h.b16 %v636
        %v1224 = vunpack.c.l.b16 %v637
        %v1225 = vunpack.c.h.b16 %v637
        %v1226 = vunpack.c.l.b16 %v638
        %v1227 = vunpack.c.h.b16 %v638
        %v1228 = vunpack.c.l.b16 %v639
        %v1229 = vunpack.c.h.b16 %v639
        %v1230 = vunpack.c.l.b16 %v640
        %v1231 = vunpack.c.h.b16 %v640
        %v1232 = vunpack.c.l.b16 %v641
        %v1233 = vunpack.c.h.b16 %v641
        %v1234 = vunpack.c.l.b16 %v642
        %v1235 = vunpack.c.h.b16 %v642
        %v1236 = vunpack.c.l.b16 %v643
        %v1237 = vunpack.c.h.b16 %v643
        %v1238 = vunpack.c.l.b16 %v644
        %v1239 = vunpack.c.h.b16 %v644
        %v1240 = vunpack.c.l.b16 %v645
        %v1241 = vunpack.c.h.b16 %v645
        %v1242 = vunpack.c.l.b16 %v646
        %v1243 = vunpack.c.h.b16 %v646
        %v1244 = vunpack.c.l.b16 %v647
        %v1245 = vunpack.c.h.b16 %v647
        %v1246 = vunpack.c.l.b16 %v648
        %v1247 = vunpack.c.h.b16 %v648
        %v1248 = vunpack.c.l.b16 %v649
        %v1249 = vunpack.c.h.b16 %v649
        %v1250 = vunpack.c.l.b16 %v650
        %v1251 = vunpack.c.h.b16 %v650
        %v1252 = vunpack.c.l.b16 %v651
        %v1253 = vunpack.c.h.b16 %v651
        %v1254 = vunpack.c.l.b16 %v652
        %v1255 = vunpack.c.h.b16 %v652
        %v1256 = vunpack.c.l.b16 %v653
        %v1257 = vunpack.c.h.b16 %v653
        %v1258 = vunpack.c.l.b16 %v654
        %v1259 = vunpack.c.h.b16 %v654
        %v1260 = vunpack.c.l.b16 %v655
        %v1261 = vunpack.c.h.b16 %v655
        %v1262 = vunpack.c.l.b16 %v656
        %v1263 = vunpack.c.h.b16 %v656
        %v1264 = vunpack.c.l.b16 %v657
        %v1265 = vunpack.c.h.b16 %v657
        %v1266 = vunpack.c.l.b16 %v658
        %v1267 = vunpack.c.h.b16 %v658
        %v1268 = vunpack.c.l.b16 %v659
        %v1269 = vunpack.c.h.b16 %v659
        %v1270 = vunpack.c.l.b16 %v660
        %v1271 = vunpack.c.h.b16 %v660
        %v1272 = vunpack.c.l.b16 %v661
        %v1273 = vunpack.c.h.b16 %v661
        %v1274 = vunpack.c.l.b16 %v662
        %v1275 = vunpack.c.h.b16 %v662
        %v1276 = vunpack.c.l.b16 %v663
        %v1277 = vunpack.c.h.b16 %v663
        %v1278 = vunpack.c.l.b16 %v664
        %v1279 = vunpack.c.h.b16 %v664
        %v1280 = vunpack.c.l.b16 %v665
        %v1281 = vunpack.c.h.b16 %v665
        %v1282 = vunpack.c.l.b16 %v666
        %v1283 = vunpack.c.h.b16 %v666
        %v1284 = vunpack.c.l.b16 %v667
        %v1285 = vunpack.c.h.b16 %v667
        %v1286 = vunpack.c.l.b16 %v668
        %v1287 = vunpack.c.h.b16 %v668
        %v1288 = vunpack.c.l.b16 %v669
        %v1289 = vunpack.c.h.b16 %v669
        %v1290 = vunpack.c.l.b16 %v670
        %v1291 = vunpack.c.h.b16 %v670
        %v1292 = vunpack.c.l.b16 %v671
        %v1293 = vunpack.c.h.b16 %v671
        %v1294 = vunpack.c.l.b16 %v672
        %v1295 = vunpack.c.h.b16 %v672
        %v1296 = vunpack.c.l.b16 %v673
        %v1297 = vunpack.c.h.b16 %v673
        %v1298 = vunpack.c.l.b16 %v674
        %v1299 = vunpack.c.h.b16 %v674
        %v1300 = vunpack.c.l.b16 %v675
        %v1301 = vunpack.c.h.b16 %v675
        %v1302 = vunpack.c.l.b16 %v676
        %v1303 = vunpack.c.h.b16 %v676
        %v1304 = vunpack.c.l.b16 %v677
        %v1305 = vunpack.c.h.b16 %v677
        %v1306 = vunpack.c.l.b16 %v678
        %v1307 = vunpack.c.h.b16 %v678
        %v1308 = vunpack.c.l.b16 %v679
        %v1309 = vunpack.c.h.b16 %v679
        %v1310 = vunpack.c.l.b16 %v680
        %v1311 = vunpack.c.h.b16 %v680
        %v1312 = vunpack.c.l.b16 %v681
        %v1313 = vunpack.c.h.b16 %v681
        %v1314 = vunpack.c.l.b16 %v682
        %v1315 = vunpack.c.h.b16 %v682
        %v1316 = vunpack.c.l.b16 %v683
        %v1317 = vunpack.c.h.b16 %v683
        %v1318 = vunpack.c.l.b16 %v684
        %v1319 = vunpack.c.h.b16 %v684
        %v1320 = vunpack.c.l.b16 %v685
        %v1321 = vunpack.c.h.b16 %v685
        %v1322 = vunpack.c.l.b16 %v686
        %v1323 = vunpack.c.h.b16 %v686
        %v1324 = vunpack.c.l.b16 %v687
        %v1325 = vunpack.c.h.b16 %v687
        %v1326 = vunpack.c.l.b16 %v688
        %v1327 = vunpack.c.h.b16 %v688
        %v1328 = vunpack.c.l.b16 %v689
        %v1329 = vunpack.c.h.b16 %v689
        %v1330 = vunpack.c.l.b16 %v690
        %v1331 = vunpack.c.h.b16 %v690
        %v1332 = vunpack.c.l.b16 %v691
        %v1333 = vunpack.c.h.b16 %v691
        %v1334 = vunpack.c.l.b16 %v692
        %v1335 = vunpack.c.h.b16 %v692
        %v1336 = vunpack.c.l.b16 %v693
        %v1337 = vunpack.c.h.b16 %v693
        %v1338 = vunpack.c.l.b16 %v694
        %v1339 = vunpack.c.h.b16 %v694
        %v1340 = vunpack.c.l.b16 %v695
        %v1341 = vunpack.c.h.b16 %v695
        %v1342 = vunpack.c.l.b16 %v696
        %v1343 = vunpack.c.h.b16 %v696
        %v1344 = vunpack.c.l.b16 %v697
        %v1345 = vunpack.c.h.b16 %v697
        %v1346 = vunpack.c.l.b16 %v698
        %v1347 = vunpack.c.h.b16 %v698
        %v1348 = vunpack.c.l.b16 %v699
        %v1349 = vunpack.c.h.b16 %v699
        %v1350 = vunpack.c.l.b16 %v700
        %v1351 = vunpack.c.h.b16 %v700
        %v1352 = vunpack.c.l.b16 %v701
        %v1353 = vunpack.c.h.b16 %v701
        %v1354 = vunpack.c.l.b16 %v702
        %v1355 = vunpack.c.h.b16 %v702
        %v1356 = vunpack.c.l.b16 %v703
        %v1357 = vunpack.c.h.b16 %v703
        %v1358 = vunpack.c.l.b16 %v704
        %v1359 = vunpack.c.h.b16 %v704
        %v1360 = vunpack.c.l.b16 %v705
        %v1361 = vunpack.c.h.b16 %v705
        %v1362 = vunpack.c.l.b16 %v706
        %v1363 = vunpack.c.h.b16 %v706
        %v1364 = vunpack.c.l.b16 %v707
        %v1365 = vunpack.c.h.b16 %v707
        %v1366 = vunpack.c.l.b16 %v708
        %v1367 = vunpack.c.h.b16 %v708
        %v1368 = vunpack.c.l.b16 %v709
        %v1369 = vunpack.c.h.b16 %v709
        %v1370 = vunpack.c.l.b16 %v710
        %v1371 = vunpack.c.h.b16 %v710
        %v1372 = vunpack.c.l.b16 %v711
        %v1373 = vunpack.c.h.b16 %v711
        %v1374 = vunpack.c.l.b16 %v712
        %v1375 = vunpack.c.h.b16 %v712
        %v1376 = vunpack.c.l.b16 %v713
        %v1377 = vunpack.c.h.b16 %v713
        %v1378 = vunpack.c.l.b16 %v714
        %v1379 = vunpack.c.h.b16 %v714
        %v1380 = vunpack.c.l.b16 %v715
        %v1381 = vunpack.c.h.b16 %v715
        %v1382 = vunpack.c.l.b16 %v716
        %v1383 = vunpack.c.h.b16 %v716
        %v1384 = vunpack.c.l.b16 %v717
        %v1385 = vunpack.c.h.b16 %v717
        %v1386 = vunpack.c.l.b16 %v718
        %v1387 = vunpack.c.h.b16 %v718
        %v1388 = vunpack.c.l.b16 %v719
        %v1389 = vunpack.c.h.b16 %v719
        %v1390 = vunpack.c.l.b16 %v720
        %v1391 = vunpack.c.h.b16 %v720
        %v1392 = vunpack.c.l.b16 %v721
        %v1393 = vunpack.c.h.b16 %v721
        %v1394 = vunpack.c.l.b16 %v722
        %v1395 = vunpack.c.h.b16 %v722
        %v1396 = vunpack.c.l.b16 %v723
        %v1397 = vunpack.c.h.b16 %v723
        %v1398 = vunpack.c.l.b16 %v724
        %v1399 = vunpack.c.h.b16 %v724
        %v1400 = vunpack.c.l.b16 %v725
        %v1401 = vunpack.c.h.b16 %v725
        %v1402 = vunpack.c.l.b16 %v726
        %v1403 = vunpack.c.h.b16 %v726
        %v1404 = vunpack.c.l.b16 %v727
        %v1405 = vunpack.c.h.b16 %v727
        %v1406 = vunpack.c.l.b16 %v728
        %v1407 = vunpack.c.h.b16 %v728
        %v1408 = vunpack.c.l.b16 %v729
        %v1409 = vunpack.c.h.b16 %v729
        %v1410 = vunpack.c.l.b16 %v730
        %v1411 = vunpack.c.h.b16 %v730
        %v1412 = vunpack.c.l.b16 %v731
        %v1413 = vunpack.c.h.b16 %v731
        %v1414 = vunpack.c.l.b16 %v732
        %v1415 = vunpack.c.h.b16 %v732
        %v1416 = vunpack.c.l.b16 %v733
        %v1417 = vunpack.c.h.b16 %v733
        %v1418 = vunpack.c.l.b16 %v734
        %v1419 = vunpack.c.h.b16 %v734
        %v1420 = vunpack.c.l.b16 %v735
        %v1421 = vunpack.c.h.b16 %v735
        %v1422 = vunpack.c.l.b16 %v736
        %v1423 = vunpack.c.h.b16 %v736
        %v1424 = vunpack.c.l.b16 %v737
        %v1425 = vunpack.c.h.b16 %v737
        %v1426 = vunpack.c.l.b16 %v738
        %v1427 = vunpack.c.h.b16 %v738
        %v1428 = vunpack.c.l.b16 %v739
        %v1429 = vunpack.c.h.b16 %v739
        %v1430 = vunpack.c.l.b16 %v740
        %v1431 = vunpack.c.h.b16 %v740
        %v1432 = vunpack.c.l.b16 %v741
        %v1433 = vunpack.c.h.b16 %v741
        %v1434 = vunpack.c.l.b16 %v742
        %v1435 = vunpack.c.h.b16 %v742
        %v1436 = vunpack.c.l.b16 %v743
        %v1437 = vunpack.c.h.b16 %v743
        %v1438 = vunpack.c.l.b16 %v744
        %v1439 = vunpack.c.h.b16 %v744
        %v1440 = vunpack.c.l.b16 %v745
        %v1441 = vunpack.c.h.b16 %v745
        %v1442 = vunpack.c.l.b16 %v746
        %v1443 = vunpack.c.h.b16 %v746
        %v1444 = vunpack.c.l.b16 %v747
        %v1445 = vunpack.c.h.b16 %v747
        %v1446 = vunpack.c.l.b16 %v748
        %v1447 = vunpack.c.h.b16 %v748
        %v1448 = vunpack.c.l.b16 %v749
        %v1449 = vunpack.c.h.b16 %v749
        %v1450 = vunpack.c.l.b16 %v750
        %v1451 = vunpack.c.h.b16 %v750
        %v1452 = vunpack.c.l.b16 %v751
        %v1453 = vunpack.c.h.b16 %v751
        %v1454 = vunpack.c.l.b16 %v752
        %v1455 = vunpack.c.h.b16 %v752
        %v1456 = vunpack.c.l.b16 %v753
        %v1457 = vunpack.c.h.b16 %v753
        %v1458 = vunpack.c.l.b16 %v754
        %v1459 = vunpack.c.h.b16 %v754
        %v1460 = vunpack.c.l.b16 %v755
        %v1461 = vunpack.c.h.b16 %v755
        %v1462 = vunpack.c.l.b16 %v756
        %v1463 = vunpack.c.h.b16 %v756
        %v1464 = vunpack.c.l.b16 %v757
        %v1465 = vunpack.c.h.b16 %v757
        %v1466 = vunpack.c.l.b16 %v758
        %v1467 = vunpack.c.h.b16 %v758
        %v1468 = vunpack.c.l.b16 %v759
        %v1469 = vunpack.c.h.b16 %v759
        %v1470 = vunpack.c.l.b16 %v760
        %v1471 = vunpack.c.h.b16 %v760
        %v1472 = vunpack.c.l.b16 %v761
        %v1473 = vunpack.c.h.b16 %v761
        %v1474 = vunpack.c.l.b16 %v762
        %v1475 = vunpack.c.h.b16 %v762
        %v1476 = vunpack.c.l.b16 %v763
        %v1477 = vunpack.c.h.b16 %v763
        %v1478 = vunpack.c.l.b16 %v764
        %v1479 = vunpack.c.h.b16 %v764
        %v1480 = vunpack.c.l.b16 %v765
        %v1481 = vunpack.c.h.b16 %v765
        %v1482 = vunpack.c.l.b16 %v766
        %v1483 = vunpack.c.h.b16 %v766
        %v1484 = vunpack.c.l.b16 %v767
        %v1485 = vunpack.c.h.b16 %v767
        %v1486 = vunpack.c.l.b16 %v768
        %v1487 = vunpack.c.h.b16 %v768
        %v1488 = vunpack.c.l.b16 %v769
        %v1489 = vunpack.c.h.b16 %v769
        %v1490 = vunpack.c.l.b16 %v770
        %v1491 = vunpack.c.h.b16 %v770
        %v1492 = vunpack.c.l.b16 %v771
        %v1493 = vunpack.c.h.b16 %v771
        %v1494 = vunpack.c.l.b16 %v772
        %v1495 = vunpack.c.h.b16 %v772
        %v1496 = vunpack.c.l.b16 %v773
        %v1497 = vunpack.c.h.b16 %v773
        %v1498 = vunpack.c.l.b16 %v774
        %v1499 = vunpack.c.h.b16 %v774
        %v1500 = vunpack.c.l.b16 %v775
        %v1501 = vunpack.c.h.b16 %v775
        %v1502 = vunpack.c.l.b16 %v776
        %v1503 = vunpack.c.h.b16 %v776
        %v1504 = vunpack.c.l.b16 %v777
        %v1505 = vunpack.c.h.b16 %v777
        %v1506 = vunpack.c.l.b16 %v778
        %v1507 = vunpack.c.h.b16 %v778
        %v1508 = vunpack.c.l.b16 %v779
        %v1509 = vunpack.c.h.b16 %v779
        %v1510 = vunpack.c.l.b16 %v780
        %v1511 = vunpack.c.h.b16 %v780
        %v1512 = vunpack.c.l.b16 %v781
        %v1513 = vunpack.c.h.b16 %v781
        %v1514 = vunpack.c.l.b16 %v782
        %v1515 = vunpack.c.h.b16 %v782
        %v1516 = vunpack.c.l.b16 %v783
        %v1517 = vunpack.c.h.b16 %v783
        %v1518 = vunpack.c.l.b16 %v784
        %v1519 = vunpack.c.h.b16 %v784
        %v1520 = vunpack.c.l.b16 %v785
        %v1521 = vunpack.c.h.b16 %v785
        %v1522 = vunpack.c.l.b16 %v786
        %v1523 = vunpack.c.h.b16 %v786
        %v1524 = vunpack.c.l.b16 %v787
        %v1525 = vunpack.c.h.b16 %v787
        %v1526 = vunpack.c.l.b16 %v788
        %v1527 = vunpack.c.h.b16 %v788
        %v1528 = vunpack.c.l.b16 %v789
        %v1529 = vunpack.c.h.b16 %v789
        %v1530 = vunpack.c.l.b16 %v790
        %v1531 = vunpack.c.h.b16 %v790
        %v1532 = vunpack.c.l.b16 %v791
        %v1533 = vunpack.c.h.b16 %v791
        %v1534 = vunpack.c.l.b16 %v792
        %v1535 = vunpack.c.h.b16 %v792
        %v1536 = vunpack.c.l.b16 %v793
        %v1537 = vunpack.c.h.b16 %v793
        %v1538 = vunpack.c.l.b16 %v794
        %v1539 = vunpack.c.h.b16 %v794
        %v1540 = vunpack.c.l.b16 %v795
        %v1541 = vunpack.c.h.b16 %v795
        %v1542 = vunpack.c.l.b16 %v796
        %v1543 = vunpack.c.h.b16 %v796
        %v1544 = vunpack.c.l.b16 %v797
        %v1545 = vunpack.c.h.b16 %v797
        %v1546 = vunpack.c.l.b16 %v798
        %v1547 = vunpack.c.h.b16 %v798
        %v1548 = vunpack.c.l.b16 %v799
        %v1549 = vunpack.c.h.b16 %v799
        %v1550 = vunpack.c.l.b16 %v800
        %v1551 = vunpack.c.h.b16 %v800
        %v1552 = vunpack.c.l.b16 %v801
        %v1553 = vunpack.c.h.b16 %v801
        %v1554 = vunpack.c.l.b16 %v802
        %v1555 = vunpack.c.h.b16 %v802
        %v1556 = vunpack.c.l.b16 %v803
        %v1557 = vunpack.c.h.b16 %v803
        %v1558 = vunpack.c.l.b16 %v804
        %v1559 = vunpack.c.h.b16 %v804
        %v1560 = vunpack.c.l.b16 %v805
        %v1561 = vunpack.c.h.b16 %v805
        %v1562 = vunpack.c.l.b16 %v806
        %v1563 = vunpack.c.h.b16 %v806
        %v1564 = vunpack.c.l.b16 %v807
        %v1565 = vunpack.c.h.b16 %v807
        %v1566 = vunpack.c.l.b16 %v808
        %v1567 = vunpack.c.h.b16 %v808
        %v1568 = vunpack.c.l.b16 %v809
        %v1569 = vunpack.c.h.b16 %v809
        %v1570 = vunpack.c.l.b16 %v810
        %v1571 = vunpack.c.h.b16 %v810
        %v1572 = vunpack.c.l.b16 %v811
        %v1573 = vunpack.c.h.b16 %v811
        %v1574 = vunpack.c.l.b16 %v812
        %v1575 = vunpack.c.h.b16 %v812
        %v1576 = vunpack.c.l.b16 %v813
        %v1577 = vunpack.c.h.b16 %v813
        %v1578 = vunpack.c.l.b16 %v814
        %v1579 = vunpack.c.h.b16 %v814
        %v1580 = vunpack.c.l.b16 %v815
        %v1581 = vunpack.c.h.b16 %v815
        %v1582 = vunpack.c.l.b16 %v816
        %v1583 = vunpack.c.h.b16 %v816
        %v1584 = vunpack.c.l.b16 %v817
        %v1585 = vunpack.c.h.b16 %v817
        %v1586 = vunpack.c.l.b16 %v818
        %v1587 = vunpack.c.h.b16 %v818
        %v1588 = vunpack.c.l.b16 %v819
        %v1589 = vunpack.c.h.b16 %v819
        %v1590 = vunpack.c.l.b16 %v820
        %v1591 = vunpack.c.h.b16 %v820
        %v1592 = vunpack.c.l.b16 %v821
        %v1593 = vunpack.c.h.b16 %v821
        %v1594 = vunpack.c.l.b16 %v822
        %v1595 = vunpack.c.h.b16 %v822
        %v1596 = vunpack.c.l.b16 %v823
        %v1597 = vunpack.c.h.b16 %v823
        %v1598 = vunpack.c.l.b16 %v824
        %v1599 = vunpack.c.h.b16 %v824
        %v1600 = vunpack.c.l.b16 %v825
        %v1601 = vunpack.c.h.b16 %v825
        %v1602 = vunpack.c.l.b16 %v826
        %v1603 = vunpack.c.h.b16 %v826
        %v1604 = vunpack.c.l.b16 %v827
        %v1605 = vunpack.c.h.b16 %v827
        %v1606 = vunpack.c.l.b16 %v828
        %v1607 = vunpack.c.h.b16 %v828
        %v1608 = vunpack.c.l.b16 %v829
        %v1609 = vunpack.c.h.b16 %v829
        %v1610 = vunpack.c.l.b16 %v830
        %v1611 = vunpack.c.h.b16 %v830
        %v1612 = vunpack.c.l.b16 %v831
        %v1613 = vunpack.c.h.b16 %v831
        %v1614 = vunpack.c.l.b16 %v832
        %v1615 = vunpack.c.h.b16 %v832
        %v1616 = vunpack.c.l.b16 %v833
        %v1617 = vunpack.c.h.b16 %v833
        %v1618 = vunpack.c.l.b16 %v834
        %v1619 = vunpack.c.h.b16 %v834
        %v1620 = vunpack.c.l.b16 %v835
        %v1621 = vunpack.c.h.b16 %v835
        %v1622 = vunpack.c.l.b16 %v836
        %v1623 = vunpack.c.h.b16 %v836
        %v1624 = vunpack.c.l.b16 %v837
        %v1625 = vunpack.c.h.b16 %v837
        %v1626 = vunpack.c.l.b16 %v838
        %v1627 = vunpack.c.h.b16 %v838
        %v1628 = vunpack.c.l.b16 %v839
        %v1629 = vunpack.c.h.b16 %v839
        %v1630 = vunpack.c.l.b16 %v840
        %v1631 = vunpack.c.h.b16 %v840
        %v1632 = vunpack.c.l.b16 %v841
        %v1633 = vunpack.c.h.b16 %v841
        %v1634 = vunpack.c.l.b16 %v842
        %v1635 = vunpack.c.h.b16 %v842
        %v1636 = vunpack.c.l.b16 %v843
        %v1637 = vunpack.c.h.b16 %v843
        %v1638 = vunpack.c.l.b16 %v844
        %v1639 = vunpack.c.h.b16 %v844
        %v1640 = vunpack.c.l.b16 %v845
        %v1641 = vunpack.c.h.b16 %v845
        %v1642 = vunpack.c.l.b16 %v846
        %v1643 = vunpack.c.h.b16 %v846
        %v1644 = vunpack.c.l.b16 %v847
        %v1645 = vunpack.c.h.b16 %v847
        %v1646 = vunpack.c.l.b16 %v848
        %v1647 = vunpack.c.h.b16 %v848
        %v1648 = vunpack.c.l.b16 %v849
        %v1649 = vunpack.c.h.b16 %v849
        %v1650 = vunpack.c.l.b16 %v850
        %v1651 = vunpack.c.h.b16 %v850
        %v1652 = vunpack.c.l.b16 %v851
        %v1653 = vunpack.c.h.b16 %v851
        %v1654 = vunpack.c.l.b16 %v852
        %v1655 = vunpack.c.h.b16 %v852
        %v1656 = vunpack.c.l.b16 %v853
        %v1657 = vunpack.c.h.b16 %v853
        %v1658 = vunpack.c.l.b16 %v854
        %v1659 = vunpack.c.h.b16 %v854
        %v1660 = vunpack.c.l.b16 %v855
        %v1661 = vunpack.c.h.b16 %v855
        %v1662 = vunpack.c.l.b16 %v856
        %v1663 = vunpack.c.h.b16 %v856
        %v1664 = vunpack.c.l.b16 %v857
        %v1665 = vunpack.c.h.b16 %v857
        %v1666 = vunpack.c.l.b16 %v858
        %v1667 = vunpack.c.h.b16 %v858
        %v1668 = vunpack.c.l.b16 %v859
        %v1669 = vunpack.c.h.b16 %v859
        %v1670 = vunpack.c.l.b16 %v860
        %v1671 = vunpack.c.h.b16 %v860
        %v1672 = vunpack.c.l.b16 %v861
        %v1673 = vunpack.c.h.b16 %v861
        %v1674 = vunpack.c.l.b16 %v862
        %v1675 = vunpack.c.h.b16 %v862
        %v1676 = vunpack.c.l.b16 %v863
        %v1677 = vunpack.c.h.b16 %v863
        %v1678 = vunpack.c.l.b16 %v864
        %v1679 = vunpack.c.h.b16 %v864
        %v1680 = vunpack.c.l.b16 %v865
        %v1681 = vunpack.c.h.b16 %v865
        %v1682 = vunpack.c.l.b16 %v866
        %v1683 = vunpack.c.h.b16 %v866
        %v1684 = vunpack.c.l.b16 %v867
        %v1685 = vunpack.c.h.b16 %v867
        %v1686 = vunpack.c.l.b16 %v868
        %v1687 = vunpack.c.h.b16 %v868
        %v1688 = vunpack.c.l.b16 %v869
        %v1689 = vunpack.c.h.b16 %v869
        %v1690 = vunpack.c.l.b16 %v870
        %v1691 = vunpack.c.h.b16 %v870
        %v1692 = vunpack.c.l.b16 %v871
        %v1693 = vunpack.c.h.b16 %v871
        %v1694 = vunpack.c.l.b16 %v872
        %v1695 = vunpack.c.h.b16 %v872
        %v1696 = vunpack.c.l.b16 %v873
        %v1697 = vunpack.c.h.b16 %v873
        %v1698 = vpack.c.b16 %v1194, %v1186
        %v1699 = vpack.c.b16 %v1195, %v1187
        %v1700 = vpack.c.b16 %v1196, %v1188
        %v1701 = vpack.c.b16 %v1197, %v1189
        %v1702 = vpack.c.b16 %v1198, %v1190
        %v1703 = vpack.c.b16 %v1199, %v1191
        %v1704 = vpack.c.b16 %v1200, %v1192
        %v1705 = vpack.c.b16 %v1201, %v1193
        %v1706 = vpack.c.b16 %v1210, %v1202
        %v1707 = vpack.c.b16 %v1211, %v1203
        %v1708 = vpack.c.b16 %v1212, %v1204
        %v1709 = vpack.c.b16 %v1213, %v1205
        %v1710 = vpack.c.b16 %v1214, %v1206
        %v1711 = vpack.c.b16 %v1215, %v1207
        %v1712 = vpack.c.b16 %v1216, %v1208
        %v1713 = vpack.c.b16 %v1217, %v1209
        %v1714 = vpack.c.b16 %v1226, %v1218
        %v1715 = vpack.c.b16 %v1227, %v1219
        %v1716 = vpack.c.b16 %v1228, %v1220
        %v1717 = vpack.c.b16 %v1229, %v1221
        %v1718 = vpack.c.b16 %v1230, %v1222
        %v1719 = vpack.c.b16 %v1231, %v1223
        %v1720 = vpack.c.b16 %v1232, %v1224
        %v1721 = vpack.c.b16 %v1233, %v1225
        %v1722 = vpack.c.b16 %v1242, %v1234
        %v1723 = vpack.c.b16 %v1243, %v1235
        %v1724 = vpack.c.b16 %v1244, %v1236
        %v1725 = vpack.c.b16 %v1245, %v1237
        %v1726 = vpack.c.b16 %v1246, %v1238
        %v1727 = vpack.c.b16 %v1247, %v1239
        %v1728 = vpack.c.b16 %v1248, %v1240
        %v1729 = vpack.c.b16 %v1249, %v1241
        %v1730 = vpack.c.b16 %v1258, %v1250
        %v1731 = vpack.c.b16 %v1259, %v1251
        %v1732 = vpack.c.b16 %v1260, %v1252
        %v1733 = vpack.c.b16 %v1261, %v1253
        %v1734 = vpack.c.b16 %v1262, %v1254
        %v1735 = vpack.c.b16 %v1263, %v1255
        %v1736 = vpack.c.b16 %v1264, %v1256
        %v1737 = vpack.c.b16 %v1265, %v1257
        %v1738 = vpack.c.b16 %v1274, %v1266
        %v1739 = vpack.c.b16 %v1275, %v1267
        %v1740 = vpack.c.b16 %v1276, %v1268
        %v1741 = vpack.c.b16 %v1277, %v1269
        %v1742 = vpack.c.b16 %v1278, %v1270
        %v1743 = vpack.c.b16 %v1279, %v1271
        %v1744 = vpack.c.b16 %v1280, %v1272
        %v1745 = vpack.c.b16 %v1281, %v1273
        %v1746 = vpack.c.b16 %v1290, %v1282
        %v1747 = vpack.c.b16 %v1291, %v1283
        %v1748 = vpack.c.b16 %v1292, %v1284
        %v1749 = vpack.c.b16 %v1293, %v1285
        %v1750 = vpack.c.b16 %v1294, %v1286
        %v1751 = vpack.c.b16 %v1295, %v1287
        %v1752 = vpack.c.b16 %v1296, %v1288
        %v1753 = vpack.c.b16 %v1297, %v1289
        %v1754 = vpack.c.b16 %v1306, %v1298
        %v1755 = vpack.c.b16 %v1307, %v1299
        %v1756 = vpack.c.b16 %v1308, %v1300
        %v1757 = vpack.c.b16 %v1309, %v1301
        %v1758 = vpack.c.b16 %v1310, %v1302
        %v1759 = vpack.c.b16 %v1311, %v1303
        %v1760 = vpack.c.b16 %v1312, %v1304
        %v1761 = vpack.c.b16 %v1313, %v1305
        %v1762 = vpack.c.b16 %v1322, %v1314
        %v1763 = vpack.c.b16 %v1323, %v1315
        %v1764 = vpack.c.b16 %v1324, %v1316
        %v1765 = vpack.c.b16 %v1325, %v1317
        %v1766 = vpack.c.b16 %v1326, %v1318
        %v1767 = vpack.c.b16 %v1327, %v1319
        %v1768 = vpack.c.b16 %v1328, %v1320
        %v1769 = vpack.c.b16 %v1329, %v1321
        %v1770 = vpack.c.b16 %v1338, %v1330
        %v1771 = vpack.c.b16 %v1339, %v1331
        %v1772 = vpack.c.b16 %v1340, %v1332
        %v1773 = vpack.c.b16 %v1341, %v1333
        %v1774 = vpack.c.b16 %v1342, %v1334
        %v1775 = vpack.c.b16 %v1343, %v1335
        %v1776 = vpack.c.b16 %v1344, %v1336
        %v1777 = vpack.c.b16 %v1345, %v1337
        %v1778 = vpack.c.b16 %v1354, %v1346
        %v1779 = vpack.c.b16 %v1355, %v1347
        %v1780 = vpack.c.b16 %v1356, %v1348
        %v1781 = vpack.c.b16 %v1357, %v1349
        %v1782 = vpack.c.b16 %v1358, %v1350
        %v1783 = vpack.c.b16 %v1359, %v1351
        %v1784 = vpack.c.b16 %v1360, %v1352
        %v1785 = vpack.c.b16 %v1361, %v1353
        %v1786 = vpack.c.b16 %v1370, %v1362
        %v1787 = vpack.c.b16 %v1371, %v1363
        %v1788 = vpack.c.b16 %v1372, %v1364
        %v1789 = vpack.c.b16 %v1373, %v1365
        %v1790 = vpack.c.b16 %v1374, %v1366
        %v1791 = vpack.c.b16 %v1375, %v1367
        %v1792 = vpack.c.b16 %v1376, %v1368
        %v1793 = vpack.c.b16 %v1377, %v1369
        %v1794 = vpack.c.b16 %v1386, %v1378
        %v1795 = vpack.c.b16 %v1387, %v1379
        %v1796 = vpack.c.b16 %v1388, %v1380
        %v1797 = vpack.c.b16 %v1389, %v1381
        %v1798 = vpack.c.b16 %v1390, %v1382
        %v1799 = vpack.c.b16 %v1391, %v1383
        %v1800 = vpack.c.b16 %v1392, %v1384
        %v1801 = vpack.c.b16 %v1393, %v1385
        %v1802 = vpack.c.b16 %v1402, %v1394
        %v1803 = vpack.c.b16 %v1403, %v1395
        %v1804 = vpack.c.b16 %v1404, %v1396
        %v1805 = vpack.c.b16 %v1405, %v1397
        %v1806 = vpack.c.b16 %v1406, %v1398
        %v1807 = vpack.c.b16 %v1407, %v1399
        %v1808 = vpack.c.b16 %v1408, %v1400
        %v1809 = vpack.c.b16 %v1409, %v1401
        %v1810 = vpack.c.b16 %v1418, %v1410
        %v1811 = vpack.c.b16 %v1419, %v1411
        %v1812 = vpack.c.b16 %v1420, %v1412
        %v1813 = vpack.c.b16 %v1421, %v1413
        %v1814 = vpack.c.b16 %v1422, %v1414
        %v1815 = vpack.c.b16 %v1423, %v1415
        %v1816 = vpack.c.b16 %v1424, %v1416
        %v1817 = vpack.c.b16 %v1425, %v1417
        %v1818 = vpack.c.b16 %v1434, %v1426
        %v1819 = vpack.c.b16 %v1435, %v1427
        %v1820 = vpack.c.b16 %v1436, %v1428
        %v1821 = vpack.c.b16 %v1437, %v1429
        %v1822 = vpack.c.b16 %v1438, %v1430
        %v1823 = vpack.c.b16 %v1439, %v1431
        %v1824 = vpack.c.b16 %v1440, %v1432
        %v1825 = vpack.c.b16 %v1441, %v1433
        %v1826 = vpack.c.b16 %v1450, %v1442
        %v1827 = vpack.c.b16 %v1451, %v1443
        %v1828 = vpack.c.b16 %v1452, %v1444
        %v1829 = vpack.c.b16 %v1453, %v1445
        %v1830 = vpack.c.b16 %v1454, %v1446
        %v1831 = vpack.c.b16 %v1455, %v1447
        %v1832 = vpack.c.b16 %v1456, %v1448
        %v1833 = vpack.c.b16 %v1457, %v1449
        %v1834 = vpack.c.b16 %v1466, %v1458
        %v1835 = vpack.c.b16 %v1467, %v1459
        %v1836 = vpack.c.b16 %v1468, %v1460
        %v1837 = vpack.c.b16 %v1469, %v1461
        %v1838 = vpack.c.b16 %v1470, %v1462
        %v1839 = vpack.c.b16 %v1471, %v1463
        %v1840 = vpack.c.b16 %v1472, %v1464
        %v1841 = vpack.c.b16 %v1473, %v1465
        %v1842 = vpack.c.b16 %v1482, %v1474
        %v1843 = vpack.c.b16 %v1483, %v1475
        %v1844 = vpack.c.b16 %v1484, %v1476
        %v1845 = vpack.c.b16 %v1485, %v1477
        %v1846 = vpack.c.b16 %v1486, %v1478
        %v1847 = vpack.c.b16 %v1487, %v1479
        %v1848 = vpack.c.b16 %v1488, %v1480
        %v1849 = vpack.c.b16 %v1489, %v1481
        %v1850 = vpack.c.b16 %v1498, %v1490
        %v1851 = vpack.c.b16 %v1499, %v1491
        %v1852 = vpack.c.b16 %v1500, %v1492
        %v1853 = vpack.c.b16 %v1501, %v1493
        %v1854 = vpack.c.b16 %v1502, %v1494
        %v1855 = vpack.c.b16 %v1503, %v1495
        %v1856 = vpack.c.b16 %v1504, %v1496
        %v1857 = vpack.c.b16 %v1505, %v1497
        %v1858 = vpack.c.b16 %v1514, %v1506
        %v1859 = vpack.c.b16 %v1515, %v1507
        %v1860 = vpack.c.b16 %v1516, %v1508
        %v1861 = vpack.c.b16 %v1517, %v1509
        %v1862 = vpack.c.b16 %v1518, %v1510
        %v1863 = vpack.c.b16 %v1519, %v1511
        %v1864 = vpack.c.b16 %v1520, %v1512
        %v1865 = vpack.c.b16 %v1521, %v1513
        %v1866 = vpack.c.b16 %v1530, %v1522
        %v1867 = vpack.c.b16 %v1531, %v1523
        %v1868 = vpack.c.b16 %v1532, %v1524
        %v1869 = vpack.c.b16 %v1533, %v1525
        %v1870 = vpack.c.b16 %v1534, %v1526
        %v1871 = vpack.c.b16 %v1535, %v1527
        %v1872 = vpack.c.b16 %v1536, %v1528
        %v1873 = vpack.c.b16 %v1537, %v1529
        %v1874 = vpack.c.b16 %v1546, %v1538
        %v1875 = vpack.c.b16 %v1547, %v1539
        %v1876 = vpack.c.b16 %v1548, %v1540
        %v1877 = vpack.c.b16 %v1549, %v1541
        %v1878 = vpack.c.b16 %v1550, %v1542
        %v1879 = vpack.c.b16 %v1551, %v1543
        %v1880 = vpack.c.b16 %v1552, %v1544
        %v1881 = vpack.c.b16 %v1553, %v1545
        %v1882 = vpack.c.b16 %v1562, %v1554
        %v1883 = vpack.c.b16 %v1563, %v1555
        %v1884 = vpack.c.b16 %v1564, %v1556
        %v1885 = vpack.c.b16 %v1565, %v1557
        %v1886 = vpack.c.b16 %v1566, %v1558
        %v1887 = vpack.c.b16 %v1567, %v1559
        %v1888 = vpack.c.b16 %v1568, %v1560
        %v1889 = vpack.c.b16 %v1569, %v1561
        %v1890 = vpack.c.b16 %v1578, %v1570
        %v1891 = vpack.c.b16 %v1579, %v1571
        %v1892 = vpack.c.b16 %v1580, %v1572
        %v1893 = vpack.c.b16 %v1581, %v1573
        %v1894 = vpack.c.b16 %v1582, %v1574
        %v1895 = vpack.c.b16 %v1583, %v1575
        %v1896 = vpack.c.b16 %v1584, %v1576
        %v1897 = vpack.c.b16 %v1585, %v1577
        %v1898 = vpack.c.b16 %v1594, %v1586
        %v1899 = vpack.c.b16 %v1595, %v1587
        %v1900 = vpack.c.b16 %v1596, %v1588
        %v1901 = vpack.c.b16 %v1597, %v1589
        %v1902 = vpack.c.b16 %v1598, %v1590
        %v1903 = vpack.c.b16 %v1599, %v1591
        %v1904 = vpack.c.b16 %v1600, %v1592
        %v1905 = vpack.c.b16 %v1601, %v1593
        %v1906 = vpack.c.b16 %v1610, %v1602
        %v1907 = vpack.c.b16 %v1611, %v1603
        %v1908 = vpack.c.b16 %v1612, %v1604
        %v1909 = vpack.c.b16 %v1613, %v1605
        %v1910 = vpack.c.b16 %v1614, %v1606
        %v1911 = vpack.c.b16 %v1615, %v1607
        %v1912 = vpack.c.b16 %v1616, %v1608
        %v1913 = vpack.c.b16 %v1617, %v1609
        %v1914 = vpack.c.b16 %v1626, %v1618
        %v1915 = vpack.c.b16 %v1627, %v1619
        %v1916 = vpack.c.b16 %v1628, %v1620
        %v1917 = vpack.c.b16 %v1629, %v1621
        %v1918 = vpack.c.b16 %v1630, %v1622
        %v1919 = vpack.c.b16 %v1631, %v1623
        %v1920 = vpack.c.b16 %v1632, %v1624
        %v1921 = vpack.c.b16 %v1633, %v1625
        %v1922 = vpack.c.b16 %v1642, %v1634
        %v1923 = vpack.c.b16 %v1643, %v1635
        %v1924 = vpack.c.b16 %v1644, %v1636
        %v1925 = vpack.c.b16 %v1645, %v1637
        %v1926 = vpack.c.b16 %v1646, %v1638
        %v1927 = vpack.c.b16 %v1647, %v1639
        %v1928 = vpack.c.b16 %v1648, %v1640
        %v1929 = vpack.c.b16 %v1649, %v1641
        %v1930 = vpack.c.b16 %v1658, %v1650
        %v1931 = vpack.c.b16 %v1659, %v1651
        %v1932 = vpack.c.b16 %v1660, %v1652
        %v1933 = vpack.c.b16 %v1661, %v1653
        %v1934 = vpack.c.b16 %v1662, %v1654
        %v1935 = vpack.c.b16 %v1663, %v1655
        %v1936 = vpack.c.b16 %v1664, %v1656
        %v1937 = vpack.c.b16 %v1665, %v1657
        %v1938 = vpack.c.b16 %v1674, %v1666
        %v1939 = vpack.c.b16 %v1675, %v1667
        %v1940 = vpack.c.b16 %v1676, %v1668
        %v1941 = vpack.c.b16 %v1677, %v1669
        %v1942 = vpack.c.b16 %v1678, %v1670
        %v1943 = vpack.c.b16 %v1679, %v1671
        %v1944 = vpack.c.b16 %v1680, %v1672
        %v1945 = vpack.c.b16 %v1681, %v1673
        %v1946 = vpack.c.b16 %v1690, %v1682
        %v1947 = vpack.c.b16 %v1691, %v1683
        %v1948 = vpack.c.b16 %v1692, %v1684
        %v1949 = vpack.c.b16 %v1693, %v1685
        %v1950 = vpack.c.b16 %v1694, %v1686
        %v1951 = vpack.c.b16 %v1695, %v1687
        %v1952 = vpack.c.b16 %v1696, %v1688
        %v1953 = vpack.c.b16 %v1697, %v1689
        %2210 = vmatprep.subr.bf16.mxu0 %v1699
        %2211 = vmatpush1.bf16.msra.mxu0 %v1698
        %2212 = vmatprep.subr.bf16.mxu0 %v1707
        %2213 = vmatpush1.bf16.msra.mxu0 %v1706
        %2214 = vmatprep.subr.bf16.mxu0 %v1715
        %2215 = vmatpush1.bf16.msra.mxu0 %v1714
        %2216 = vmatprep.subr.bf16.mxu0 %v1723
        %2217 = vmatpush1.bf16.msra.mxu0 %v1722
        %2218 = vmatprep.subr.bf16.mxu0 %v1731
        %2219 = vmatpush1.bf16.msra.mxu0 %v1730
        %2220 = vmatprep.subr.bf16.mxu0 %v1739
        %2221 = vmatpush1.bf16.msra.mxu0 %v1738
        %2222 = vmatprep.subr.bf16.mxu0 %v1747
        %2223 = vmatpush1.bf16.msra.mxu0 %v1746
        %2224 = vmatprep.subr.bf16.mxu0 %v1755
        %2225 = vmatpush1.bf16.msra.mxu0 %v1754
        %2226 = vmatprep.subr.bf16.mxu0 %v1763
        %2227 = vmatpush1.bf16.msra.mxu0 %v1762
        %2228 = vmatprep.subr.bf16.mxu0 %v1771
        %2229 = vmatpush1.bf16.msra.mxu0 %v1770
        %2230 = vmatprep.subr.bf16.mxu0 %v1779
        %2231 = vmatpush1.bf16.msra.mxu0 %v1778
        %2232 = vmatprep.subr.bf16.mxu0 %v1787
        %2233 = vmatpush1.bf16.msra.mxu0 %v1786
        %2234 = vmatprep.subr.bf16.mxu0 %v1795
        %2235 = vmatpush1.bf16.msra.mxu0 %v1794
        %2236 = vmatprep.subr.bf16.mxu0 %v1803
        %2237 = vmatpush1.bf16.msra.mxu0 %v1802
        %2238 = vmatprep.subr.bf16.mxu0 %v1811
        %2239 = vmatpush1.bf16.msra.mxu0 %v1810
        %2240 = vmatprep.subr.bf16.mxu0 %v1819
        %2241 = vmatpush1.bf16.msra.mxu0 %v1818
        %2242 = vmatprep.mubr.bf16.mxu0 %v923
        %2243 = vmatmul.mubr.bf16.gmra.mrb[0].mxu0 %v922
        %v2244 = vpop.f32.mrb[0].mxu0
        %v2245 = vadd.f32 %v879, %v2244
        %v2246 = vpop.f32.mrb[0].mxu0
        %v2247 = vadd.f32 %v883, %v2246
        %v2248 = vpop.f32.mrb[0].mxu0
        %v2249 = vpop.f32.mrb[0].mxu0
        %2250 = vdwg.mxu0
        %2251 = vmatprep.subr.bf16.mxu0 %v1827
        %2252 = vmatpush1.bf16.msra.mxu0 %v1826
        %2253 = vmatprep.subr.bf16.mxu0 %v1835
        %2254 = vmatpush1.bf16.msra.mxu0 %v1834
        %2255 = vmatprep.subr.bf16.mxu0 %v1843
        %2256 = vmatpush1.bf16.msra.mxu0 %v1842
        %2257 = vmatprep.subr.bf16.mxu0 %v1851
        %2258 = vmatpush1.bf16.msra.mxu0 %v1850
        %2259 = vmatprep.subr.bf16.mxu0 %v1859
        %2260 = vmatpush1.bf16.msra.mxu0 %v1858
        %2261 = vmatprep.subr.bf16.mxu0 %v1867
        %2262 = vmatpush1.bf16.msra.mxu0 %v1866
        %2263 = vmatprep.subr.bf16.mxu0 %v1875
        %2264 = vmatpush1.bf16.msra.mxu0 %v1874
        %2265 = vmatprep.subr.bf16.mxu0 %v1883
        %2266 = vmatpush1.bf16.msra.mxu0 %v1882
        %2267 = vmatprep.subr.bf16.mxu0 %v1891
        %2268 = vmatpush1.bf16.msra.mxu0 %v1890
        %2269 = vmatprep.subr.bf16.mxu0 %v1899
        %2270 = vmatpush1.bf16.msra.mxu0 %v1898
        %2271 = vmatprep.subr.bf16.mxu0 %v1907
        %2272 = vmatpush1.bf16.msra.mxu0 %v1906
        %2273 = vmatprep.subr.bf16.mxu0 %v1915
        %2274 = vmatpush1.bf16.msra.mxu0 %v1914
        %2275 = vmatprep.subr.bf16.mxu0 %v1923
        %2276 = vmatpush1.bf16.msra.mxu0 %v1922
        %2277 = vmatprep.subr.bf16.mxu0 %v1931
        %2278 = vmatpush1.bf16.msra.mxu0 %v1930
        %2279 = vmatprep.subr.bf16.mxu0 %v1939
        %2280 = vmatpush1.bf16.msra.mxu0 %v1938
        %2281 = vmatprep.subr.bf16.mxu0 %v1947
        %2282 = vmatpush1.bf16.msra.mxu0 %v1946
        %2283 = vmatprep.mubr.bf16.mxu0 %v925
        %2284 = vmatmul.mubr.bf16.gmra.mrb[0].mxu0 %v924
        %v2285 = vpop.f32.mrb[0].mxu0
        %v2286 = vadd.f32 %v2245, %v2285
        %v2287 = vpop.f32.mrb[0].mxu0
        %v2288 = vadd.f32 %v2247, %v2287
        %v2289 = vpop.f32.mrb[0].mxu0
        %v2290 = vpop.f32.mrb[0].mxu0
        %2291 = vdwg.mxu0
        %2292 = vmatprep.subr.bf16.mxu0 %v1701
        %2293 = vmatpush1.bf16.msra.mxu0 %v1700
        %2294 = vmatprep.subr.bf16.mxu0 %v1709
        %2295 = vmatpush1.bf16.msra.mxu0 %v1708
        %2296 = vmatprep.subr.bf16.mxu0 %v1717
        %2297 = vmatpush1.bf16.msra.mxu0 %v1716
        %2298 = vmatprep.subr.bf16.mxu0 %v1725
        %2299 = vmatpush1.bf16.msra.mxu0 %v1724
        %2300 = vmatprep.subr.bf16.mxu0 %v1733
        %2301 = vmatpush1.bf16.msra.mxu0 %v1732
        %2302 = vmatprep.subr.bf16.mxu0 %v1741
        %2303 = vmatpush1.bf16.msra.mxu0 %v1740
        %2304 = vmatprep.subr.bf16.mxu0 %v1749
        %2305 = vmatpush1.bf16.msra.mxu0 %v1748
        %2306 = vmatprep.subr.bf16.mxu0 %v1757
        %2307 = vmatpush1.bf16.msra.mxu0 %v1756
        %2308 = vmatprep.subr.bf16.mxu0 %v1765
        %2309 = vmatpush1.bf16.msra.mxu0 %v1764
        %2310 = vmatprep.subr.bf16.mxu0 %v1773
        %2311 = vmatpush1.bf16.msra.mxu0 %v1772
        %2312 = vmatprep.subr.bf16.mxu0 %v1781
        %2313 = vmatpush1.bf16.msra.mxu0 %v1780
        %2314 = vmatprep.subr.bf16.mxu0 %v1789
        %2315 = vmatpush1.bf16.msra.mxu0 %v1788
        %2316 = vmatprep.subr.bf16.mxu0 %v1797
        %2317 = vmatpush1.bf16.msra.mxu0 %v1796
        %2318 = vmatprep.subr.bf16.mxu0 %v1805
        %2319 = vmatpush1.bf16.msra.mxu0 %v1804
        %2320 = vmatprep.subr.bf16.mxu0 %v1813
        %2321 = vmatpush1.bf16.msra.mxu0 %v1812
        %2322 = vmatprep.subr.bf16.mxu0 %v1821
        %2323 = vmatpush1.bf16.msra.mxu0 %v1820
        %2324 = vmatprep.mubr.bf16.mxu0 %v923
        %2325 = vmatmul.mubr.bf16.gmra.mrb[0].mxu0 %v922
        %v2326 = vpop.f32.mrb[0].mxu0
        %v2327 = vadd.f32 %v887, %v2326
        %v2328 = vpop.f32.mrb[0].mxu0
        %v2329 = vadd.f32 %v891, %v2328
        %v2330 = vpop.f32.mrb[0].mxu0
        %v2331 = vpop.f32.mrb[0].mxu0
        %2332 = vdwg.mxu0
        %2333 = vmatprep.subr.bf16.mxu0 %v1829
        %2334 = vmatpush1.bf16.msra.mxu0 %v1828
        %2335 = vmatprep.subr.bf16.mxu0 %v1837
        %2336 = vmatpush1.bf16.msra.mxu0 %v1836
        %2337 = vmatprep.subr.bf16.mxu0 %v1845
        %2338 = vmatpush1.bf16.msra.mxu0 %v1844
        %2339 = vmatprep.subr.bf16.mxu0 %v1853
        %2340 = vmatpush1.bf16.msra.mxu0 %v1852
        %2341 = vmatprep.subr.bf16.mxu0 %v1861
        %2342 = vmatpush1.bf16.msra.mxu0 %v1860
        %2343 = vmatprep.subr.bf16.mxu0 %v1869
        %2344 = vmatpush1.bf16.msra.mxu0 %v1868
        %2345 = vmatprep.subr.bf16.mxu0 %v1877
        %2346 = vmatpush1.bf16.msra.mxu0 %v1876
        %2347 = vmatprep.subr.bf16.mxu0 %v1885
        %2348 = vmatpush1.bf16.msra.mxu0 %v1884
        %2349 = vmatprep.subr.bf16.mxu0 %v1893
        %2350 = vmatpush1.bf16.msra.mxu0 %v1892
        %2351 = vmatprep.subr.bf16.mxu0 %v1901
        %2352 = vmatpush1.bf16.msra.mxu0 %v1900
        %2353 = vmatprep.subr.bf16.mxu0 %v1909
        %2354 = vmatpush1.bf16.msra.mxu0 %v1908
        %2355 = vmatprep.subr.bf16.mxu0 %v1917
        %2356 = vmatpush1.bf16.msra.mxu0 %v1916
        %2357 = vmatprep.subr.bf16.mxu0 %v1925
        %2358 = vmatpush1.bf16.msra.mxu0 %v1924
        %2359 = vmatprep.subr.bf16.mxu0 %v1933
        %2360 = vmatpush1.bf16.msra.mxu0 %v1932
        %2361 = vmatprep.subr.bf16.mxu0 %v1941
        %2362 = vmatpush1.bf16.msra.mxu0 %v1940
        %2363 = vmatprep.subr.bf16.mxu0 %v1949
        %2364 = vmatpush1.bf16.msra.mxu0 %v1948
        %2365 = vmatprep.mubr.bf16.mxu0 %v925
        %2366 = vmatmul.mubr.bf16.gmra.mrb[0].mxu0 %v924
        %v2367 = vpop.f32.mrb[0].mxu0
        %v2368 = vadd.f32 %v2327, %v2367
        %v2369 = vpop.f32.mrb[0].mxu0
        %v2370 = vadd.f32 %v2329, %v2369
        %v2371 = vpop.f32.mrb[0].mxu0
        %v2372 = vpop.f32.mrb[0].mxu0
        %2373 = vdwg.mxu0
        %2374 = vmatprep.subr.bf16.mxu0 %v1703
        %2375 = vmatpush1.bf16.msra.mxu0 %v1702
        %2376 = vmatprep.subr.bf16.mxu0 %v1711
        %2377 = vmatpush1.bf16.msra.mxu0 %v1710
        %2378 = vmatprep.subr.bf16.mxu0 %v1719
        %2379 = vmatpush1.bf16.msra.mxu0 %v1718
        %2380 = vmatprep.subr.bf16.mxu0 %v1727
        %2381 = vmatpush1.bf16.msra.mxu0 %v1726
        %2382 = vmatprep.subr.bf16.mxu0 %v1735
        %2383 = vmatpush1.bf16.msra.mxu0 %v1734
        %2384 = vmatprep.subr.bf16.mxu0 %v1743
        %2385 = vmatpush1.bf16.msra.mxu0 %v1742
        %2386 = vmatprep.subr.bf16.mxu0 %v1751
        %2387 = vmatpush1.bf16.msra.mxu0 %v1750
        %2388 = vmatprep.subr.bf16.mxu0 %v1759
        %2389 = vmatpush1.bf16.msra.mxu0 %v1758
        %2390 = vmatprep.subr.bf16.mxu0 %v1767
        %2391 = vmatpush1.bf16.msra.mxu0 %v1766
        %2392 = vmatprep.subr.bf16.mxu0 %v1775
        %2393 = vmatpush1.bf16.msra.mxu0 %v1774
        %2394 = vmatprep.subr.bf16.mxu0 %v1783
        %2395 = vmatpush1.bf16.msra.mxu0 %v1782
        %2396 = vmatprep.subr.bf16.mxu0 %v1791
        %2397 = vmatpush1.bf16.msra.mxu0 %v1790
        %2398 = vmatprep.subr.bf16.mxu0 %v1799
        %2399 = vmatpush1.bf16.msra.mxu0 %v1798
        %2400 = vmatprep.subr.bf16.mxu0 %v1807
        %2401 = vmatpush1.bf16.msra.mxu0 %v1806
        %2402 = vmatprep.subr.bf16.mxu0 %v1815
        %2403 = vmatpush1.bf16.msra.mxu0 %v1814
        %2404 = vmatprep.subr.bf16.mxu0 %v1823
        %2405 = vmatpush1.bf16.msra.mxu0 %v1822
        %2406 = vmatprep.mubr.bf16.mxu0 %v923
        %2407 = vmatmul.mubr.bf16.gmra.mrb[0].mxu0 %v922
        %v2408 = vpop.f32.mrb[0].mxu0
        %v2409 = vadd.f32 %v895, %v2408
        %v2410 = vpop.f32.mrb[0].mxu0
        %v2411 = vadd.f32 %v899, %v2410
        %v2412 = vpop.f32.mrb[0].mxu0
        %v2413 = vpop.f32.mrb[0].mxu0
        %2414 = vdwg.mxu0
        %2415 = vmatprep.subr.bf16.mxu0 %v1831
        %2416 = vmatpush1.bf16.msra.mxu0 %v1830
        %2417 = vmatprep.subr.bf16.mxu0 %v1839
        %2418 = vmatpush1.bf16.msra.mxu0 %v1838
        %2419 = vmatprep.subr.bf16.mxu0 %v1847
        %2420 = vmatpush1.bf16.msra.mxu0 %v1846
        %2421 = vmatprep.subr.bf16.mxu0 %v1855
        %2422 = vmatpush1.bf16.msra.mxu0 %v1854
        %2423 = vmatprep.subr.bf16.mxu0 %v1863
        %2424 = vmatpush1.bf16.msra.mxu0 %v1862
        %2425 = vmatprep.subr.bf16.mxu0 %v1871
        %2426 = vmatpush1.bf16.msra.mxu0 %v1870
        %2427 = vmatprep.subr.bf16.mxu0 %v1879
        %2428 = vmatpush1.bf16.msra.mxu0 %v1878
        %2429 = vmatprep.subr.bf16.mxu0 %v1887
        %2430 = vmatpush1.bf16.msra.mxu0 %v1886
        %2431 = vmatprep.subr.bf16.mxu0 %v1895
        %2432 = vmatpush1.bf16.msra.mxu0 %v1894
        %2433 = vmatprep.subr.bf16.mxu0 %v1903
        %2434 = vmatpush1.bf16.msra.mxu0 %v1902
        %2435 = vmatprep.subr.bf16.mxu0 %v1911
        %2436 = vmatpush1.bf16.msra.mxu0 %v1910
        %2437 = vmatprep.subr.bf16.mxu0 %v1919
        %2438 = vmatpush1.bf16.msra.mxu0 %v1918
        %2439 = vmatprep.subr.bf16.mxu0 %v1927
        %2440 = vmatpush1.bf16.msra.mxu0 %v1926
        %2441 = vmatprep.subr.bf16.mxu0 %v1935
        %2442 = vmatpush1.bf16.msra.mxu0 %v1934
        %2443 = vmatprep.subr.bf16.mxu0 %v1943
        %2444 = vmatpush1.bf16.msra.mxu0 %v1942
        %2445 = vmatprep.subr.bf16.mxu0 %v1951
        %2446 = vmatpush1.bf16.msra.mxu0 %v1950
        %2447 = vmatprep.mubr.bf16.mxu0 %v925
        %2448 = vmatmul.mubr.bf16.gmra.mrb[0].mxu0 %v924
        %v2449 = vpop.f32.mrb[0].mxu0
        %v2450 = vadd.f32 %v2409, %v2449
        %v2451 = vpop.f32.mrb[0].mxu0
        %v2452 = vadd.f32 %v2411, %v2451
        %v2453 = vpop.f32.mrb[0].mxu0
        %v2454 = vpop.f32.mrb[0].mxu0
        %2455 = vdwg.mxu0
        %2456 = vmatprep.subr.bf16.mxu0 %v1705
        %2457 = vmatpush1.bf16.msra.mxu0 %v1704
        %2458 = vmatprep.subr.bf16.mxu0 %v1713
        %2459 = vmatpush1.bf16.msra.mxu0 %v1712
        %2460 = vmatprep.subr.bf16.mxu0 %v1721
        %2461 = vmatpush1.bf16.msra.mxu0 %v1720
        %2462 = vmatprep.subr.bf16.mxu0 %v1729
        %2463 = vmatpush1.bf16.msra.mxu0 %v1728
        %2464 = vmatprep.subr.bf16.mxu0 %v1737
        %2465 = vmatpush1.bf16.msra.mxu0 %v1736
        %2466 = vmatprep.subr.bf16.mxu0 %v1745
        %2467 = vmatpush1.bf16.msra.mxu0 %v1744
        %2468 = vmatprep.subr.bf16.mxu0 %v1753
        %2469 = vmatpush1.bf16.msra.mxu0 %v1752
        %2470 = vmatprep.subr.bf16.mxu0 %v1761
        %2471 = vmatpush1.bf16.msra.mxu0 %v1760
        %2472 = vmatprep.subr.bf16.mxu0 %v1769
        %2473 = vmatpush1.bf16.msra.mxu0 %v1768
        %2474 = vmatprep.subr.bf16.mxu0 %v1777
        %2475 = vmatpush1.bf16.msra.mxu0 %v1776
        %2476 = vmatprep.subr.bf16.mxu0 %v1785
        %2477 = vmatpush1.bf16.msra.mxu0 %v1784
        %2478 = vmatprep.subr.bf16.mxu0 %v1793
        %2479 = vmatpush1.bf16.msra.mxu0 %v1792
        %2480 = vmatprep.subr.bf16.mxu0 %v1801
        %2481 = vmatpush1.bf16.msra.mxu0 %v1800
        %2482 = vmatprep.subr.bf16.mxu0 %v1809
        %2483 = vmatpush1.bf16.msra.mxu0 %v1808
        %2484 = vmatprep.subr.bf16.mxu0 %v1817
        %2485 = vmatpush1.bf16.msra.mxu0 %v1816
        %2486 = vmatprep.subr.bf16.mxu0 %v1825
        %2487 = vmatpush1.bf16.msra.mxu0 %v1824
        %2488 = vmatprep.mubr.bf16.mxu0 %v923
        %2489 = vmatmul.mubr.bf16.gmra.mrb[0].mxu0 %v922
        %v2490 = vpop.f32.mrb[0].mxu0
        %v2491 = vadd.f32 %v903, %v2490
        %v2492 = vpop.f32.mrb[0].mxu0
        %v2493 = vadd.f32 %v907, %v2492
        %v2494 = vpop.f32.mrb[0].mxu0
        %v2495 = vpop.f32.mrb[0].mxu0
        %2496 = vdwg.mxu0
        %2497 = vmatprep.subr.bf16.mxu0 %v1833
        %2498 = vmatpush1.bf16.msra.mxu0 %v1832
        %2499 = vmatprep.subr.bf16.mxu0 %v1841
        %2500 = vmatpush1.bf16.msra.mxu0 %v1840
        %2501 = vmatprep.subr.bf16.mxu0 %v1849
        %2502 = vmatpush1.bf16.msra.mxu0 %v1848
        %2503 = vmatprep.subr.bf16.mxu0 %v1857
        %2504 = vmatpush1.bf16.msra.mxu0 %v1856
        %2505 = vmatprep.subr.bf16.mxu0 %v1865
        %2506 = vmatpush1.bf16.msra.mxu0 %v1864
        %2507 = vmatprep.subr.bf16.mxu0 %v1873
        %2508 = vmatpush1.bf16.msra.mxu0 %v1872
        %2509 = vmatprep.subr.bf16.mxu0 %v1881
        %2510 = vmatpush1.bf16.msra.mxu0 %v1880
        %2511 = vmatprep.subr.bf16.mxu0 %v1889
        %2512 = vmatpush1.bf16.msra.mxu0 %v1888
        %2513 = vmatprep.subr.bf16.mxu0 %v1897
        %2514 = vmatpush1.bf16.msra.mxu0 %v1896
        %2515 = vmatprep.subr.bf16.mxu0 %v1905
        %2516 = vmatpush1.bf16.msra.mxu0 %v1904
        %2517 = vmatprep.subr.bf16.mxu0 %v1913
        %2518 = vmatpush1.bf16.msra.mxu0 %v1912
        %2519 = vmatprep.subr.bf16.mxu0 %v1921
        %2520 = vmatpush1.bf16.msra.mxu0 %v1920
        %2521 = vmatprep.subr.bf16.mxu0 %v1929
        %2522 = vmatpush1.bf16.msra.mxu0 %v1928
        %2523 = vmatprep.subr.bf16.mxu0 %v1937
        %2524 = vmatpush1.bf16.msra.mxu0 %v1936
        %2525 = vmatprep.subr.bf16.mxu0 %v1945
        %2526 = vmatpush1.bf16.msra.mxu0 %v1944
        %2527 = vmatprep.subr.bf16.mxu0 %v1953
        %2528 = vmatpush1.bf16.msra.mxu0 %v1952
        %2529 = vmatprep.mubr.bf16.mxu0 %v925
        %2530 = vmatmul.mubr.bf16.gmra.mrb[0].mxu0 %v924
        %v2531 = vpop.f32.mrb[0].mxu0
        %v2532 = vadd.f32 %v2491, %v2531
        %v2533 = vpop.f32.mrb[0].mxu0
        %v2534 = vadd.f32 %v2493, %v2533
        %v2535 = vpop.f32.mrb[0].mxu0
        %v2536 = vpop.f32.mrb[0].mxu0
        %2537 = vdwg.mxu0
        %v2538 = vrot.slane %v2286, 4
        %v2539 = vadd.f32 %v2286, %v2538
        %v2540 = vrot.slane %v2539, 2
        %v2541 = vadd.f32 %v2539, %v2540
        %v2542 = vrot.slane %v2541, 1
        %v2543 = vadd.f32 %v2541, %v2542
        %v2544 = vrot.slane %v2288, 4
        %v2545 = vadd.f32 %v2288, %v2544
        %v2546 = vrot.slane %v2545, 2
        %v2547 = vadd.f32 %v2545, %v2546
        %v2548 = vrot.slane %v2547, 1
        %v2549 = vadd.f32 %v2547, %v2548
        %v2550 = vrot.slane %v2368, 4
        %v2551 = vadd.f32 %v2368, %v2550
        %v2552 = vrot.slane %v2551, 2
        %v2553 = vadd.f32 %v2551, %v2552
        %v2554 = vrot.slane %v2553, 1
        %v2555 = vadd.f32 %v2553, %v2554
        %v2556 = vrot.slane %v2370, 4
        %v2557 = vadd.f32 %v2370, %v2556
        %v2558 = vrot.slane %v2557, 2
        %v2559 = vadd.f32 %v2557, %v2558
        %v2560 = vrot.slane %v2559, 1
        %v2561 = vadd.f32 %v2559, %v2560
        %v2562 = vrot.slane %v2450, 4
        %v2563 = vadd.f32 %v2450, %v2562
        %v2564 = vrot.slane %v2563, 2
        %v2565 = vadd.f32 %v2563, %v2564
        %v2566 = vrot.slane %v2565, 1
        %v2567 = vadd.f32 %v2565, %v2566
        %v2568 = vrot.slane %v2452, 4
        %v2569 = vadd.f32 %v2452, %v2568
        %v2570 = vrot.slane %v2569, 2
        %v2571 = vadd.f32 %v2569, %v2570
        %v2572 = vrot.slane %v2571, 1
        %v2573 = vadd.f32 %v2571, %v2572
        %v2574 = vrot.slane %v2532, 4
        %v2575 = vadd.f32 %v2532, %v2574
        %v2576 = vrot.slane %v2575, 2
        %v2577 = vadd.f32 %v2575, %v2576
        %v2578 = vrot.slane %v2577, 1
        %v2579 = vadd.f32 %v2577, %v2578
        %v2580 = vrot.slane %v2534, 4
        %v2581 = vadd.f32 %v2534, %v2580
        %v2582 = vrot.slane %v2581, 2
        %v2583 = vadd.f32 %v2581, %v2582
        %v2584 = vrot.slane %v2583, 1
        %v2585 = vadd.f32 %v2583, %v2584
        %v2586 = vrcp.pop 8.0
        %v2587 = vmul.f32 %v2543, %v2586
        %v2588 = vmul.f32 %v2549, %v2586
        %v2589 = vmul.f32 %v2555, %v2586
        %v2590 = vmul.f32 %v2561, %v2586
        %v2591 = vmul.f32 %v2567, %v2586
        %v2592 = vmul.f32 %v2573, %v2586
        %v2593 = vmul.f32 %v2579, %v2586
        %v2594 = vmul.f32 %v2585, %v2586
        %v2595 = vpack.c.bf16 %v2587, %v2587
        %v2596 = vpack.c.bf16 %v2588, %v2588
        %v2597 = vpack.c.bf16 %v2589, %v2589
        %v2598 = vpack.c.bf16 %v2590, %v2590
        %v2599 = vpack.c.bf16 %v2591, %v2591
        %v2600 = vpack.c.bf16 %v2592, %v2592
        %v2601 = vpack.c.bf16 %v2593, %v2593
        %v2602 = vpack.c.bf16 %v2594, %v2594
        %v2603 = vld [vmem:[%s3] sm:$0xf]
        %v2604 = vld [vmem:[%s3 + $0x4] sm:$0xf]
        %v2605 = vld [vmem:[%s3 + $0x8] sm:$0xf]
        %v2606 = vld [vmem:[%s3 + $0xc] sm:$0xf]
        %v2607 = vld [vmem:[%s3 + $0x10] sm:$0xf]
        %v2608 = vld [vmem:[%s3 + $0x14] sm:$0xf]
        %v2609 = vld [vmem:[%s3 + $0x18] sm:$0xf]
        %v2610 = vld [vmem:[%s3 + $0x1c] sm:$0xf]
        %v2611 = vld [vmem:[%s3 + $0x20] sm:$0xf]
        %v2612 = vld [vmem:[%s3 + $0x24] sm:$0xf]
        %v2613 = vld [vmem:[%s3 + $0x28] sm:$0xf]
        %v2614 = vld [vmem:[%s3 + $0x2c] sm:$0xf]
        %v2615 = vld [vmem:[%s3 + $0x30] sm:$0xf]
        %v2616 = vld [vmem:[%s3 + $0x34] sm:$0xf]
        %v2617 = vld [vmem:[%s3 + $0x38] sm:$0xf]
        %v2618 = vld [vmem:[%s3 + $0x3c] sm:$0xf]
        %v2619 = vld [vmem:[%s3 + $0x40] sm:$0xf]
        %v2620 = vld [vmem:[%s3 + $0x44] sm:$0xf]
        %v2621 = vld [vmem:[%s3 + $0x48] sm:$0xf]
        %v2622 = vld [vmem:[%s3 + $0x4c] sm:$0xf]
        %v2623 = vld [vmem:[%s3 + $0x50] sm:$0xf]
        %v2624 = vld [vmem:[%s3 + $0x54] sm:$0xf]
        %v2625 = vld [vmem:[%s3 + $0x58] sm:$0xf]
        %v2626 = vld [vmem:[%s3 + $0x5c] sm:$0xf]
        %v2627 = vld [vmem:[%s3 + $0x60] sm:$0xf]
        %v2628 = vld [vmem:[%s3 + $0x64] sm:$0xf]
        %v2629 = vld [vmem:[%s3 + $0x68] sm:$0xf]
        %v2630 = vld [vmem:[%s3 + $0x6c] sm:$0xf]
        %v2631 = vld [vmem:[%s3 + $0x70] sm:$0xf]
        %v2632 = vld [vmem:[%s3 + $0x74] sm:$0xf]
        %v2633 = vld [vmem:[%s3 + $0x78] sm:$0xf]
        %v2634 = vld [vmem:[%s3 + $0x7c] sm:$0xf]
        %v2635 = vld [vmem:[%s3 + $0x80] sm:$0xf]
        %v2636 = vld [vmem:[%s3 + $0x84] sm:$0xf]
        %v2637 = vld [vmem:[%s3 + $0x88] sm:$0xf]
        %v2638 = vld [vmem:[%s3 + $0x8c] sm:$0xf]
        %v2639 = vld [vmem:[%s3 + $0x90] sm:$0xf]
        %v2640 = vld [vmem:[%s3 + $0x94] sm:$0xf]
        %v2641 = vld [vmem:[%s3 + $0x98] sm:$0xf]
        %v2642 = vld [vmem:[%s3 + $0x9c] sm:$0xf]
        %v2643 = vld [vmem:[%s3 + $0xa0] sm:$0xf]
        %v2644 = vld [vmem:[%s3 + $0xa4] sm:$0xf]
        %v2645 = vld [vmem:[%s3 + $0xa8] sm:$0xf]
        %v2646 = vld [vmem:[%s3 + $0xac] sm:$0xf]
        %v2647 = vld [vmem:[%s3 + $0xb0] sm:$0xf]
        %v2648 = vld [vmem:[%s3 + $0xb4] sm:$0xf]
        %v2649 = vld [vmem:[%s3 + $0xb8] sm:$0xf]
        %v2650 = vld [vmem:[%s3 + $0xbc] sm:$0xf]
        %v2651 = vld [vmem:[%s3 + $0xc0] sm:$0xf]
        %v2652 = vld [vmem:[%s3 + $0xc4] sm:$0xf]
        %v2653 = vld [vmem:[%s3 + $0xc8] sm:$0xf]
        %v2654 = vld [vmem:[%s3 + $0xcc] sm:$0xf]
        %v2655 = vld [vmem:[%s3 + $0xd0] sm:$0xf]
        %v2656 = vld [vmem:[%s3 + $0xd4] sm:$0xf]
        %v2657 = vld [vmem:[%s3 + $0xd8] sm:$0xf]
        %v2658 = vld [vmem:[%s3 + $0xdc] sm:$0xf]
        %v2659 = vld [vmem:[%s3 + $0xe0] sm:$0xf]
        %v2660 = vld [vmem:[%s3 + $0xe4] sm:$0xf]
        %v2661 = vld [vmem:[%s3 + $0xe8] sm:$0xf]
        %v2662 = vld [vmem:[%s3 + $0xec] sm:$0xf]
        %v2663 = vld [vmem:[%s3 + $0xf0] sm:$0xf]
        %v2664 = vld [vmem:[%s3 + $0xf4] sm:$0xf]
        %v2665 = vld [vmem:[%s3 + $0xf8] sm:$0xf]
        %v2666 = vld [vmem:[%s3 + $0xfc] sm:$0xf]
        %v2667 = vld [vmem:[%s3 + $0x100] sm:$0xf]
        %v2668 = vld [vmem:[%s3 + $0x104] sm:$0xf]
        %v2669 = vld [vmem:[%s3 + $0x108] sm:$0xf]
        %v2670 = vld [vmem:[%s3 + $0x10c] sm:$0xf]
        %v2671 = vld [vmem:[%s3 + $0x110] sm:$0xf]
        %v2672 = vld [vmem:[%s3 + $0x114] sm:$0xf]
        %v2673 = vld [vmem:[%s3 + $0x118] sm:$0xf]
        %v2674 = vld [vmem:[%s3 + $0x11c] sm:$0xf]
        %v2675 = vld [vmem:[%s3 + $0x120] sm:$0xf]
        %v2676 = vld [vmem:[%s3 + $0x124] sm:$0xf]
        %v2677 = vld [vmem:[%s3 + $0x128] sm:$0xf]
        %v2678 = vld [vmem:[%s3 + $0x12c] sm:$0xf]
        %v2679 = vld [vmem:[%s3 + $0x130] sm:$0xf]
        %v2680 = vld [vmem:[%s3 + $0x134] sm:$0xf]
        %v2681 = vld [vmem:[%s3 + $0x138] sm:$0xf]
        %v2682 = vld [vmem:[%s3 + $0x13c] sm:$0xf]
        %v2683 = vld [vmem:[%s3 + $0x140] sm:$0xf]
        %v2684 = vld [vmem:[%s3 + $0x144] sm:$0xf]
        %v2685 = vld [vmem:[%s3 + $0x148] sm:$0xf]
        %v2686 = vld [vmem:[%s3 + $0x14c] sm:$0xf]
        %v2687 = vld [vmem:[%s3 + $0x150] sm:$0xf]
        %v2688 = vld [vmem:[%s3 + $0x154] sm:$0xf]
        %v2689 = vld [vmem:[%s3 + $0x158] sm:$0xf]
        %v2690 = vld [vmem:[%s3 + $0x15c] sm:$0xf]
        %v2691 = vld [vmem:[%s3 + $0x160] sm:$0xf]
        %v2692 = vld [vmem:[%s3 + $0x164] sm:$0xf]
        %v2693 = vld [vmem:[%s3 + $0x168] sm:$0xf]
        %v2694 = vld [vmem:[%s3 + $0x16c] sm:$0xf]
        %v2695 = vld [vmem:[%s3 + $0x170] sm:$0xf]
        %v2696 = vld [vmem:[%s3 + $0x174] sm:$0xf]
        %v2697 = vld [vmem:[%s3 + $0x178] sm:$0xf]
        %v2698 = vld [vmem:[%s3 + $0x17c] sm:$0xf]
        %v2699 = vld [vmem:[%s3 + $0x180] sm:$0xf]
        %v2700 = vld [vmem:[%s3 + $0x184] sm:$0xf]
        %v2701 = vld [vmem:[%s3 + $0x188] sm:$0xf]
        %v2702 = vld [vmem:[%s3 + $0x18c] sm:$0xf]
        %v2703 = vld [vmem:[%s3 + $0x190] sm:$0xf]
        %v2704 = vld [vmem:[%s3 + $0x194] sm:$0xf]
        %v2705 = vld [vmem:[%s3 + $0x198] sm:$0xf]
        %v2706 = vld [vmem:[%s3 + $0x19c] sm:$0xf]
        %v2707 = vld [vmem:[%s3 + $0x1a0] sm:$0xf]
        %v2708 = vld [vmem:[%s3 + $0x1a4] sm:$0xf]
        %v2709 = vld [vmem:[%s3 + $0x1a8] sm:$0xf]
        %v2710 = vld [vmem:[%s3 + $0x1ac] sm:$0xf]
        %v2711 = vld [vmem:[%s3 + $0x1b0] sm:$0xf]
        %v2712 = vld [vmem:[%s3 + $0x1b4] sm:$0xf]
        %v2713 = vld [vmem:[%s3 + $0x1b8] sm:$0xf]
        %v2714 = vld [vmem:[%s3 + $0x1bc] sm:$0xf]
        %v2715 = vld [vmem:[%s3 + $0x1c0] sm:$0xf]
        %v2716 = vld [vmem:[%s3 + $0x1c4] sm:$0xf]
        %v2717 = vld [vmem:[%s3 + $0x1c8] sm:$0xf]
        %v2718 = vld [vmem:[%s3 + $0x1cc] sm:$0xf]
        %v2719 = vld [vmem:[%s3 + $0x1d0] sm:$0xf]
        %v2720 = vld [vmem:[%s3 + $0x1d4] sm:$0xf]
        %v2721 = vld [vmem:[%s3 + $0x1d8] sm:$0xf]
        %v2722 = vld [vmem:[%s3 + $0x1dc] sm:$0xf]
        %v2723 = vld [vmem:[%s3 + $0x1e0] sm:$0xf]
        %v2724 = vld [vmem:[%s3 + $0x1e4] sm:$0xf]
        %v2725 = vld [vmem:[%s3 + $0x1e8] sm:$0xf]
        %v2726 = vld [vmem:[%s3 + $0x1ec] sm:$0xf]
        %v2727 = vld [vmem:[%s3 + $0x1f0] sm:$0xf]
        %v2728 = vld [vmem:[%s3 + $0x1f4] sm:$0xf]
        %v2729 = vld [vmem:[%s3 + $0x1f8] sm:$0xf]
        %v2730 = vld [vmem:[%s3 + $0x1fc] sm:$0xf]
        %v2731 = vld [vmem:[%s4] sm:$0x1]
        %v2860 = vunpack.c.l.b16 %v2603
        %v2861 = vunpack.c.l.b16 %v2604
        %v2862 = vunpack.c.l.b16 %v2605
        %v2863 = vunpack.c.l.b16 %v2606
        %v2864 = vunpack.c.l.b16 %v2607
        %v2865 = vunpack.c.l.b16 %v2608
        %v2866 = vunpack.c.l.b16 %v2609
        %v2867 = vunpack.c.l.b16 %v2610
        %v2868 = vunpack.c.l.b16 %v2611
        %v2869 = vunpack.c.l.b16 %v2612
        %v2870 = vunpack.c.l.b16 %v2613
        %v2871 = vunpack.c.l.b16 %v2614
        %v2872 = vunpack.c.l.b16 %v2615
        %v2873 = vunpack.c.l.b16 %v2616
        %v2874 = vunpack.c.l.b16 %v2617
        %v2875 = vunpack.c.l.b16 %v2618
        %v2876 = vunpack.c.l.b16 %v2619
        %v2877 = vunpack.c.l.b16 %v2620
        %v2878 = vunpack.c.l.b16 %v2621
        %v2879 = vunpack.c.l.b16 %v2622
        %v2880 = vunpack.c.l.b16 %v2623
        %v2881 = vunpack.c.l.b16 %v2624
        %v2882 = vunpack.c.l.b16 %v2625
        %v2883 = vunpack.c.l.b16 %v2626
        %v2884 = vunpack.c.l.b16 %v2627
        %v2885 = vunpack.c.l.b16 %v2628
        %v2886 = vunpack.c.l.b16 %v2629
        %v2887 = vunpack.c.l.b16 %v2630
        %v2888 = vunpack.c.l.b16 %v2631
        %v2889 = vunpack.c.l.b16 %v2632
        %v2890 = vunpack.c.l.b16 %v2633
        %v2891 = vunpack.c.l.b16 %v2634
        %v2892 = vunpack.c.l.b16 %v2635
        %v2893 = vunpack.c.l.b16 %v2636
        %v2894 = vunpack.c.l.b16 %v2637
        %v2895 = vunpack.c.l.b16 %v2638
        %v2896 = vunpack.c.l.b16 %v2639
        %v2897 = vunpack.c.l.b16 %v2640
        %v2898 = vunpack.c.l.b16 %v2641
        %v2899 = vunpack.c.l.b16 %v2642
        %v2900 = vunpack.c.l.b16 %v2643
        %v2901 = vunpack.c.l.b16 %v2644
        %v2902 = vunpack.c.l.b16 %v2645
        %v2903 = vunpack.c.l.b16 %v2646
        %v2904 = vunpack.c.l.b16 %v2647
        %v2905 = vunpack.c.l.b16 %v2648
        %v2906 = vunpack.c.l.b16 %v2649
        %v2907 = vunpack.c.l.b16 %v2650
        %v2908 = vunpack.c.l.b16 %v2651
        %v2909 = vunpack.c.l.b16 %v2652
        %v2910 = vunpack.c.l.b16 %v2653
        %v2911 = vunpack.c.l.b16 %v2654
        %v2912 = vunpack.c.l.b16 %v2655
        %v2913 = vunpack.c.l.b16 %v2656
        %v2914 = vunpack.c.l.b16 %v2657
        %v2915 = vunpack.c.l.b16 %v2658
        %v2916 = vunpack.c.l.b16 %v2659
        %v2917 = vunpack.c.l.b16 %v2660
        %v2918 = vunpack.c.l.b16 %v2661
        %v2919 = vunpack.c.l.b16 %v2662
        %v2920 = vunpack.c.l.b16 %v2663
        %v2921 = vunpack.c.l.b16 %v2664
        %v2922 = vunpack.c.l.b16 %v2665
        %v2923 = vunpack.c.l.b16 %v2666
        %v2924 = vunpack.c.l.b16 %v2667
        %v2925 = vunpack.c.l.b16 %v2668
        %v2926 = vunpack.c.l.b16 %v2669
        %v2927 = vunpack.c.l.b16 %v2670
        %v2928 = vunpack.c.l.b16 %v2671
        %v2929 = vunpack.c.l.b16 %v2672
        %v2930 = vunpack.c.l.b16 %v2673
        %v2931 = vunpack.c.l.b16 %v2674
        %v2932 = vunpack.c.l.b16 %v2675
        %v2933 = vunpack.c.l.b16 %v2676
        %v2934 = vunpack.c.l.b16 %v2677
        %v2935 = vunpack.c.l.b16 %v2678
        %v2936 = vunpack.c.l.b16 %v2679
        %v2937 = vunpack.c.l.b16 %v2680
        %v2938 = vunpack.c.l.b16 %v2681
        %v2939 = vunpack.c.l.b16 %v2682
        %v2940 = vunpack.c.l.b16 %v2683
        %v2941 = vunpack.c.l.b16 %v2684
        %v2942 = vunpack.c.l.b16 %v2685
        %v2943 = vunpack.c.l.b16 %v2686
        %v2944 = vunpack.c.l.b16 %v2687
        %v2945 = vunpack.c.l.b16 %v2688
        %v2946 = vunpack.c.l.b16 %v2689
        %v2947 = vunpack.c.l.b16 %v2690
        %v2948 = vunpack.c.l.b16 %v2691
        %v2949 = vunpack.c.l.b16 %v2692
        %v2950 = vunpack.c.l.b16 %v2693
        %v2951 = vunpack.c.l.b16 %v2694
        %v2952 = vunpack.c.l.b16 %v2695
        %v2953 = vunpack.c.l.b16 %v2696
        %v2954 = vunpack.c.l.b16 %v2697
        %v2955 = vunpack.c.l.b16 %v2698
        %v2956 = vunpack.c.l.b16 %v2699
        %v2957 = vunpack.c.l.b16 %v2700
        %v2958 = vunpack.c.l.b16 %v2701
        %v2959 = vunpack.c.l.b16 %v2702
        %v2960 = vunpack.c.l.b16 %v2703
        %v2961 = vunpack.c.l.b16 %v2704
        %v2962 = vunpack.c.l.b16 %v2705
        %v2963 = vunpack.c.l.b16 %v2706
        %v2964 = vunpack.c.l.b16 %v2707
        %v2965 = vunpack.c.l.b16 %v2708
        %v2966 = vunpack.c.l.b16 %v2709
        %v2967 = vunpack.c.l.b16 %v2710
        %v2968 = vunpack.c.l.b16 %v2711
        %v2969 = vunpack.c.l.b16 %v2712
        %v2970 = vunpack.c.l.b16 %v2713
        %v2971 = vunpack.c.l.b16 %v2714
        %v2972 = vunpack.c.l.b16 %v2715
        %v2973 = vunpack.c.l.b16 %v2716
        %v2974 = vunpack.c.l.b16 %v2717
        %v2975 = vunpack.c.l.b16 %v2718
        %v2976 = vunpack.c.l.b16 %v2719
        %v2977 = vunpack.c.l.b16 %v2720
        %v2978 = vunpack.c.l.b16 %v2721
        %v2979 = vunpack.c.l.b16 %v2722
        %v2980 = vunpack.c.l.b16 %v2723
        %v2981 = vunpack.c.l.b16 %v2724
        %v2982 = vunpack.c.l.b16 %v2725
        %v2983 = vunpack.c.l.b16 %v2726
        %v2984 = vunpack.c.l.b16 %v2727
        %v2985 = vunpack.c.l.b16 %v2728
        %v2986 = vunpack.c.l.b16 %v2729
        %v2987 = vunpack.c.l.b16 %v2730
        %v2988 = vpack.c.b16 %v2861, %v2860
        %v2989 = vpack.c.b16 %v2863, %v2862
        %v2990 = vpack.c.b16 %v2865, %v2864
        %v2991 = vpack.c.b16 %v2867, %v2866
        %v2992 = vpack.c.b16 %v2869, %v2868
        %v2993 = vpack.c.b16 %v2871, %v2870
        %v2994 = vpack.c.b16 %v2873, %v2872
        %v2995 = vpack.c.b16 %v2875, %v2874
        %v2996 = vpack.c.b16 %v2877, %v2876
        %v2997 = vpack.c.b16 %v2879, %v2878
        %v2998 = vpack.c.b16 %v2881, %v2880
        %v2999 = vpack.c.b16 %v2883, %v2882
        %v3000 = vpack.c.b16 %v2885, %v2884
        %v3001 = vpack.c.b16 %v2887, %v2886
        %v3002 = vpack.c.b16 %v2889, %v2888
        %v3003 = vpack.c.b16 %v2891, %v2890
        %v3004 = vpack.c.b16 %v2893, %v2892
        %v3005 = vpack.c.b16 %v2895, %v2894
        %v3006 = vpack.c.b16 %v2897, %v2896
        %v3007 = vpack.c.b16 %v2899, %v2898
        %v3008 = vpack.c.b16 %v2901, %v2900
        %v3009 = vpack.c.b16 %v2903, %v2902
        %v3010 = vpack.c.b16 %v2905, %v2904
        %v3011 = vpack.c.b16 %v2907, %v2906
        %v3012 = vpack.c.b16 %v2909, %v2908
        %v3013 = vpack.c.b16 %v2911, %v2910
        %v3014 = vpack.c.b16 %v2913, %v2912
        %v3015 = vpack.c.b16 %v2915, %v2914
        %v3016 = vpack.c.b16 %v2917, %v2916
        %v3017 = vpack.c.b16 %v2919, %v2918
        %v3018 = vpack.c.b16 %v2921, %v2920
        %v3019 = vpack.c.b16 %v2923, %v2922
        %v3020 = vpack.c.b16 %v2925, %v2924
        %v3021 = vpack.c.b16 %v2927, %v2926
        %v3022 = vpack.c.b16 %v2929, %v2928
        %v3023 = vpack.c.b16 %v2931, %v2930
        %v3024 = vpack.c.b16 %v2933, %v2932
        %v3025 = vpack.c.b16 %v2935, %v2934
        %v3026 = vpack.c.b16 %v2937, %v2936
        %v3027 = vpack.c.b16 %v2939, %v2938
        %v3028 = vpack.c.b16 %v2941, %v2940
        %v3029 = vpack.c.b16 %v2943, %v2942
        %v3030 = vpack.c.b16 %v2945, %v2944
        %v3031 = vpack.c.b16 %v2947, %v2946
        %v3032 = vpack.c.b16 %v2949, %v2948
        %v3033 = vpack.c.b16 %v2951, %v2950
        %v3034 = vpack.c.b16 %v2953, %v2952
        %v3035 = vpack.c.b16 %v2955, %v2954
        %v3036 = vpack.c.b16 %v2957, %v2956
        %v3037 = vpack.c.b16 %v2959, %v2958
        %v3038 = vpack.c.b16 %v2961, %v2960
        %v3039 = vpack.c.b16 %v2963, %v2962
        %v3040 = vpack.c.b16 %v2965, %v2964
        %v3041 = vpack.c.b16 %v2967, %v2966
        %v3042 = vpack.c.b16 %v2969, %v2968
        %v3043 = vpack.c.b16 %v2971, %v2970
        %v3044 = vpack.c.b16 %v2973, %v2972
        %v3045 = vpack.c.b16 %v2975, %v2974
        %v3046 = vpack.c.b16 %v2977, %v2976
        %v3047 = vpack.c.b16 %v2979, %v2978
        %v3048 = vpack.c.b16 %v2981, %v2980
        %v3049 = vpack.c.b16 %v2983, %v2982
        %v3050 = vpack.c.b16 %v2985, %v2984
        %v3051 = vpack.c.b16 %v2987, %v2986
        %3116 = vmatprep.subr.bf16.mxu0 0
        %3117 = vmatpush1.bf16.msra.mxu0 %v2988
        %3118 = vmatprep.subr.bf16.mxu0 0
        %3119 = vmatpush1.bf16.msra.mxu0 %v2989
        %3120 = vmatprep.subr.bf16.mxu0 0
        %3121 = vmatpush1.bf16.msra.mxu0 %v2990
        %3122 = vmatprep.subr.bf16.mxu0 0
        %3123 = vmatpush1.bf16.msra.mxu0 %v2991
        %3124 = vmatprep.subr.bf16.mxu0 0
        %3125 = vmatpush1.bf16.msra.mxu0 %v2992
        %3126 = vmatprep.subr.bf16.mxu0 0
        %3127 = vmatpush1.bf16.msra.mxu0 %v2993
        %3128 = vmatprep.subr.bf16.mxu0 0
        %3129 = vmatpush1.bf16.msra.mxu0 %v2994
        %3130 = vmatprep.subr.bf16.mxu0 0
        %3131 = vmatpush1.bf16.msra.mxu0 %v2995
        %3132 = vmatprep.subr.bf16.mxu0 0
        %3133 = vmatpush1.bf16.msra.mxu0 %v2996
        %3134 = vmatprep.subr.bf16.mxu0 0
        %3135 = vmatpush1.bf16.msra.mxu0 %v2997
        %3136 = vmatprep.subr.bf16.mxu0 0
        %3137 = vmatpush1.bf16.msra.mxu0 %v2998
        %3138 = vmatprep.subr.bf16.mxu0 0
        %3139 = vmatpush1.bf16.msra.mxu0 %v2999
        %3140 = vmatprep.subr.bf16.mxu0 0
        %3141 = vmatpush1.bf16.msra.mxu0 %v3000
        %3142 = vmatprep.subr.bf16.mxu0 0
        %3143 = vmatpush1.bf16.msra.mxu0 %v3001
        %3144 = vmatprep.subr.bf16.mxu0 0
        %3145 = vmatpush1.bf16.msra.mxu0 %v3002
        %3146 = vmatprep.subr.bf16.mxu0 0
        %3147 = vmatpush1.bf16.msra.mxu0 %v3003
        %3148 = vmatprep.mubr.bf16.mxu0 %v2596
        %3149 = vmatmul.mubr.bf16.gmra.mrb[0].mxu0 %v2595
        %v3150 = vpop.f32.mrb[0].mxu0
        %v3151 = vadd.f32 %v2731, %v3150
        %v3152 = vpop.f32.mrb[0].mxu0
        %v3153 = vpop.f32.mrb[0].mxu0
        %v3154 = vpop.f32.mrb[0].mxu0
        %3155 = vdwg.mxu0
        %3156 = vmatprep.subr.bf16.mxu0 0
        %3157 = vmatpush1.bf16.msra.mxu0 %v3004
        %3158 = vmatprep.subr.bf16.mxu0 0
        %3159 = vmatpush1.bf16.msra.mxu0 %v3005
        %3160 = vmatprep.subr.bf16.mxu0 0
        %3161 = vmatpush1.bf16.msra.mxu0 %v3006
        %3162 = vmatprep.subr.bf16.mxu0 0
        %3163 = vmatpush1.bf16.msra.mxu0 %v3007
        %3164 = vmatprep.subr.bf16.mxu0 0
        %3165 = vmatpush1.bf16.msra.mxu0 %v3008
        %3166 = vmatprep.subr.bf16.mxu0 0
        %3167 = vmatpush1.bf16.msra.mxu0 %v3009
        %3168 = vmatprep.subr.bf16.mxu0 0
        %3169 = vmatpush1.bf16.msra.mxu0 %v3010
        %3170 = vmatprep.subr.bf16.mxu0 0
        %3171 = vmatpush1.bf16.msra.mxu0 %v3011
        %3172 = vmatprep.subr.bf16.mxu0 0
        %3173 = vmatpush1.bf16.msra.mxu0 %v3012
        %3174 = vmatprep.subr.bf16.mxu0 0
        %3175 = vmatpush1.bf16.msra.mxu0 %v3013
        %3176 = vmatprep.subr.bf16.mxu0 0
        %3177 = vmatpush1.bf16.msra.mxu0 %v3014
        %3178 = vmatprep.subr.bf16.mxu0 0
        %3179 = vmatpush1.bf16.msra.mxu0 %v3015
        %3180 = vmatprep.subr.bf16.mxu0 0
        %3181 = vmatpush1.bf16.msra.mxu0 %v3016
        %3182 = vmatprep.subr.bf16.mxu0 0
        %3183 = vmatpush1.bf16.msra.mxu0 %v3017
        %3184 = vmatprep.subr.bf16.mxu0 0
        %3185 = vmatpush1.bf16.msra.mxu0 %v3018
        %3186 = vmatprep.subr.bf16.mxu0 0
        %3187 = vmatpush1.bf16.msra.mxu0 %v3019
        %3188 = vmatprep.mubr.bf16.mxu0 %v2598
        %3189 = vmatmul.mubr.bf16.gmra.mrb[0].mxu0 %v2597
        %v3190 = vpop.f32.mrb[0].mxu0
        %v3191 = vadd.f32 %v3151, %v3190
        %v3192 = vpop.f32.mrb[0].mxu0
        %v3193 = vpop.f32.mrb[0].mxu0
        %v3194 = vpop.f32.mrb[0].mxu0
        %3195 = vdwg.mxu0
        %3196 = vmatprep.subr.bf16.mxu0 0
        %3197 = vmatpush1.bf16.msra.mxu0 %v3020
        %3198 = vmatprep.subr.bf16.mxu0 0
        %3199 = vmatpush1.bf16.msra.mxu0 %v3021
        %3200 = vmatprep.subr.bf16.mxu0 0
        %3201 = vmatpush1.bf16.msra.mxu0 %v3022
        %3202 = vmatprep.subr.bf16.mxu0 0
        %3203 = vmatpush1.bf16.msra.mxu0 %v3023
        %3204 = vmatprep.subr.bf16.mxu0 0
        %3205 = vmatpush1.bf16.msra.mxu0 %v3024
        %3206 = vmatprep.subr.bf16.mxu0 0
        %3207 = vmatpush1.bf16.msra.mxu0 %v3025
        %3208 = vmatprep.subr.bf16.mxu0 0
        %3209 = vmatpush1.bf16.msra.mxu0 %v3026
        %3210 = vmatprep.subr.bf16.mxu0 0
        %3211 = vmatpush1.bf16.msra.mxu0 %v3027
        %3212 = vmatprep.subr.bf16.mxu0 0
        %3213 = vmatpush1.bf16.msra.mxu0 %v3028
        %3214 = vmatprep.subr.bf16.mxu0 0
        %3215 = vmatpush1.bf16.msra.mxu0 %v3029
        %3216 = vmatprep.subr.bf16.mxu0 0
        %3217 = vmatpush1.bf16.msra.mxu0 %v3030
        %3218 = vmatprep.subr.bf16.mxu0 0
        %3219 = vmatpush1.bf16.msra.mxu0 %v3031
        %3220 = vmatprep.subr.bf16.mxu0 0
        %3221 = vmatpush1.bf16.msra.mxu0 %v3032
        %3222 = vmatprep.subr.bf16.mxu0 0
        %3223 = vmatpush1.bf16.msra.mxu0 %v3033
        %3224 = vmatprep.subr.bf16.mxu0 0
        %3225 = vmatpush1.bf16.msra.mxu0 %v3034
        %3226 = vmatprep.subr.bf16.mxu0 0
        %3227 = vmatpush1.bf16.msra.mxu0 %v3035
        %3228 = vmatprep.mubr.bf16.mxu0 %v2600
        %3229 = vmatmul.mubr.bf16.gmra.mrb[0].mxu0 %v2599
        %v3230 = vpop.f32.mrb[0].mxu0
        %v3231 = vadd.f32 %v3191, %v3230
        %v3232 = vpop.f32.mrb[0].mxu0
        %v3233 = vpop.f32.mrb[0].mxu0
        %v3234 = vpop.f32.mrb[0].mxu0
        %3235 = vdwg.mxu0
        %3236 = vmatprep.subr.bf16.mxu0 0
        %3237 = vmatpush1.bf16.msra.mxu0 %v3036
        %3238 = vmatprep.subr.bf16.mxu0 0
        %3239 = vmatpush1.bf16.msra.mxu0 %v3037
        %3240 = vmatprep.subr.bf16.mxu0 0
        %3241 = vmatpush1.bf16.msra.mxu0 %v3038
        %3242 = vmatprep.subr.bf16.mxu0 0
        %3243 = vmatpush1.bf16.msra.mxu0 %v3039
        %3244 = vmatprep.subr.bf16.mxu0 0
        %3245 = vmatpush1.bf16.msra.mxu0 %v3040
        %3246 = vmatprep.subr.bf16.mxu0 0
        %3247 = vmatpush1.bf16.msra.mxu0 %v3041
        %3248 = vmatprep.subr.bf16.mxu0 0
        %3249 = vmatpush1.bf16.msra.mxu0 %v3042
        %3250 = vmatprep.subr.bf16.mxu0 0
        %3251 = vmatpush1.bf16.msra.mxu0 %v3043
        %3252 = vmatprep.subr.bf16.mxu0 0
        %3253 = vmatpush1.bf16.msra.mxu0 %v3044
        %3254 = vmatprep.subr.bf16.mxu0 0
        %3255 = vmatpush1.bf16.msra.mxu0 %v3045
        %3256 = vmatprep.subr.bf16.mxu0 0
        %3257 = vmatpush1.bf16.msra.mxu0 %v3046
        %3258 = vmatprep.subr.bf16.mxu0 0
        %3259 = vmatpush1.bf16.msra.mxu0 %v3047
        %3260 = vmatprep.subr.bf16.mxu0 0
        %3261 = vmatpush1.bf16.msra.mxu0 %v3048
        %3262 = vmatprep.subr.bf16.mxu0 0
        %3263 = vmatpush1.bf16.msra.mxu0 %v3049
        %3264 = vmatprep.subr.bf16.mxu0 0
        %3265 = vmatpush1.bf16.msra.mxu0 %v3050
        %3266 = vmatprep.subr.bf16.mxu0 0
        %3267 = vmatpush1.bf16.msra.mxu0 %v3051
        %3268 = vmatprep.mubr.bf16.mxu0 %v2602
        %3269 = vmatmul.mubr.bf16.gmra.mrb[0].mxu0 %v2601
        %v3270 = vpop.f32.mrb[0].mxu0
        %v3271 = vadd.f32 %v3231, %v3270
        %v3272 = vpop.f32.mrb[0].mxu0
        %v3273 = vpop.f32.mrb[0].mxu0
        %v3274 = vpop.f32.mrb[0].mxu0
        %3275 = vdwg.mxu0
        %v3276 = vld [vmem:[%s6] sm:$0xff]
        %v3277 = vld [vmem:[%s6 + $0x8] sm:$0xff]
        %v3278 = vld [vmem:[%s6 + $0x10] sm:$0xff]
        %v3279 = vld [vmem:[%s6 + $0x18] sm:$0xff]
        %v3280 = vld [vmem:[%s7] sm:$0xf]
        %v3281 = vld [vmem:[%s614] sm:$0xff]
        %v3282 = vld [vmem:[%s614 + $0x8] sm:$0xff]
        %v3283 = vld [vmem:[%s614 + $0x10] sm:$0xff]
        %v3284 = vld [vmem:[%s614 + $0x18] sm:$0xff]
        %vm3285 = vcmask 261120
        %v3287 = vsel %vm3285, %v3281, 0
        %v3290 = vsel %vm3285, %v3282, 0
        %v3293 = vsel %vm3285, %v3283, 0
        %v3296 = vsel %vm3285, %v3284, 0
        %3298 = vmatprep.subr.mxu0 0.0
        %3299 = vmatpush1.msra.mxu0 %v3276
        %3300 = vmatprep.subr.mxu0 0.0
        %3301 = vmatpush1.msra.mxu0 %v3277
        %3302 = vmatprep.subr.mxu0 0.0
        %3303 = vmatpush1.msra.mxu0 %v3278
        %3304 = vmatprep.subr.mxu0 0.0
        %3305 = vmatpush1.msra.mxu0 %v3279
        %3306 = vmatprep.subr.mxu0 0.0
        %3307 = vmatpush1.msra.mxu0 0.0
        %3308 = vmatprep.subr.mxu0 0.0
        %3309 = vmatpush1.msra.mxu0 0.0
        %3310 = vmatprep.subr.mxu0 0.0
        %3311 = vmatpush1.msra.mxu0 0.0
        %3312 = vmatprep.subr.mxu0 0.0
        %3313 = vmatpush1.msra.mxu0 0.0
        %3314 = vmatprep.subr.mxu0 0.0
        %3315 = vmatpush1.msra.mxu0 0.0
        %3316 = vmatprep.subr.mxu0 0.0
        %3317 = vmatpush1.msra.mxu0 0.0
        %3318 = vmatprep.subr.mxu0 0.0
        %3319 = vmatpush1.msra.mxu0 0.0
        %3320 = vmatprep.subr.mxu0 0.0
        %3321 = vmatpush1.msra.mxu0 0.0
        %3322 = vmatprep.subr.mxu0 0.0
        %3323 = vmatpush1.msra.mxu0 0.0
        %3324 = vmatprep.subr.mxu0 0.0
        %3325 = vmatpush1.msra.mxu0 0.0
        %3326 = vmatprep.subr.mxu0 0.0
        %3327 = vmatpush1.msra.mxu0 0.0
        %3328 = vmatprep.subr.mxu0 0.0
        %3329 = vmatpush1.msra.mxu0 0.0
        %3330 = vmatprep.subr.mxu0 0.0
        %3331 = vmatpush1.msra.mxu0 0.0
        %3332 = vmatprep.subr.mxu0 0.0
        %3333 = vmatpush1.msra.mxu0 0.0
        %3334 = vmatprep.subr.mxu0 0.0
        %3335 = vmatpush1.msra.mxu0 0.0
        %3336 = vmatprep.subr.mxu0 0.0
        %3337 = vmatpush1.msra.mxu0 0.0
        %3338 = vmatprep.subr.mxu0 0.0
        %3339 = vmatpush1.msra.mxu0 0.0
        %3340 = vmatprep.subr.mxu0 0.0
        %3341 = vmatpush1.msra.mxu0 0.0
        %3342 = vmatprep.subr.mxu0 0.0
        %3343 = vmatpush1.msra.mxu0 0.0
        %3344 = vmatprep.subr.mxu0 0.0
        %3345 = vmatpush1.msra.mxu0 0.0
        %3346 = vmatprep.subr.mxu0 0.0
        %3347 = vmatpush1.msra.mxu0 0.0
        %3348 = vmatprep.subr.mxu0 0.0
        %3349 = vmatpush1.msra.mxu0 0.0
        %3350 = vmatprep.subr.mxu0 0.0
        %3351 = vmatpush1.msra.mxu0 0.0
        %3352 = vmatprep.subr.mxu0 0.0
        %3353 = vmatpush1.msra.mxu0 0.0
        %3354 = vmatprep.subr.mxu0 0.0
        %3355 = vmatpush1.msra.mxu0 0.0
        %3356 = vmatprep.subr.mxu0 0.0
        %3357 = vmatpush1.msra.mxu0 0.0
        %3358 = vmatprep.subr.mxu0 0.0
        %3359 = vmatpush1.msra.mxu0 0.0
        %3360 = vmatprep.subr.mxu0 0.0
        %3361 = vmatpush1.msra.mxu0 0.0
        %3362 = vmatprep.mubr.f32.mxu0 0.0
        %3363 = vmatmul.mubr.f32.gmra.mrb[0].mxu0 %v3287
        %v3364 = vpop.f32.mrb[0].mxu0
        %v3365 = vadd.f32 0.0, %v3364
        %v3366 = vpop.f32.mrb[0].mxu0
        %3367 = vmatprep.mubr.f32.mxu0 0.0
        %3368 = vmatmul.mubr.f32.gmra.mrb[0].mxu0 %v3290
        %v3369 = vpop.f32.mrb[0].mxu0
        %v3370 = vadd.f32 0.0, %v3369
        %v3371 = vpop.f32.mrb[0].mxu0
        %3372 = vmatprep.mubr.f32.mxu0 0.0
        %3373 = vmatmul.mubr.f32.gmra.mrb[0].mxu0 %v3293
        %v3374 = vpop.f32.mrb[0].mxu0
        %v3375 = vadd.f32 0.0, %v3374
        %v3376 = vpop.f32.mrb[0].mxu0
        %3377 = vmatprep.mubr.f32.mxu0 0.0
        %3378 = vmatmul.mubr.f32.gmra.mrb[0].mxu0 %v3296
        %v3379 = vpop.f32.mrb[0].mxu0
        %v3380 = vadd.f32 0.0, %v3379
        %v3381 = vpop.f32.mrb[0].mxu0
        %3382 = vdwg.mxu0
        %v3384 = vsel %vm3285, %v3280, 0
        %3386 = vmatprep.subr.mxu0 0.0
        %3387 = vmatpush1.msra.mxu0 %v3365
        %3388 = vmatprep.subr.mxu0 0.0
        %3389 = vmatpush1.msra.mxu0 %v3370
        %3390 = vmatprep.subr.mxu0 0.0
        %3391 = vmatpush1.msra.mxu0 %v3375
        %3392 = vmatprep.subr.mxu0 0.0
        %3393 = vmatpush1.msra.mxu0 %v3380
        %3394 = vmatprep.subr.mxu0 0.0
        %3395 = vmatpush1.msra.mxu0 0.0
        %3396 = vmatprep.subr.mxu0 0.0
        %3397 = vmatpush1.msra.mxu0 0.0
        %3398 = vmatprep.subr.mxu0 0.0
        %3399 = vmatpush1.msra.mxu0 0.0
        %3400 = vmatprep.subr.mxu0 0.0
        %3401 = vmatpush1.msra.mxu0 0.0
        %3402 = vmatprep.subr.mxu0 0.0
        %3403 = vmatpush1.msra.mxu0 0.0
        %3404 = vmatprep.subr.mxu0 0.0
        %3405 = vmatpush1.msra.mxu0 0.0
        %3406 = vmatprep.subr.mxu0 0.0
        %3407 = vmatpush1.msra.mxu0 0.0
        %3408 = vmatprep.subr.mxu0 0.0
        %3409 = vmatpush1.msra.mxu0 0.0
        %3410 = vmatprep.subr.mxu0 0.0
        %3411 = vmatpush1.msra.mxu0 0.0
        %3412 = vmatprep.subr.mxu0 0.0
        %3413 = vmatpush1.msra.mxu0 0.0
        %3414 = vmatprep.subr.mxu0 0.0
        %3415 = vmatpush1.msra.mxu0 0.0
        %3416 = vmatprep.subr.mxu0 0.0
        %3417 = vmatpush1.msra.mxu0 0.0
        %3418 = vmatprep.subr.mxu0 0.0
        %3419 = vmatpush1.msra.mxu0 0.0
        %3420 = vmatprep.subr.mxu0 0.0
        %3421 = vmatpush1.msra.mxu0 0.0
        %3422 = vmatprep.subr.mxu0 0.0
        %3423 = vmatpush1.msra.mxu0 0.0
        %3424 = vmatprep.subr.mxu0 0.0
        %3425 = vmatpush1.msra.mxu0 0.0
        %3426 = vmatprep.subr.mxu0 0.0
        %3427 = vmatpush1.msra.mxu0 0.0
        %3428 = vmatprep.subr.mxu0 0.0
        %3429 = vmatpush1.msra.mxu0 0.0
        %3430 = vmatprep.subr.mxu0 0.0
        %3431 = vmatpush1.msra.mxu0 0.0
        %3432 = vmatprep.subr.mxu0 0.0
        %3433 = vmatpush1.msra.mxu0 0.0
        %3434 = vmatprep.subr.mxu0 0.0
        %3435 = vmatpush1.msra.mxu0 0.0
        %3436 = vmatprep.subr.mxu0 0.0
        %3437 = vmatpush1.msra.mxu0 0.0
        %3438 = vmatprep.subr.mxu0 0.0
        %3439 = vmatpush1.msra.mxu0 0.0
        %3440 = vmatprep.subr.mxu0 0.0
        %3441 = vmatpush1.msra.mxu0 0.0
        %3442 = vmatprep.subr.mxu0 0.0
        %3443 = vmatpush1.msra.mxu0 0.0
        %3444 = vmatprep.subr.mxu0 0.0
        %3445 = vmatpush1.msra.mxu0 0.0
        %3446 = vmatprep.subr.mxu0 0.0
        %3447 = vmatpush1.msra.mxu0 0.0
        %3448 = vmatprep.subr.mxu0 0.0
        %3449 = vmatpush1.msra.mxu0 0.0
        %3450 = vmatprep.mubr.f32.mxu0 0.0
        %3451 = vmatmul.mubr.f32.gmra.mrb[0].mxu0 %v3384
        %v3452 = vpop.f32.mrb[0].mxu0
        %v3453 = vadd.f32 0.0, %v3452
        %v3454 = vpop.f32.mrb[0].mxu0
        %3455 = vdwg.mxu0
        %s3456 = scalar_lea.vmem %s614, 32
        %v3457 = vld [vmem:[%s3456] sm:$0xff]
        %v3458 = vld [vmem:[%s3456 + $0x8] sm:$0xff]
        %v3459 = vld [vmem:[%s3456 + $0x10] sm:$0xff]
        %v3460 = vld [vmem:[%s3456 + $0x18] sm:$0xff]
        %v3462 = vsel %vm3285, %v3457, 0
        %v3465 = vsel %vm3285, %v3458, 0
        %v3468 = vsel %vm3285, %v3459, 0
        %v3471 = vsel %vm3285, %v3460, 0
        %3473 = vmatprep.subr.mxu0 0.0
        %3474 = vmatpush1.msra.mxu0 %v3276
        %3475 = vmatprep.subr.mxu0 0.0
        %3476 = vmatpush1.msra.mxu0 %v3277
        %3477 = vmatprep.subr.mxu0 0.0
        %3478 = vmatpush1.msra.mxu0 %v3278
        %3479 = vmatprep.subr.mxu0 0.0
        %3480 = vmatpush1.msra.mxu0 %v3279
        %3481 = vmatprep.subr.mxu0 0.0
        %3482 = vmatpush1.msra.mxu0 0.0
        %3483 = vmatprep.subr.mxu0 0.0
        %3484 = vmatpush1.msra.mxu0 0.0
        %3485 = vmatprep.subr.mxu0 0.0
        %3486 = vmatpush1.msra.mxu0 0.0
        %3487 = vmatprep.subr.mxu0 0.0
        %3488 = vmatpush1.msra.mxu0 0.0
        %3489 = vmatprep.subr.mxu0 0.0
        %3490 = vmatpush1.msra.mxu0 0.0
        %3491 = vmatprep.subr.mxu0 0.0
        %3492 = vmatpush1.msra.mxu0 0.0
        %3493 = vmatprep.subr.mxu0 0.0
        %3494 = vmatpush1.msra.mxu0 0.0
        %3495 = vmatprep.subr.mxu0 0.0
        %3496 = vmatpush1.msra.mxu0 0.0
        %3497 = vmatprep.subr.mxu0 0.0
        %3498 = vmatpush1.msra.mxu0 0.0
        %3499 = vmatprep.subr.mxu0 0.0
        %3500 = vmatpush1.msra.mxu0 0.0
        %3501 = vmatprep.subr.mxu0 0.0
        %3502 = vmatpush1.msra.mxu0 0.0
        %3503 = vmatprep.subr.mxu0 0.0
        %3504 = vmatpush1.msra.mxu0 0.0
        %3505 = vmatprep.subr.mxu0 0.0
        %3506 = vmatpush1.msra.mxu0 0.0
        %3507 = vmatprep.subr.mxu0 0.0
        %3508 = vmatpush1.msra.mxu0 0.0
        %3509 = vmatprep.subr.mxu0 0.0
        %3510 = vmatpush1.msra.mxu0 0.0
        %3511 = vmatprep.subr.mxu0 0.0
        %3512 = vmatpush1.msra.mxu0 0.0
        %3513 = vmatprep.subr.mxu0 0.0
        %3514 = vmatpush1.msra.mxu0 0.0
        %3515 = vmatprep.subr.mxu0 0.0
        %3516 = vmatpush1.msra.mxu0 0.0
        %3517 = vmatprep.subr.mxu0 0.0
        %3518 = vmatpush1.msra.mxu0 0.0
        %3519 = vmatprep.subr.mxu0 0.0
        %3520 = vmatpush1.msra.mxu0 0.0
        %3521 = vmatprep.subr.mxu0 0.0
        %3522 = vmatpush1.msra.mxu0 0.0
        %3523 = vmatprep.subr.mxu0 0.0
        %3524 = vmatpush1.msra.mxu0 0.0
        %3525 = vmatprep.subr.mxu0 0.0
        %3526 = vmatpush1.msra.mxu0 0.0
        %3527 = vmatprep.subr.mxu0 0.0
        %3528 = vmatpush1.msra.mxu0 0.0
        %3529 = vmatprep.subr.mxu0 0.0
        %3530 = vmatpush1.msra.mxu0 0.0
        %3531 = vmatprep.subr.mxu0 0.0
        %3532 = vmatpush1.msra.mxu0 0.0
        %3533 = vmatprep.subr.mxu0 0.0
        %3534 = vmatpush1.msra.mxu0 0.0
        %3535 = vmatprep.subr.mxu0 0.0
        %3536 = vmatpush1.msra.mxu0 0.0
        %3537 = vmatprep.mubr.f32.mxu0 0.0
        %3538 = vmatmul.mubr.f32.gmra.mrb[0].mxu0 %v3462
        %v3539 = vpop.f32.mrb[0].mxu0
        %v3540 = vadd.f32 0.0, %v3539
        %v3541 = vpop.f32.mrb[0].mxu0
        %3542 = vmatprep.mubr.f32.mxu0 0.0
        %3543 = vmatmul.mubr.f32.gmra.mrb[0].mxu0 %v3465
        %v3544 = vpop.f32.mrb[0].mxu0
        %v3545 = vadd.f32 0.0, %v3544
        %v3546 = vpop.f32.mrb[0].mxu0
        %3547 = vmatprep.mubr.f32.mxu0 0.0
        %3548 = vmatmul.mubr.f32.gmra.mrb[0].mxu0 %v3468
        %v3549 = vpop.f32.mrb[0].mxu0
        %v3550 = vadd.f32 0.0, %v3549
        %v3551 = vpop.f32.mrb[0].mxu0
        %3552 = vmatprep.mubr.f32.mxu0 0.0
        %3553 = vmatmul.mubr.f32.gmra.mrb[0].mxu0 %v3471
        %v3554 = vpop.f32.mrb[0].mxu0
        %v3555 = vadd.f32 0.0, %v3554
        %v3556 = vpop.f32.mrb[0].mxu0
        %3557 = vdwg.mxu0
        %3558 = vmatprep.subr.mxu0 0.0
        %3559 = vmatpush1.msra.mxu0 %v3540
        %3560 = vmatprep.subr.mxu0 0.0
        %3561 = vmatpush1.msra.mxu0 %v3545
        %3562 = vmatprep.subr.mxu0 0.0
        %3563 = vmatpush1.msra.mxu0 %v3550
        %3564 = vmatprep.subr.mxu0 0.0
        %3565 = vmatpush1.msra.mxu0 %v3555
        %3566 = vmatprep.subr.mxu0 0.0
        %3567 = vmatpush1.msra.mxu0 0.0
        %3568 = vmatprep.subr.mxu0 0.0
        %3569 = vmatpush1.msra.mxu0 0.0
        %3570 = vmatprep.subr.mxu0 0.0
        %3571 = vmatpush1.msra.mxu0 0.0
        %3572 = vmatprep.subr.mxu0 0.0
        %3573 = vmatpush1.msra.mxu0 0.0
        %3574 = vmatprep.subr.mxu0 0.0
        %3575 = vmatpush1.msra.mxu0 0.0
        %3576 = vmatprep.subr.mxu0 0.0
        %3577 = vmatpush1.msra.mxu0 0.0
        %3578 = vmatprep.subr.mxu0 0.0
        %3579 = vmatpush1.msra.mxu0 0.0
        %3580 = vmatprep.subr.mxu0 0.0
        %3581 = vmatpush1.msra.mxu0 0.0
        %3582 = vmatprep.subr.mxu0 0.0
        %3583 = vmatpush1.msra.mxu0 0.0
        %3584 = vmatprep.subr.mxu0 0.0
        %3585 = vmatpush1.msra.mxu0 0.0
        %3586 = vmatprep.subr.mxu0 0.0
        %3587 = vmatpush1.msra.mxu0 0.0
        %3588 = vmatprep.subr.mxu0 0.0
        %3589 = vmatpush1.msra.mxu0 0.0
        %3590 = vmatprep.subr.mxu0 0.0
        %3591 = vmatpush1.msra.mxu0 0.0
        %3592 = vmatprep.subr.mxu0 0.0
        %3593 = vmatpush1.msra.mxu0 0.0
        %3594 = vmatprep.subr.mxu0 0.0
        %3595 = vmatpush1.msra.mxu0 0.0
        %3596 = vmatprep.subr.mxu0 0.0
        %3597 = vmatpush1.msra.mxu0 0.0
        %3598 = vmatprep.subr.mxu0 0.0
        %3599 = vmatpush1.msra.mxu0 0.0
        %3600 = vmatprep.subr.mxu0 0.0
        %3601 = vmatpush1.msra.mxu0 0.0
        %3602 = vmatprep.subr.mxu0 0.0
        %3603 = vmatpush1.msra.mxu0 0.0
        %3604 = vmatprep.subr.mxu0 0.0
        %3605 = vmatpush1.msra.mxu0 0.0
        %3606 = vmatprep.subr.mxu0 0.0
        %3607 = vmatpush1.msra.mxu0 0.0
        %3608 = vmatprep.subr.mxu0 0.0
        %3609 = vmatpush1.msra.mxu0 0.0
        %3610 = vmatprep.subr.mxu0 0.0
        %3611 = vmatpush1.msra.mxu0 0.0
        %3612 = vmatprep.subr.mxu0 0.0
        %3613 = vmatpush1.msra.mxu0 0.0
        %3614 = vmatprep.subr.mxu0 0.0
        %3615 = vmatpush1.msra.mxu0 0.0
        %3616 = vmatprep.subr.mxu0 0.0
        %3617 = vmatpush1.msra.mxu0 0.0
        %3618 = vmatprep.subr.mxu0 0.0
        %3619 = vmatpush1.msra.mxu0 0.0
        %3620 = vmatprep.subr.mxu0 0.0
        %3621 = vmatpush1.msra.mxu0 0.0
        %3622 = vmatprep.mubr.f32.mxu0 0.0
        %3623 = vmatmul.mubr.f32.gmra.mrb[0].mxu0 %v3384
        %v3624 = vpop.f32.mrb[0].mxu0
        %v3625 = vadd.f32 0.0, %v3624
        %v3626 = vpop.f32.mrb[0].mxu0
        %3627 = vdwg.mxu0
        %s3628 = scalar_lea.vmem %s614, 64
        %v3629 = vld [vmem:[%s3628] sm:$0xff]
        %v3630 = vld [vmem:[%s3628 + $0x8] sm:$0xff]
        %v3631 = vld [vmem:[%s3628 + $0x10] sm:$0xff]
        %v3632 = vld [vmem:[%s3628 + $0x18] sm:$0xff]
        %v3634 = vsel %vm3285, %v3629, 0
        %v3637 = vsel %vm3285, %v3630, 0
        %v3640 = vsel %vm3285, %v3631, 0
        %v3643 = vsel %vm3285, %v3632, 0
        %3645 = vmatprep.subr.mxu0 0.0
        %3646 = vmatpush1.msra.mxu0 %v3276
        %3647 = vmatprep.subr.mxu0 0.0
        %3648 = vmatpush1.msra.mxu0 %v3277
        %3649 = vmatprep.subr.mxu0 0.0
        %3650 = vmatpush1.msra.mxu0 %v3278
        %3651 = vmatprep.subr.mxu0 0.0
        %3652 = vmatpush1.msra.mxu0 %v3279
        %3653 = vmatprep.subr.mxu0 0.0
        %3654 = vmatpush1.msra.mxu0 0.0
        %3655 = vmatprep.subr.mxu0 0.0
        %3656 = vmatpush1.msra.mxu0 0.0
        %3657 = vmatprep.subr.mxu0 0.0
        %3658 = vmatpush1.msra.mxu0 0.0
        %3659 = vmatprep.subr.mxu0 0.0
        %3660 = vmatpush1.msra.mxu0 0.0
        %3661 = vmatprep.subr.mxu0 0.0
        %3662 = vmatpush1.msra.mxu0 0.0
        %3663 = vmatprep.subr.mxu0 0.0
        %3664 = vmatpush1.msra.mxu0 0.0
        %3665 = vmatprep.subr.mxu0 0.0
        %3666 = vmatpush1.msra.mxu0 0.0
        %3667 = vmatprep.subr.mxu0 0.0
        %3668 = vmatpush1.msra.mxu0 0.0
        %3669 = vmatprep.subr.mxu0 0.0
        %3670 = vmatpush1.msra.mxu0 0.0
        %3671 = vmatprep.subr.mxu0 0.0
        %3672 = vmatpush1.msra.mxu0 0.0
        %3673 = vmatprep.subr.mxu0 0.0
        %3674 = vmatpush1.msra.mxu0 0.0
        %3675 = vmatprep.subr.mxu0 0.0
        %3676 = vmatpush1.msra.mxu0 0.0
        %3677 = vmatprep.subr.mxu0 0.0
        %3678 = vmatpush1.msra.mxu0 0.0
        %3679 = vmatprep.subr.mxu0 0.0
        %3680 = vmatpush1.msra.mxu0 0.0
        %3681 = vmatprep.subr.mxu0 0.0
        %3682 = vmatpush1.msra.mxu0 0.0
        %3683 = vmatprep.subr.mxu0 0.0
        %3684 = vmatpush1.msra.mxu0 0.0
        %3685 = vmatprep.subr.mxu0 0.0
        %3686 = vmatpush1.msra.mxu0 0.0
        %3687 = vmatprep.subr.mxu0 0.0
        %3688 = vmatpush1.msra.mxu0 0.0
        %3689 = vmatprep.subr.mxu0 0.0
        %3690 = vmatpush1.msra.mxu0 0.0
        %3691 = vmatprep.subr.mxu0 0.0
        %3692 = vmatpush1.msra.mxu0 0.0
        %3693 = vmatprep.subr.mxu0 0.0
        %3694 = vmatpush1.msra.mxu0 0.0
        %3695 = vmatprep.subr.mxu0 0.0
        %3696 = vmatpush1.msra.mxu0 0.0
        %3697 = vmatprep.subr.mxu0 0.0
        %3698 = vmatpush1.msra.mxu0 0.0
        %3699 = vmatprep.subr.mxu0 0.0
        %3700 = vmatpush1.msra.mxu0 0.0
        %3701 = vmatprep.subr.mxu0 0.0
        %3702 = vmatpush1.msra.mxu0 0.0
        %3703 = vmatprep.subr.mxu0 0.0
        %3704 = vmatpush1.msra.mxu0 0.0
        %3705 = vmatprep.subr.mxu0 0.0
        %3706 = vmatpush1.msra.mxu0 0.0
        %3707 = vmatprep.subr.mxu0 0.0
        %3708 = vmatpush1.msra.mxu0 0.0
        %3709 = vmatprep.mubr.f32.mxu0 0.0
        %3710 = vmatmul.mubr.f32.gmra.mrb[0].mxu0 %v3634
        %v3711 = vpop.f32.mrb[0].mxu0
        %v3712 = vadd.f32 0.0, %v3711
        %v3713 = vpop.f32.mrb[0].mxu0
        %3714 = vmatprep.mubr.f32.mxu0 0.0
        %3715 = vmatmul.mubr.f32.gmra.mrb[0].mxu0 %v3637
        %v3716 = vpop.f32.mrb[0].mxu0
        %v3717 = vadd.f32 0.0, %v3716
        %v3718 = vpop.f32.mrb[0].mxu0
        %3719 = vmatprep.mubr.f32.mxu0 0.0
        %3720 = vmatmul.mubr.f32.gmra.mrb[0].mxu0 %v3640
        %v3721 = vpop.f32.mrb[0].mxu0
        %v3722 = vadd.f32 0.0, %v3721
        %v3723 = vpop.f32.mrb[0].mxu0
        %3724 = vmatprep.mubr.f32.mxu0 0.0
        %3725 = vmatmul.mubr.f32.gmra.mrb[0].mxu0 %v3643
        %v3726 = vpop.f32.mrb[0].mxu0
        %v3727 = vadd.f32 0.0, %v3726
        %v3728 = vpop.f32.mrb[0].mxu0
        %3729 = vdwg.mxu0
        %3730 = vmatprep.subr.mxu0 0.0
        %3731 = vmatpush1.msra.mxu0 %v3712
        %3732 = vmatprep.subr.mxu0 0.0
        %3733 = vmatpush1.msra.mxu0 %v3717
        %3734 = vmatprep.subr.mxu0 0.0
        %3735 = vmatpush1.msra.mxu0 %v3722
        %3736 = vmatprep.subr.mxu0 0.0
        %3737 = vmatpush1.msra.mxu0 %v3727
        %3738 = vmatprep.subr.mxu0 0.0
        %3739 = vmatpush1.msra.mxu0 0.0
        %3740 = vmatprep.subr.mxu0 0.0
        %3741 = vmatpush1.msra.mxu0 0.0
        %3742 = vmatprep.subr.mxu0 0.0
        %3743 = vmatpush1.msra.mxu0 0.0
        %3744 = vmatprep.subr.mxu0 0.0
        %3745 = vmatpush1.msra.mxu0 0.0
        %3746 = vmatprep.subr.mxu0 0.0
        %3747 = vmatpush1.msra.mxu0 0.0
        %3748 = vmatprep.subr.mxu0 0.0
        %3749 = vmatpush1.msra.mxu0 0.0
        %3750 = vmatprep.subr.mxu0 0.0
        %3751 = vmatpush1.msra.mxu0 0.0
        %3752 = vmatprep.subr.mxu0 0.0
        %3753 = vmatpush1.msra.mxu0 0.0
        %3754 = vmatprep.subr.mxu0 0.0
        %3755 = vmatpush1.msra.mxu0 0.0
        %3756 = vmatprep.subr.mxu0 0.0
        %3757 = vmatpush1.msra.mxu0 0.0
        %3758 = vmatprep.subr.mxu0 0.0
        %3759 = vmatpush1.msra.mxu0 0.0
        %3760 = vmatprep.subr.mxu0 0.0
        %3761 = vmatpush1.msra.mxu0 0.0
        %3762 = vmatprep.subr.mxu0 0.0
        %3763 = vmatpush1.msra.mxu0 0.0
        %3764 = vmatprep.subr.mxu0 0.0
        %3765 = vmatpush1.msra.mxu0 0.0
        %3766 = vmatprep.subr.mxu0 0.0
        %3767 = vmatpush1.msra.mxu0 0.0
        %3768 = vmatprep.subr.mxu0 0.0
        %3769 = vmatpush1.msra.mxu0 0.0
        %3770 = vmatprep.subr.mxu0 0.0
        %3771 = vmatpush1.msra.mxu0 0.0
        %3772 = vmatprep.subr.mxu0 0.0
        %3773 = vmatpush1.msra.mxu0 0.0
        %3774 = vmatprep.subr.mxu0 0.0
        %3775 = vmatpush1.msra.mxu0 0.0
        %3776 = vmatprep.subr.mxu0 0.0
        %3777 = vmatpush1.msra.mxu0 0.0
        %3778 = vmatprep.subr.mxu0 0.0
        %3779 = vmatpush1.msra.mxu0 0.0
        %3780 = vmatprep.subr.mxu0 0.0
        %3781 = vmatpush1.msra.mxu0 0.0
        %3782 = vmatprep.subr.mxu0 0.0
        %3783 = vmatpush1.msra.mxu0 0.0
        %3784 = vmatprep.subr.mxu0 0.0
        %3785 = vmatpush1.msra.mxu0 0.0
        %3786 = vmatprep.subr.mxu0 0.0
        %3787 = vmatpush1.msra.mxu0 0.0
        %3788 = vmatprep.subr.mxu0 0.0
        %3789 = vmatpush1.msra.mxu0 0.0
        %3790 = vmatprep.subr.mxu0 0.0
        %3791 = vmatpush1.msra.mxu0 0.0
        %3792 = vmatprep.subr.mxu0 0.0
        %3793 = vmatpush1.msra.mxu0 0.0
        %3794 = vmatprep.mubr.f32.mxu0 0.0
        %3795 = vmatmul.mubr.f32.gmra.mrb[0].mxu0 %v3384
        %v3796 = vpop.f32.mrb[0].mxu0
        %v3797 = vadd.f32 0.0, %v3796
        %v3798 = vpop.f32.mrb[0].mxu0
        %3799 = vdwg.mxu0
        %s3800 = sld [smem:[#allocation2]]
        %v3801 = vstv %s3800
        %v3802 = vmul.f32 %v3453, %v3801
        %s3803 = sld [smem:[#allocation2 + $0x80]]
        %v3804 = vstv %s3803
        %v3805 = vmul.f32 %v3625, %v3804
        %v3806 = vadd.f32 %v3802, %v3805
        %s3807 = sld [smem:[#allocation2 + $0x100]]
        %v3808 = vstv %s3807
        %v3809 = vmul.f32 %v3797, %v3808
        %v3810 = vadd.f32 %v3806, %v3809
        %s3811 = sld [smem:[#allocation5]]
        %v3812 = vstv %s3811
        %v3813 = vadd.f32 %v3810, %v3812
        %v3814 = vmul.f32 %v3813, 0.18215
        %s3815 = sld [smem:[#allocation2 + $0x1]]
        %v3816 = vstv %s3815
        %v3817 = vmul.f32 %v3453, %v3816
        %s3818 = sld [smem:[#allocation2 + $0x81]]
        %v3819 = vstv %s3818
        %v3820 = vmul.f32 %v3625, %v3819
        %v3821 = vadd.f32 %v3817, %v3820
        %s3822 = sld [smem:[#allocation2 + $0x101]]
        %v3823 = vstv %s3822
        %v3824 = vmul.f32 %v3797, %v3823
        %v3825 = vadd.f32 %v3821, %v3824
        %s3826 = sld [smem:[#allocation5 + $0x1]]
        %v3827 = vstv %s3826
        %v3828 = vadd.f32 %v3825, %v3827
        %v3829 = vmul.f32 %v3828, 0.18215
        %s3830 = sld [smem:[#allocation2 + $0x2]]
        %v3831 = vstv %s3830
        %v3832 = vmul.f32 %v3453, %v3831
        %s3833 = sld [smem:[#allocation2 + $0x82]]
        %v3834 = vstv %s3833
        %v3835 = vmul.f32 %v3625, %v3834
        %v3836 = vadd.f32 %v3832, %v3835
        %s3837 = sld [smem:[#allocation2 + $0x102]]
        %v3838 = vstv %s3837
        %v3839 = vmul.f32 %v3797, %v3838
        %v3840 = vadd.f32 %v3836, %v3839
        %s3841 = sld [smem:[#allocation5 + $0x2]]
        %v3842 = vstv %s3841
        %v3843 = vadd.f32 %v3840, %v3842
        %v3844 = vmul.f32 %v3843, 0.18215
        %s3845 = sld [smem:[#allocation2 + $0x3]]
        %v3846 = vstv %s3845
        %v3847 = vmul.f32 %v3453, %v3846
        %s3848 = sld [smem:[#allocation2 + $0x83]]
        %v3849 = vstv %s3848
        %v3850 = vmul.f32 %v3625, %v3849
        %v3851 = vadd.f32 %v3847, %v3850
        %s3852 = sld [smem:[#allocation2 + $0x103]]
        %v3853 = vstv %s3852
        %v3854 = vmul.f32 %v3797, %v3853
        %v3855 = vadd.f32 %v3851, %v3854
        %s3856 = sld [smem:[#allocation5 + $0x3]]
        %v3857 = vstv %s3856
        %v3858 = vadd.f32 %v3855, %v3857
        %v3859 = vmul.f32 %v3858, 0.18215
        %s3860 = sld [smem:[#allocation7]]
        %v3861 = vstv %s3860
        %v3862 = vmul.f32 %v3814, %v3861
        %s3863 = sld [smem:[#allocation7 + $0x80]]
        %v3864 = vstv %s3863
        %v3865 = vmul.f32 %v3829, %v3864
        %v3866 = vadd.f32 %v3862, %v3865
        %s3867 = sld [smem:[#allocation7 + $0x100]]
        %v3868 = vstv %s3867
        %v3869 = vmul.f32 %v3844, %v3868
        %v3870 = vadd.f32 %v3866, %v3869
        %s3871 = sld [smem:[#allocation7 + $0x180]]
        %v3872 = vstv %s3871
        %v3873 = vmul.f32 %v3859, %v3872
        %v3874 = vadd.f32 %v3870, %v3873
        %s3876 = vtos %v3271
        %v3877 = vstv %s3876
        %v3879 = vadd.f32 %v3874, %v3877
        %s3880 = sld [smem:[#allocation7 + $0x1]]
        %v3881 = vstv %s3880
        %v3882 = vmul.f32 %v3814, %v3881
        %s3883 = sld [smem:[#allocation7 + $0x81]]
        %v3884 = vstv %s3883
        %v3885 = vmul.f32 %v3829, %v3884
        %v3886 = vadd.f32 %v3882, %v3885
        %s3887 = sld [smem:[#allocation7 + $0x101]]
        %v3888 = vstv %s3887
        %v3889 = vmul.f32 %v3844, %v3888
        %v3890 = vadd.f32 %v3886, %v3889
        %s3891 = sld [smem:[#allocation7 + $0x181]]
        %v3892 = vstv %s3891
        %v3893 = vmul.f32 %v3859, %v3892
        %v3894 = vadd.f32 %v3890, %v3893
        %3895 = vrot.lane.b32.xlu0 %v3271, 127
        %v3896 = vpop.permute.xlu0 %3895
        %s3897 = vtos %v3896
        %v3898 = vstv %s3897
        %v3900 = vadd.f32 %v3894, %v3898
        %s3901 = sld [smem:[#allocation7 + $0x2]]
        %v3902 = vstv %s3901
        %v3903 = vmul.f32 %v3814, %v3902
        %s3904 = sld [smem:[#allocation7 + $0x82]]
        %v3905 = vstv %s3904
        %v3906 = vmul.f32 %v3829, %v3905
        %v3907 = vadd.f32 %v3903, %v3906
        %s3908 = sld [smem:[#allocation7 + $0x102]]
        %v3909 = vstv %s3908
        %v3910 = vmul.f32 %v3844, %v3909
        %v3911 = vadd.f32 %v3907, %v3910
        %s3912 = sld [smem:[#allocation7 + $0x182]]
        %v3913 = vstv %s3912
        %v3914 = vmul.f32 %v3859, %v3913
        %v3915 = vadd.f32 %v3911, %v3914
        %3916 = vrot.lane.b32.xlu0 %v3271, 126
        %v3917 = vpop.permute.xlu0 %3916
        %s3918 = vtos %v3917
        %v3919 = vstv %s3918
        %v3921 = vadd.f32 %v3915, %v3919
        %s3922 = sld [smem:[#allocation7 + $0x3]]
        %v3923 = vstv %s3922
        %v3924 = vmul.f32 %v3814, %v3923
        %s3925 = sld [smem:[#allocation7 + $0x83]]
        %v3926 = vstv %s3925
        %v3927 = vmul.f32 %v3829, %v3926
        %v3928 = vadd.f32 %v3924, %v3927
        %s3929 = sld [smem:[#allocation7 + $0x103]]
        %v3930 = vstv %s3929
        %v3931 = vmul.f32 %v3844, %v3930
        %v3932 = vadd.f32 %v3928, %v3931
        %s3933 = sld [smem:[#allocation7 + $0x183]]
        %v3934 = vstv %s3933
        %v3935 = vmul.f32 %v3859, %v3934
        %v3936 = vadd.f32 %v3932, %v3935
        %3937 = vrot.lane.b32.xlu0 %v3271, 125
        %v3938 = vpop.permute.xlu0 %3937
        %s3939 = vtos %v3938
        %v3940 = vstv %s3939
        %v3942 = vadd.f32 %v3936, %v3940
        %v3943 = vmul.f32 %v3879, 0.8499002
        %v3944 = vsub.f32 %v3814, %v3943
        %v3945 = vmul.f32 %v3944, 1.897736
        %vm3946 = vcmask 27648
        %3947 = vst.msk [vmem:[%s604] sm:$0xf] %vm3946, %v3945
        %v3948 = vmul.f32 %v3900, 0.8499002
        %v3949 = vsub.f32 %v3829, %v3948
        %v3950 = vmul.f32 %v3949, 1.897736
        %s3951 = scalar_lea.vmem %s604, 4 [#allocation12]
        %3952 = vst.msk [vmem:[%s3951] sm:$0xf] %vm3946, %v3950
        %v3953 = vmul.f32 %v3921, 0.8499002
        %v3954 = vsub.f32 %v3844, %v3953
        %v3955 = vmul.f32 %v3954, 1.897736
        %s3956 = scalar_lea.vmem %s604, 8 [#allocation12]
        %3957 = vst.msk [vmem:[%s3956] sm:$0xf] %vm3946, %v3955
        %v3958 = vmul.f32 %v3942, 0.8499002
        %v3959 = vsub.f32 %v3859, %v3958
        %v3960 = vmul.f32 %v3959, 1.897736
        %s3961 = scalar_lea.vmem %s604, 12 [#allocation12]
        %3962 = vst.msk [vmem:[%s3961] sm:$0xf] %vm3946, %v3960
        %v3963 = vld [vmem:[%s8] sm:$0xff]
        %v3964 = vld [vmem:[%s8 + $0x8] sm:$0xff]
        %v3965 = vld [vmem:[%s8 + $0x10] sm:$0xff]
        %v3966 = vld [vmem:[%s8 + $0x18] sm:$0xff]
        %v3967 = vld [vmem:[%s9] sm:$0xf]
        %s3968 = sld [smem:[#allocation8]]
        %s3969 = smul.f32 %s3968, 5.4899807
        %v3970 = vstv %s3969
        %v3971 = vmul.f32 %v3945, %v3970
        %s3972 = sld [smem:[#allocation8 + $0x80]]
        %s3973 = smul.f32 %s3972, 5.4899807
        %v3974 = vstv %s3973
        %v3975 = vmul.f32 %v3950, %v3974
        %v3976 = vadd.f32 %v3971, %v3975
        %s3977 = sld [smem:[#allocation8 + $0x100]]
        %s3978 = smul.f32 %s3977, 5.4899807
        %v3979 = vstv %s3978
        %v3980 = vmul.f32 %v3955, %v3979
        %v3981 = vadd.f32 %v3976, %v3980
        %s3982 = sld [smem:[#allocation8 + $0x180]]
        %s3983 = smul.f32 %s3982, 5.4899807
        %v3984 = vstv %s3983
        %v3985 = vmul.f32 %v3960, %v3984
        %v3986 = vadd.f32 %v3981, %v3985
        %s3987 = sld [smem:[#allocation10]]
        %v3988 = vstv %s3987
        %v3989 = vadd.f32 %v3986, %v3988
        %v3990 = vmax.f32 %v3989, -1.0
        %v3991 = vmin.f32 %v3990, 1.0
        %vm3992 = vcmask 31744
        %v3994 = vsel %vm3992, %v3963, 0
        %v3997 = vsel %vm3992, %v3964, 0
        %v4000 = vsel %vm3992, %v3965, 0
        %v4003 = vsel %vm3992, %v3966, 0
        %vm4005 = vcmask 1043456
        %v4007 = vsel %vm4005, %v3991, 0
        %4009 = vmatprep.subr.mxu0 0.0
        %4010 = vmatpush1.msra.mxu0 %v4007
        %4011 = vmatprep.subr.mxu0 0.0
        %4012 = vmatpush1.msra.mxu0 0.0
        %4013 = vmatprep.subr.mxu0 0.0
        %4014 = vmatpush1.msra.mxu0 0.0
        %4015 = vmatprep.subr.mxu0 0.0
        %4016 = vmatpush1.msra.mxu0 0.0
        %4017 = vmatprep.subr.mxu0 0.0
        %4018 = vmatpush1.msra.mxu0 0.0
        %4019 = vmatprep.subr.mxu0 0.0
        %4020 = vmatpush1.msra.mxu0 0.0
        %4021 = vmatprep.subr.mxu0 0.0
        %4022 = vmatpush1.msra.mxu0 0.0
        %4023 = vmatprep.subr.mxu0 0.0
        %4024 = vmatpush1.msra.mxu0 0.0
        %4025 = vmatprep.subr.mxu0 0.0
        %4026 = vmatpush1.msra.mxu0 0.0
        %4027 = vmatprep.subr.mxu0 0.0
        %4028 = vmatpush1.msra.mxu0 0.0
        %4029 = vmatprep.subr.mxu0 0.0
        %4030 = vmatpush1.msra.mxu0 0.0
        %4031 = vmatprep.subr.mxu0 0.0
        %4032 = vmatpush1.msra.mxu0 0.0
        %4033 = vmatprep.subr.mxu0 0.0
        %4034 = vmatpush1.msra.mxu0 0.0
        %4035 = vmatprep.subr.mxu0 0.0
        %4036 = vmatpush1.msra.mxu0 0.0
        %4037 = vmatprep.subr.mxu0 0.0
        %4038 = vmatpush1.msra.mxu0 0.0
        %4039 = vmatprep.subr.mxu0 0.0
        %4040 = vmatpush1.msra.mxu0 0.0
        %4041 = vmatprep.subr.mxu0 0.0
        %4042 = vmatpush1.msra.mxu0 0.0
        %4043 = vmatprep.subr.mxu0 0.0
        %4044 = vmatpush1.msra.mxu0 0.0
        %4045 = vmatprep.subr.mxu0 0.0
        %4046 = vmatpush1.msra.mxu0 0.0
        %4047 = vmatprep.subr.mxu0 0.0
        %4048 = vmatpush1.msra.mxu0 0.0
        %4049 = vmatprep.subr.mxu0 0.0
        %4050 = vmatpush1.msra.mxu0 0.0
        %4051 = vmatprep.subr.mxu0 0.0
        %4052 = vmatpush1.msra.mxu0 0.0
        %4053 = vmatprep.subr.mxu0 0.0
        %4054 = vmatpush1.msra.mxu0 0.0
        %4055 = vmatprep.subr.mxu0 0.0
        %4056 = vmatpush1.msra.mxu0 0.0
        %4057 = vmatprep.subr.mxu0 0.0
        %4058 = vmatpush1.msra.mxu0 0.0
        %4059 = vmatprep.subr.mxu0 0.0
        %4060 = vmatpush1.msra.mxu0 0.0
        %4061 = vmatprep.subr.mxu0 0.0
        %4062 = vmatpush1.msra.mxu0 0.0
        %4063 = vmatprep.subr.mxu0 0.0
        %4064 = vmatpush1.msra.mxu0 0.0
        %4065 = vmatprep.subr.mxu0 0.0
        %4066 = vmatpush1.msra.mxu0 0.0
        %4067 = vmatprep.subr.mxu0 0.0
        %4068 = vmatpush1.msra.mxu0 0.0
        %4069 = vmatprep.subr.mxu0 0.0
        %4070 = vmatpush1.msra.mxu0 0.0
        %4071 = vmatprep.subr.mxu0 0.0
        %4072 = vmatpush1.msra.mxu0 0.0
        %4073 = vmatprep.mubr.f32.mxu0 0.0
        %4074 = vmatmul.mubr.f32.gmra.mrb[0].mxu0 %v3994
        %v4075 = vpop.f32.mrb[0].mxu0
        %v4076 = vadd.f32 0.0, %v4075
        %v4077 = vpop.f32.mrb[0].mxu0
        %4078 = vmatprep.mubr.f32.mxu0 0.0
        %4079 = vmatmul.mubr.f32.gmra.mrb[0].mxu0 %v3997
        %v4080 = vpop.f32.mrb[0].mxu0
        %v4081 = vadd.f32 0.0, %v4080
        %v4082 = vpop.f32.mrb[0].mxu0
        %4083 = vmatprep.mubr.f32.mxu0 0.0
        %4084 = vmatmul.mubr.f32.gmra.mrb[0].mxu0 %v4000
        %v4085 = vpop.f32.mrb[0].mxu0
        %v4086 = vadd.f32 0.0, %v4085
        %v4087 = vpop.f32.mrb[0].mxu0
        %4088 = vmatprep.mubr.f32.mxu0 0.0
        %4089 = vmatmul.mubr.f32.gmra.mrb[0].mxu0 %v4003
        %v4090 = vpop.f32.mrb[0].mxu0
        %v4091 = vadd.f32 0.0, %v4090
        %v4092 = vpop.f32.mrb[0].mxu0
        %4093 = vdwg.mxu0
        %v4095 = vsel %vm3992, %v4076, 0
        %v4098 = vsel %vm3992, %v4081, 0
        %v4101 = vsel %vm3992, %v4086, 0
        %v4104 = vsel %vm3992, %v4091, 0
        %v4107 = vsel %vm4005, %v3967, 0
        %4109 = vmatprep.subr.mxu0 0.0
        %4110 = vmatpush1.msra.mxu0 %v4107
        %4111 = vmatprep.subr.mxu0 0.0
        %4112 = vmatpush1.msra.mxu0 0.0
        %4113 = vmatprep.subr.mxu0 0.0
        %4114 = vmatpush1.msra.mxu0 0.0
        %4115 = vmatprep.subr.mxu0 0.0
        %4116 = vmatpush1.msra.mxu0 0.0
        %4117 = vmatprep.subr.mxu0 0.0
        %4118 = vmatpush1.msra.mxu0 0.0
        %4119 = vmatprep.subr.mxu0 0.0
        %4120 = vmatpush1.msra.mxu0 0.0
        %4121 = vmatprep.subr.mxu0 0.0
        %4122 = vmatpush1.msra.mxu0 0.0
        %4123 = vmatprep.subr.mxu0 0.0
        %4124 = vmatpush1.msra.mxu0 0.0
        %4125 = vmatprep.subr.mxu0 0.0
        %4126 = vmatpush1.msra.mxu0 0.0
        %4127 = vmatprep.subr.mxu0 0.0
        %4128 = vmatpush1.msra.mxu0 0.0
        %4129 = vmatprep.subr.mxu0 0.0
        %4130 = vmatpush1.msra.mxu0 0.0
        %4131 = vmatprep.subr.mxu0 0.0
        %4132 = vmatpush1.msra.mxu0 0.0
        %4133 = vmatprep.subr.mxu0 0.0
        %4134 = vmatpush1.msra.mxu0 0.0
        %4135 = vmatprep.subr.mxu0 0.0
        %4136 = vmatpush1.msra.mxu0 0.0
        %4137 = vmatprep.subr.mxu0 0.0
        %4138 = vmatpush1.msra.mxu0 0.0
        %4139 = vmatprep.subr.mxu0 0.0
        %4140 = vmatpush1.msra.mxu0 0.0
        %4141 = vmatprep.subr.mxu0 0.0
        %4142 = vmatpush1.msra.mxu0 0.0
        %4143 = vmatprep.subr.mxu0 0.0
        %4144 = vmatpush1.msra.mxu0 0.0
        %4145 = vmatprep.subr.mxu0 0.0
        %4146 = vmatpush1.msra.mxu0 0.0
        %4147 = vmatprep.subr.mxu0 0.0
        %4148 = vmatpush1.msra.mxu0 0.0
        %4149 = vmatprep.subr.mxu0 0.0
        %4150 = vmatpush1.msra.mxu0 0.0
        %4151 = vmatprep.subr.mxu0 0.0
        %4152 = vmatpush1.msra.mxu0 0.0
        %4153 = vmatprep.subr.mxu0 0.0
        %4154 = vmatpush1.msra.mxu0 0.0
        %4155 = vmatprep.subr.mxu0 0.0
        %4156 = vmatpush1.msra.mxu0 0.0
        %4157 = vmatprep.subr.mxu0 0.0
        %4158 = vmatpush1.msra.mxu0 0.0
        %4159 = vmatprep.subr.mxu0 0.0
        %4160 = vmatpush1.msra.mxu0 0.0
        %4161 = vmatprep.subr.mxu0 0.0
        %4162 = vmatpush1.msra.mxu0 0.0
        %4163 = vmatprep.subr.mxu0 0.0
        %4164 = vmatpush1.msra.mxu0 0.0
        %4165 = vmatprep.subr.mxu0 0.0
        %4166 = vmatpush1.msra.mxu0 0.0
        %4167 = vmatprep.subr.mxu0 0.0
        %4168 = vmatpush1.msra.mxu0 0.0
        %4169 = vmatprep.subr.mxu0 0.0
        %4170 = vmatpush1.msra.mxu0 0.0
        %4171 = vmatprep.subr.mxu0 0.0
        %4172 = vmatpush1.msra.mxu0 0.0
        %4173 = vmatprep.mubr.f32.mxu0 0.0
        %4174 = vmatmul.mubr.f32.gmra.mrb[0].mxu0 %v4095
        %v4175 = vpop.f32.mrb[0].mxu0
        %v4176 = vadd.f32 0.0, %v4175
        %v4177 = vpop.f32.mrb[0].mxu0
        %4178 = vmatprep.mubr.f32.mxu0 0.0
        %4179 = vmatmul.mubr.f32.gmra.mrb[0].mxu0 %v4098
        %v4180 = vpop.f32.mrb[0].mxu0
        %v4181 = vadd.f32 0.0, %v4180
        %v4182 = vpop.f32.mrb[0].mxu0
        %4183 = vmatprep.mubr.f32.mxu0 0.0
        %4184 = vmatmul.mubr.f32.gmra.mrb[0].mxu0 %v4101
        %v4185 = vpop.f32.mrb[0].mxu0
        %v4186 = vadd.f32 0.0, %v4185
        %v4187 = vpop.f32.mrb[0].mxu0
        %4188 = vmatprep.mubr.f32.mxu0 0.0
        %4189 = vmatmul.mubr.f32.gmra.mrb[0].mxu0 %v4104
        %v4190 = vpop.f32.mrb[0].mxu0
        %v4191 = vadd.f32 0.0, %v4190
        %v4192 = vpop.f32.mrb[0].mxu0
        %4193 = vdwg.mxu0
        %4194 = vst.msk [vmem:[%s597] sm:$0xff] %vm3285, %v4176
        %4195 = vst.msk [vmem:[%s597 + $0x8] sm:$0xff] %vm3285, %v4181
        %4196 = vst.msk [vmem:[%s597 + $0x10] sm:$0xff] %vm3285, %v4186
        %4197 = vst.msk [vmem:[%s597 + $0x18] sm:$0xff] %vm3285, %v4191
        %s4198 = sld [smem:[#allocation8 + $0x1]]
        %s4199 = smul.f32 %s4198, 5.4899807
        %v4200 = vstv %s4199
        %v4201 = vmul.f32 %v3945, %v4200
        %s4202 = sld [smem:[#allocation8 + $0x81]]
        %s4203 = smul.f32 %s4202, 5.4899807
        %v4204 = vstv %s4203
        %v4205 = vmul.f32 %v3950, %v4204
        %v4206 = vadd.f32 %v4201, %v4205
        %s4207 = sld [smem:[#allocation8 + $0x101]]
        %s4208 = smul.f32 %s4207, 5.4899807
        %v4209 = vstv %s4208
        %v4210 = vmul.f32 %v3955, %v4209
        %v4211 = vadd.f32 %v4206, %v4210
        %s4212 = sld [smem:[#allocation8 + $0x181]]
        %s4213 = smul.f32 %s4212, 5.4899807
        %v4214 = vstv %s4213
        %v4215 = vmul.f32 %v3960, %v4214
        %v4216 = vadd.f32 %v4211, %v4215
        %s4217 = sld [smem:[#allocation10 + $0x1]]
        %v4218 = vstv %s4217
        %v4219 = vadd.f32 %v4216, %v4218
        %v4220 = vmax.f32 %v4219, -1.0
        %v4221 = vmin.f32 %v4220, 1.0
        %v4223 = vsel %vm4005, %v4221, 0
        %4225 = vmatprep.subr.mxu0 0.0
        %4226 = vmatpush1.msra.mxu0 %v4223
        %4227 = vmatprep.subr.mxu0 0.0
        %4228 = vmatpush1.msra.mxu0 0.0
        %4229 = vmatprep.subr.mxu0 0.0
        %4230 = vmatpush1.msra.mxu0 0.0
        %4231 = vmatprep.subr.mxu0 0.0
        %4232 = vmatpush1.msra.mxu0 0.0
        %4233 = vmatprep.subr.mxu0 0.0
        %4234 = vmatpush1.msra.mxu0 0.0
        %4235 = vmatprep.subr.mxu0 0.0
        %4236 = vmatpush1.msra.mxu0 0.0
        %4237 = vmatprep.subr.mxu0 0.0
        %4238 = vmatpush1.msra.mxu0 0.0
        %4239 = vmatprep.subr.mxu0 0.0
        %4240 = vmatpush1.msra.mxu0 0.0
        %4241 = vmatprep.subr.mxu0 0.0
        %4242 = vmatpush1.msra.mxu0 0.0
        %4243 = vmatprep.subr.mxu0 0.0
        %4244 = vmatpush1.msra.mxu0 0.0
        %4245 = vmatprep.subr.mxu0 0.0
        %4246 = vmatpush1.msra.mxu0 0.0
        %4247 = vmatprep.subr.mxu0 0.0
        %4248 = vmatpush1.msra.mxu0 0.0
        %4249 = vmatprep.subr.mxu0 0.0
        %4250 = vmatpush1.msra.mxu0 0.0
        %4251 = vmatprep.subr.mxu0 0.0
        %4252 = vmatpush1.msra.mxu0 0.0
        %4253 = vmatprep.subr.mxu0 0.0
        %4254 = vmatpush1.msra.mxu0 0.0
        %4255 = vmatprep.subr.mxu0 0.0
        %4256 = vmatpush1.msra.mxu0 0.0
        %4257 = vmatprep.subr.mxu0 0.0
        %4258 = vmatpush1.msra.mxu0 0.0
        %4259 = vmatprep.subr.mxu0 0.0
        %4260 = vmatpush1.msra.mxu0 0.0
        %4261 = vmatprep.subr.mxu0 0.0
        %4262 = vmatpush1.msra.mxu0 0.0
        %4263 = vmatprep.subr.mxu0 0.0
        %4264 = vmatpush1.msra.mxu0 0.0
        %4265 = vmatprep.subr.mxu0 0.0
        %4266 = vmatpush1.msra.mxu0 0.0
        %4267 = vmatprep.subr.mxu0 0.0
        %4268 = vmatpush1.msra.mxu0 0.0
        %4269 = vmatprep.subr.mxu0 0.0
        %4270 = vmatpush1.msra.mxu0 0.0
        %4271 = vmatprep.subr.mxu0 0.0
        %4272 = vmatpush1.msra.mxu0 0.0
        %4273 = vmatprep.subr.mxu0 0.0
        %4274 = vmatpush1.msra.mxu0 0.0
        %4275 = vmatprep.subr.mxu0 0.0
        %4276 = vmatpush1.msra.mxu0 0.0
        %4277 = vmatprep.subr.mxu0 0.0
        %4278 = vmatpush1.msra.mxu0 0.0
        %4279 = vmatprep.subr.mxu0 0.0
        %4280 = vmatpush1.msra.mxu0 0.0
        %4281 = vmatprep.subr.mxu0 0.0
        %4282 = vmatpush1.msra.mxu0 0.0
        %4283 = vmatprep.subr.mxu0 0.0
        %4284 = vmatpush1.msra.mxu0 0.0
        %4285 = vmatprep.subr.mxu0 0.0
        %4286 = vmatpush1.msra.mxu0 0.0
        %4287 = vmatprep.subr.mxu0 0.0
        %4288 = vmatpush1.msra.mxu0 0.0
        %4289 = vmatprep.mubr.f32.mxu0 0.0
        %4290 = vmatmul.mubr.f32.gmra.mrb[0].mxu0 %v3994
        %v4291 = vpop.f32.mrb[0].mxu0
        %v4292 = vadd.f32 0.0, %v4291
        %v4293 = vpop.f32.mrb[0].mxu0
        %4294 = vmatprep.mubr.f32.mxu0 0.0
        %4295 = vmatmul.mubr.f32.gmra.mrb[0].mxu0 %v3997
        %v4296 = vpop.f32.mrb[0].mxu0
        %v4297 = vadd.f32 0.0, %v4296
        %v4298 = vpop.f32.mrb[0].mxu0
        %4299 = vmatprep.mubr.f32.mxu0 0.0
        %4300 = vmatmul.mubr.f32.gmra.mrb[0].mxu0 %v4000
        %v4301 = vpop.f32.mrb[0].mxu0
        %v4302 = vadd.f32 0.0, %v4301
        %v4303 = vpop.f32.mrb[0].mxu0
        %4304 = vmatprep.mubr.f32.mxu0 0.0
        %4305 = vmatmul.mubr.f32.gmra.mrb[0].mxu0 %v4003
        %v4306 = vpop.f32.mrb[0].mxu0
        %v4307 = vadd.f32 0.0, %v4306
        %v4308 = vpop.f32.mrb[0].mxu0
        %4309 = vdwg.mxu0
        %v4311 = vsel %vm3992, %v4292, 0
        %v4314 = vsel %vm3992, %v4297, 0
        %v4317 = vsel %vm3992, %v4302, 0
        %v4320 = vsel %vm3992, %v4307, 0
        %4322 = vmatprep.subr.mxu0 0.0
        %4323 = vmatpush1.msra.mxu0 %v4107
        %4324 = vmatprep.subr.mxu0 0.0
        %4325 = vmatpush1.msra.mxu0 0.0
        %4326 = vmatprep.subr.mxu0 0.0
        %4327 = vmatpush1.msra.mxu0 0.0
        %4328 = vmatprep.subr.mxu0 0.0
        %4329 = vmatpush1.msra.mxu0 0.0
        %4330 = vmatprep.subr.mxu0 0.0
        %4331 = vmatpush1.msra.mxu0 0.0
        %4332 = vmatprep.subr.mxu0 0.0
        %4333 = vmatpush1.msra.mxu0 0.0
        %4334 = vmatprep.subr.mxu0 0.0
        %4335 = vmatpush1.msra.mxu0 0.0
        %4336 = vmatprep.subr.mxu0 0.0
        %4337 = vmatpush1.msra.mxu0 0.0
        %4338 = vmatprep.subr.mxu0 0.0
        %4339 = vmatpush1.msra.mxu0 0.0
        %4340 = vmatprep.subr.mxu0 0.0
        %4341 = vmatpush1.msra.mxu0 0.0
        %4342 = vmatprep.subr.mxu0 0.0
        %4343 = vmatpush1.msra.mxu0 0.0
        %4344 = vmatprep.subr.mxu0 0.0
        %4345 = vmatpush1.msra.mxu0 0.0
        %4346 = vmatprep.subr.mxu0 0.0
        %4347 = vmatpush1.msra.mxu0 0.0
        %4348 = vmatprep.subr.mxu0 0.0
        %4349 = vmatpush1.msra.mxu0 0.0
        %4350 = vmatprep.subr.mxu0 0.0
        %4351 = vmatpush1.msra.mxu0 0.0
        %4352 = vmatprep.subr.mxu0 0.0
        %4353 = vmatpush1.msra.mxu0 0.0
        %4354 = vmatprep.subr.mxu0 0.0
        %4355 = vmatpush1.msra.mxu0 0.0
        %4356 = vmatprep.subr.mxu0 0.0
        %4357 = vmatpush1.msra.mxu0 0.0
        %4358 = vmatprep.subr.mxu0 0.0
        %4359 = vmatpush1.msra.mxu0 0.0
        %4360 = vmatprep.subr.mxu0 0.0
        %4361 = vmatpush1.msra.mxu0 0.0
        %4362 = vmatprep.subr.mxu0 0.0
        %4363 = vmatpush1.msra.mxu0 0.0
        %4364 = vmatprep.subr.mxu0 0.0
        %4365 = vmatpush1.msra.mxu0 0.0
        %4366 = vmatprep.subr.mxu0 0.0
        %4367 = vmatpush1.msra.mxu0 0.0
        %4368 = vmatprep.subr.mxu0 0.0
        %4369 = vmatpush1.msra.mxu0 0.0
        %4370 = vmatprep.subr.mxu0 0.0
        %4371 = vmatpush1.msra.mxu0 0.0
        %4372 = vmatprep.subr.mxu0 0.0
        %4373 = vmatpush1.msra.mxu0 0.0
        %4374 = vmatprep.subr.mxu0 0.0
        %4375 = vmatpush1.msra.mxu0 0.0
        %4376 = vmatprep.subr.mxu0 0.0
        %4377 = vmatpush1.msra.mxu0 0.0
        %4378 = vmatprep.subr.mxu0 0.0
        %4379 = vmatpush1.msra.mxu0 0.0
        %4380 = vmatprep.subr.mxu0 0.0
        %4381 = vmatpush1.msra.mxu0 0.0
        %4382 = vmatprep.subr.mxu0 0.0
        %4383 = vmatpush1.msra.mxu0 0.0
        %4384 = vmatprep.subr.mxu0 0.0
        %4385 = vmatpush1.msra.mxu0 0.0
        %4386 = vmatprep.mubr.f32.mxu0 0.0
        %4387 = vmatmul.mubr.f32.gmra.mrb[0].mxu0 %v4311
        %v4388 = vpop.f32.mrb[0].mxu0
        %v4389 = vadd.f32 0.0, %v4388
        %v4390 = vpop.f32.mrb[0].mxu0
        %4391 = vmatprep.mubr.f32.mxu0 0.0
        %4392 = vmatmul.mubr.f32.gmra.mrb[0].mxu0 %v4314
        %v4393 = vpop.f32.mrb[0].mxu0
        %v4394 = vadd.f32 0.0, %v4393
        %v4395 = vpop.f32.mrb[0].mxu0
        %4396 = vmatprep.mubr.f32.mxu0 0.0
        %4397 = vmatmul.mubr.f32.gmra.mrb[0].mxu0 %v4317
        %v4398 = vpop.f32.mrb[0].mxu0
        %v4399 = vadd.f32 0.0, %v4398
        %v4400 = vpop.f32.mrb[0].mxu0
        %4401 = vmatprep.mubr.f32.mxu0 0.0
        %4402 = vmatmul.mubr.f32.gmra.mrb[0].mxu0 %v4320
        %v4403 = vpop.f32.mrb[0].mxu0
        %v4404 = vadd.f32 0.0, %v4403
        %v4405 = vpop.f32.mrb[0].mxu0
        %4406 = vdwg.mxu0
        %s4407 = scalar_lea.vmem %s597, 32 [#allocation11]
        %4408 = vst.msk [vmem:[%s4407] sm:$0xff] %vm3285, %v4389
        %4409 = vst.msk [vmem:[%s4407 + $0x8] sm:$0xff] %vm3285, %v4394
        %4410 = vst.msk [vmem:[%s4407 + $0x10] sm:$0xff] %vm3285, %v4399
        %4411 = vst.msk [vmem:[%s4407 + $0x18] sm:$0xff] %vm3285, %v4404
        %s4412 = sld [smem:[#allocation8 + $0x2]]
        %s4413 = smul.f32 %s4412, 5.4899807
        %v4414 = vstv %s4413
        %v4415 = vmul.f32 %v3945, %v4414
        %s4416 = sld [smem:[#allocation8 + $0x82]]
        %s4417 = smul.f32 %s4416, 5.4899807
        %v4418 = vstv %s4417
        %v4419 = vmul.f32 %v3950, %v4418
        %v4420 = vadd.f32 %v4415, %v4419
        %s4421 = sld [smem:[#allocation8 + $0x102]]
        %s4422 = smul.f32 %s4421, 5.4899807
        %v4423 = vstv %s4422
        %v4424 = vmul.f32 %v3955, %v4423
        %v4425 = vadd.f32 %v4420, %v4424
        %s4426 = sld [smem:[#allocation8 + $0x182]]
        %s4427 = smul.f32 %s4426, 5.4899807
        %v4428 = vstv %s4427
        %v4429 = vmul.f32 %v3960, %v4428
        %v4430 = vadd.f32 %v4425, %v4429
        %s4431 = sld [smem:[#allocation10 + $0x2]]
        %v4432 = vstv %s4431
        %v4433 = vadd.f32 %v4430, %v4432
        %v4434 = vmax.f32 %v4433, -1.0
        %v4435 = vmin.f32 %v4434, 1.0
        %v4437 = vsel %vm4005, %v4435, 0
        %4439 = vmatprep.subr.mxu0 0.0
        %4440 = vmatpush1.msra.mxu0 %v4437
        %4441 = vmatprep.subr.mxu0 0.0
        %4442 = vmatpush1.msra.mxu0 0.0
        %4443 = vmatprep.subr.mxu0 0.0
        %4444 = vmatpush1.msra.mxu0 0.0
        %4445 = vmatprep.subr.mxu0 0.0
        %4446 = vmatpush1.msra.mxu0 0.0
        %4447 = vmatprep.subr.mxu0 0.0
        %4448 = vmatpush1.msra.mxu0 0.0
        %4449 = vmatprep.subr.mxu0 0.0
        %4450 = vmatpush1.msra.mxu0 0.0
        %4451 = vmatprep.subr.mxu0 0.0
        %4452 = vmatpush1.msra.mxu0 0.0
        %4453 = vmatprep.subr.mxu0 0.0
        %4454 = vmatpush1.msra.mxu0 0.0
        %4455 = vmatprep.subr.mxu0 0.0
        %4456 = vmatpush1.msra.mxu0 0.0
        %4457 = vmatprep.subr.mxu0 0.0
        %4458 = vmatpush1.msra.mxu0 0.0
        %4459 = vmatprep.subr.mxu0 0.0
        %4460 = vmatpush1.msra.mxu0 0.0
        %4461 = vmatprep.subr.mxu0 0.0
        %4462 = vmatpush1.msra.mxu0 0.0
        %4463 = vmatprep.subr.mxu0 0.0
        %4464 = vmatpush1.msra.mxu0 0.0
        %4465 = vmatprep.subr.mxu0 0.0
        %4466 = vmatpush1.msra.mxu0 0.0
        %4467 = vmatprep.subr.mxu0 0.0
        %4468 = vmatpush1.msra.mxu0 0.0
        %4469 = vmatprep.subr.mxu0 0.0
        %4470 = vmatpush1.msra.mxu0 0.0
        %4471 = vmatprep.subr.mxu0 0.0
        %4472 = vmatpush1.msra.mxu0 0.0
        %4473 = vmatprep.subr.mxu0 0.0
        %4474 = vmatpush1.msra.mxu0 0.0
        %4475 = vmatprep.subr.mxu0 0.0
        %4476 = vmatpush1.msra.mxu0 0.0
        %4477 = vmatprep.subr.mxu0 0.0
        %4478 = vmatpush1.msra.mxu0 0.0
        %4479 = vmatprep.subr.mxu0 0.0
        %4480 = vmatpush1.msra.mxu0 0.0
        %4481 = vmatprep.subr.mxu0 0.0
        %4482 = vmatpush1.msra.mxu0 0.0
        %4483 = vmatprep.subr.mxu0 0.0
        %4484 = vmatpush1.msra.mxu0 0.0
        %4485 = vmatprep.subr.mxu0 0.0
        %4486 = vmatpush1.msra.mxu0 0.0
        %4487 = vmatprep.subr.mxu0 0.0
        %4488 = vmatpush1.msra.mxu0 0.0
        %4489 = vmatprep.subr.mxu0 0.0
        %4490 = vmatpush1.msra.mxu0 0.0
        %4491 = vmatprep.subr.mxu0 0.0
        %4492 = vmatpush1.msra.mxu0 0.0
        %4493 = vmatprep.subr.mxu0 0.0
        %4494 = vmatpush1.msra.mxu0 0.0
        %4495 = vmatprep.subr.mxu0 0.0
        %4496 = vmatpush1.msra.mxu0 0.0
        %4497 = vmatprep.subr.mxu0 0.0
        %4498 = vmatpush1.msra.mxu0 0.0
        %4499 = vmatprep.subr.mxu0 0.0
        %4500 = vmatpush1.msra.mxu0 0.0
        %4501 = vmatprep.subr.mxu0 0.0
        %4502 = vmatpush1.msra.mxu0 0.0
        %4503 = vmatprep.mubr.f32.mxu0 0.0
        %4504 = vmatmul.mubr.f32.gmra.mrb[0].mxu0 %v3994
        %v4505 = vpop.f32.mrb[0].mxu0
        %v4506 = vadd.f32 0.0, %v4505
        %v4507 = vpop.f32.mrb[0].mxu0
        %4508 = vmatprep.mubr.f32.mxu0 0.0
        %4509 = vmatmul.mubr.f32.gmra.mrb[0].mxu0 %v3997
        %v4510 = vpop.f32.mrb[0].mxu0
        %v4511 = vadd.f32 0.0, %v4510
        %v4512 = vpop.f32.mrb[0].mxu0
        %4513 = vmatprep.mubr.f32.mxu0 0.0
        %4514 = vmatmul.mubr.f32.gmra.mrb[0].mxu0 %v4000
        %v4515 = vpop.f32.mrb[0].mxu0
        %v4516 = vadd.f32 0.0, %v4515
        %v4517 = vpop.f32.mrb[0].mxu0
        %4518 = vmatprep.mubr.f32.mxu0 0.0
        %4519 = vmatmul.mubr.f32.gmra.mrb[0].mxu0 %v4003
        %v4520 = vpop.f32.mrb[0].mxu0
        %v4521 = vadd.f32 0.0, %v4520
        %v4522 = vpop.f32.mrb[0].mxu0
        %4523 = vdwg.mxu0
        %v4525 = vsel %vm3992, %v4506, 0
        %v4528 = vsel %vm3992, %v4511, 0
        %v4531 = vsel %vm3992, %v4516, 0
        %v4534 = vsel %vm3992, %v4521, 0
        %4536 = vmatprep.subr.mxu0 0.0
        %4537 = vmatpush1.msra.mxu0 %v4107
        %4538 = vmatprep.subr.mxu0 0.0
        %4539 = vmatpush1.msra.mxu0 0.0
        %4540 = vmatprep.subr.mxu0 0.0
        %4541 = vmatpush1.msra.mxu0 0.0
        %4542 = vmatprep.subr.mxu0 0.0
        %4543 = vmatpush1.msra.mxu0 0.0
        %4544 = vmatprep.subr.mxu0 0.0
        %4545 = vmatpush1.msra.mxu0 0.0
        %4546 = vmatprep.subr.mxu0 0.0
        %4547 = vmatpush1.msra.mxu0 0.0
        %4548 = vmatprep.subr.mxu0 0.0
        %4549 = vmatpush1.msra.mxu0 0.0
        %4550 = vmatprep.subr.mxu0 0.0
        %4551 = vmatpush1.msra.mxu0 0.0
        %4552 = vmatprep.subr.mxu0 0.0
        %4553 = vmatpush1.msra.mxu0 0.0
        %4554 = vmatprep.subr.mxu0 0.0
        %4555 = vmatpush1.msra.mxu0 0.0
        %4556 = vmatprep.subr.mxu0 0.0
        %4557 = vmatpush1.msra.mxu0 0.0
        %4558 = vmatprep.subr.mxu0 0.0
        %4559 = vmatpush1.msra.mxu0 0.0
        %4560 = vmatprep.subr.mxu0 0.0
        %4561 = vmatpush1.msra.mxu0 0.0
        %4562 = vmatprep.subr.mxu0 0.0
        %4563 = vmatpush1.msra.mxu0 0.0
        %4564 = vmatprep.subr.mxu0 0.0
        %4565 = vmatpush1.msra.mxu0 0.0
        %4566 = vmatprep.subr.mxu0 0.0
        %4567 = vmatpush1.msra.mxu0 0.0
        %4568 = vmatprep.subr.mxu0 0.0
        %4569 = vmatpush1.msra.mxu0 0.0
        %4570 = vmatprep.subr.mxu0 0.0
        %4571 = vmatpush1.msra.mxu0 0.0
        %4572 = vmatprep.subr.mxu0 0.0
        %4573 = vmatpush1.msra.mxu0 0.0
        %4574 = vmatprep.subr.mxu0 0.0
        %4575 = vmatpush1.msra.mxu0 0.0
        %4576 = vmatprep.subr.mxu0 0.0
        %4577 = vmatpush1.msra.mxu0 0.0
        %4578 = vmatprep.subr.mxu0 0.0
        %4579 = vmatpush1.msra.mxu0 0.0
        %4580 = vmatprep.subr.mxu0 0.0
        %4581 = vmatpush1.msra.mxu0 0.0
        %4582 = vmatprep.subr.mxu0 0.0
        %4583 = vmatpush1.msra.mxu0 0.0
        %4584 = vmatprep.subr.mxu0 0.0
        %4585 = vmatpush1.msra.mxu0 0.0
        %4586 = vmatprep.subr.mxu0 0.0
        %4587 = vmatpush1.msra.mxu0 0.0
        %4588 = vmatprep.subr.mxu0 0.0
        %4589 = vmatpush1.msra.mxu0 0.0
        %4590 = vmatprep.subr.mxu0 0.0
        %4591 = vmatpush1.msra.mxu0 0.0
        %4592 = vmatprep.subr.mxu0 0.0
        %4593 = vmatpush1.msra.mxu0 0.0
        %4594 = vmatprep.subr.mxu0 0.0
        %4595 = vmatpush1.msra.mxu0 0.0
        %4596 = vmatprep.subr.mxu0 0.0
        %4597 = vmatpush1.msra.mxu0 0.0
        %4598 = vmatprep.subr.mxu0 0.0
        %4599 = vmatpush1.msra.mxu0 0.0
        %4600 = vmatprep.mubr.f32.mxu0 0.0
        %4601 = vmatmul.mubr.f32.gmra.mrb[0].mxu0 %v4525
        %v4602 = vpop.f32.mrb[0].mxu0
        %v4603 = vadd.f32 0.0, %v4602
        %v4604 = vpop.f32.mrb[0].mxu0
        %4605 = vmatprep.mubr.f32.mxu0 0.0
        %4606 = vmatmul.mubr.f32.gmra.mrb[0].mxu0 %v4528
        %v4607 = vpop.f32.mrb[0].mxu0
        %v4608 = vadd.f32 0.0, %v4607
        %v4609 = vpop.f32.mrb[0].mxu0
        %4610 = vmatprep.mubr.f32.mxu0 0.0
        %4611 = vmatmul.mubr.f32.gmra.mrb[0].mxu0 %v4531
        %v4612 = vpop.f32.mrb[0].mxu0
        %v4613 = vadd.f32 0.0, %v4612
        %v4614 = vpop.f32.mrb[0].mxu0
        %4615 = vmatprep.mubr.f32.mxu0 0.0
        %4616 = vmatmul.mubr.f32.gmra.mrb[0].mxu0 %v4534
        %v4617 = vpop.f32.mrb[0].mxu0
        %v4618 = vadd.f32 0.0, %v4617
        %v4619 = vpop.f32.mrb[0].mxu0
        %4620 = vdwg.mxu0
        %s4621 = scalar_lea.vmem %s597, 64 [#allocation11]
        %4622 = vst.msk [vmem:[%s4621] sm:$0xff] %vm3285, %v4603
        %4623 = vst.msk [vmem:[%s4621 + $0x8] sm:$0xff] %vm3285, %v4608
        %4624 = vst.msk [vmem:[%s4621 + $0x10] sm:$0xff] %vm3285, %v4613
        %4625 = vst.msk [vmem:[%s4621 + $0x18] sm:$0xff] %vm3285, %v4618
        %s4626 = sand.u32 %s370, 1
        %s4627 = scalar_lea.sflag [#allocation3], %s4626
        %s4628 = sand.u32 %s370, 1
        %s4629 = smul.addr %s4628, 96
        %s4630 = scalar_lea.vmem [#allocation11], %s4629
        %s4631 = sand.u32 %s396, 1
        %s4632 = scalar_lea.sflag [#allocation13], %s4631
        %s4633 = sand.u32 %s396, 1
        %s4634 = smul.addr %s4633, 16
        %s4635 = scalar_lea.vmem [#allocation12], %s4634
        // Predicated region
        $region101: #{codiff_forward.1} parent=79 // pred_check
          %p4636 = pneg %p380
        $region102: #{codiff_forward.1} parent=79 // pred_check_branch
          %4638 = sbr.rel (%p4636) target = $region104
        $region103: #{codiff_forward.1} parent=79 // pred_region
          %s4640 = ssub.s32 1536, 1536
          %4641 = vsyncadd %s4627, %s4640
          %s4642 = smul.addr %s37, 12
          %s4643 = smul.addr %s4642, 128
          %s4644 = scalar_lea.hbm %s15, %s4643
          %s4645 = sshll.u32 %s4630, 4
          %s4646 = int_to_ptr.vmem [resolvable:$true] %s4645
          %4651 = dma.vmem_to_hbm [thread:$0]  %s4646, 1536, %s4644, %s4627, 128, 128, 8
        $region104: #{codiff_forward.1} parent=79 // pred_fallthru
          _
        // Predicated region
        $region105: #{codiff_forward.1} parent=79 // pred_check
          %p4652 = pneg %p406
        $region106: #{codiff_forward.1} parent=79 // pred_check_branch
          %4654 = sbr.rel (%p4652) target = $region108
        $region107: #{codiff_forward.1} parent=79 // pred_region
          %s4656 = ssub.s32 256, 256
          %4657 = vsyncadd %s4632, %s4656
          %s4658 = smul.addr %s37, 4
          %s4659 = smul.addr %s4658, 64
          %s4660 = scalar_lea.hbm %s16, %s4659
          %s4661 = sshll.u32 %s4635, 4
          %s4662 = int_to_ptr.vmem [resolvable:$true] %s4661
          %4667 = dma.vmem_to_hbm [thread:$0]  %s4662, 256, %s4660, %s4632, 64, 64, 4
        $region108: #{codiff_forward.1} parent=79 // pred_fallthru
          _
      $region80: #{codiff_forward.1} parent=5 // pred_fallthru
        _
      %p4668 = scmp.le.s32.totalorder 2, %s32
      // Predicated region
      $region109: #{codiff_forward.1} parent=5 // pred_check
        %p4669 = pneg %p4668
      $region110: #{codiff_forward.1} parent=5 // pred_check_branch
        %4671 = sbr.rel (%p4669) target = $region112
      $region111: #{codiff_forward.1} parent=5 // pred_region
        %s4672 = ssub.s32 %s32, 2
        // Predicated region
        $region113: #{codiff_forward.1} parent=111 // pred_check
          %p4673 = pneg %p386
        $region114: #{codiff_forward.1} parent=111 // pred_check_branch
          %4675 = sbr.rel (%p4673) target = $region116
        $region115: #{codiff_forward.1} parent=111 // pred_region
          %s4676 = sand.u32 %s371, 1
          %s4677 = scalar_lea.sflag [#allocation3], %s4676
          %s4678 = sand.u32 %s371, 1
          %s4679 = smul.addr %s4678, 96
          %s4680 = scalar_lea.vmem [#allocation11], %s4679
          %4681 = dma.done %s4677, 1536
        $region116: #{codiff_forward.1} parent=111 // pred_fallthru
          _
        // Predicated region
        $region117: #{codiff_forward.1} parent=111 // pred_check
          %p4682 = pneg %p412
        $region118: #{codiff_forward.1} parent=111 // pred_check_branch
          %4684 = sbr.rel (%p4682) target = $region120
        $region119: #{codiff_forward.1} parent=111 // pred_region
          %s4685 = sand.u32 %s397, 1
          %s4686 = scalar_lea.sflag [#allocation13], %s4685
          %s4687 = sand.u32 %s397, 1
          %s4688 = smul.addr %s4687, 16
          %s4689 = scalar_lea.vmem [#allocation12], %s4688
          %4690 = dma.done %s4686, 256
        $region120: #{codiff_forward.1} parent=111 // pred_fallthru
          _
      $region112: #{codiff_forward.1} parent=5 // pred_fallthru
        _
    $region6: #{codiff_forward.1} parent=1 // loop_footer
      %s36 = sadd.s32 1, %s32
    $region7: #{codiff_forward.1} parent=1 // loop_footer_branch
      %31 = sbr.rel target = $region3
    $region8: #{codiff_forward.1} parent=1 // loop_exit
      _
    %4691 = vsyncpa [#allocation3], 1
    %s4692 = scalar_lea.sflag [#allocation3], 1
    %4693 = vsyncpa %s4692, 1
    %4694 = vsyncpa [#allocation13], 1
    %s4695 = scalar_lea.sflag [#allocation13], 1
    %4696 = vsyncpa %s4695, 1
    %4697 = vsyncpa [#allocation4], 1
    %s4698 = scalar_lea.sflag [#allocation4], 1
    %4699 = vsyncpa %s4698, 1
    %4700 = vsyncpa [#allocation6], 1
    %4701 = vsyncpa [#allocation9], 1

</llo_original>
